<compile_context>
chip_gen: v7x
topology: tpu7x:2x2x1
jax: 0.10.0
libtpu: 0.0.40
codegen_flags: <defaults>
</compile_context>

<pallas_src>
import functools

import jax
import jax.numpy as jnp
from jax.experimental import pallas as pl
from jax.experimental.pallas import tpu as pltpu


# ----------------------------- Pallas kernel ---------------------------------
def _layer_kernel(x_ref, lng_ref, lnb_ref,
                  wqkv_ref, bqkv_ref, wo_ref, bo_ref,
                  w1_ref, b1_ref, w2_ref, b2_ref,
                  g1y_ref, g1x_ref, g1u_ref,
                  g2y_ref, g2x_ref, g2u_ref,
                  bg_ref, out_ref, *, num_heads):
    f32 = jnp.float32
    bf16 = jnp.bfloat16

    x = x_ref[...]                              # (Bt, S, D) f32
    Bt, S, D = x.shape
    N = Bt * S
    dh = D // num_heads
    xf = x.reshape(N, D)                        # flatten tokens for all dense matmuls

    gamma = lng_ref[...]                        # (1, D)
    beta = lnb_ref[...]                         # (1, D)

    def dot(a, b):                              # bf16 MXU matmul, f32 accumulation
        return jnp.dot(a.astype(bf16), b, preferred_element_type=f32)

    def layernorm(v):                           # nn.LayerNorm(embed_dim), eps = 1e-5
        mu = jnp.mean(v, axis=-1, keepdims=True)
        var = jnp.mean((v - mu) ** 2, axis=-1, keepdims=True)
        return (v - mu) * jax.lax.rsqrt(var + 1e-5) * gamma + beta

    def gru_gate(wy_ref, wx_ref, wu_ref, bg, xx, yy):
        # wy = [Wr|Wz|Wg] (D,3D) applied to yy ; wx = [Ur|Uz] (D,2D) applied to xx ;
        # wu = Ug (D,D) applied to r*xx ; bg is a scalar from SMEM.
        ty = dot(yy, wy_ref[...])               # (N, 3D)
        tx = dot(xx, wx_ref[...])               # (N, 2D)
        r = jax.nn.sigmoid(ty[:, :D] + tx[:, :D])
        z = jax.nn.sigmoid(ty[:, D:2 * D] + tx[:, D:] - bg)
        h = jnp.tanh(ty[:, 2 * D:] + dot(r * xx, wu_ref[...]))
        return (1.0 - z) * xx + z * h

    # ----- y = mha(ln1(x)) : fused QKV, head-batched attention -----
    y = layernorm(xf)
    qkv = dot(y, wqkv_ref[...]) + bqkv_ref[...]           # (N, 3D); 1/sqrt(dh) pre-folded
    q3 = qkv[:, :D].reshape(Bt, S, D).astype(bf16)
    k3 = qkv[:, D:2 * D].reshape(Bt, S, D).astype(bf16)
    v3 = qkv[:, 2 * D:].reshape(Bt, S, D).astype(bf16)

    row = jax.lax.broadcasted_iota(jnp.int32, (Bt, S, S), 1)
    col = jax.lax.broadcasted_iota(jnp.int32, (Bt, S, S), 2)
    causal = col <= row                                   # hoisted out of the head loop

    # TODO(synk): 4-D dot_general with two batch dims (b,h) is not reliably lowered by
    # Mosaic, so heads stay a static loop; each iteration is a 3-D einsum batched over
    # the Bt batch block (no per-(b,h) 2-D matmuls, no kh.T).
    head_outs = []
    for h in range(num_heads):
        sl = slice(h * dh, (h + 1) * dh)
        s = jnp.einsum('bqd,bkd->bqk', q3[:, :, sl], k3[:, :, sl],
                       preferred_element_type=f32)        # (Bt, S, S)
        s = jnp.where(causal, s, -1e30)
        s = s - jnp.max(s, axis=-1, keepdims=True)
        p = jnp.exp(s)
        p = p * pl.reciprocal(jnp.sum(p, axis=-1, keepdims=True), approx=True)
        head_outs.append(jnp.einsum('bqk,bkd->bqd', p.astype(bf16), v3[:, :, sl],
                                    preferred_element_type=f32))
    attn = jnp.concatenate(head_outs, axis=-1).reshape(N, D)
    y = dot(attn, wo_ref[...]) + bo_ref[...]

    # TODO(synk): nn.Dropout(0.1) is identity in eval mode; no stochastic drop implemented.
    x1 = gru_gate(g1y_ref, g1x_ref, g1u_ref, bg_ref[0], xf, jnp.maximum(y, 0.0))

    # ----- y2 = mlp(ln1(x1))  (same ln1 params, matching the PyTorch forward) -----
    # TODO(synk): for large M, stream W1/W2 K/N tiles with pltpu.emit_pipeline instead
    # of holding the full (D,M)/(M,D) matrices in VMEM.
    y2 = layernorm(x1)
    hmid = jnp.maximum(dot(y2, w1_ref[...]) + b1_ref[...], 0.0)
    y2 = dot(hmid, w2_ref[...]) + b2_ref[...]

    x2 = gru_gate(g2y_ref, g2x_ref, g2u_ref, bg_ref[1], x1, jnp.maximum(y2, 0.0))
    out_ref[...] = x2.reshape(Bt, S, D)


# ------------------------------ wrapper ---------------------------------------
def decoder_prexl_layer(x, params, num_heads, block_b=None):
    B, S, D = x.shape
    if block_b is None:
        block_b = B
    assert B % block_b == 0, "block_b must divide batch"
    bf16 = jnp.bfloat16

    # --- one-time parameter packing (would live at module init in real use) ---
    dh = D // num_heads
    scale = 1.0 / (dh ** 0.5)
    wq, wk, wv, wo = params["attn_w"]
    bq, bk, bv, bo = params["attn_b"]
    wqkv = jnp.concatenate([wq * scale, wk, wv], axis=1).astype(bf16)    # (D, 3D)
    bqkv = jnp.concatenate([bq * scale, bk, bv], axis=1)                 # (1, 3D) f32

    def pack_gate(w):
        # w: (6,D,D) = [Wr(on y), Ur(on x), Wz(on y), Uz(on x), Wg(on y), Ug(on r*x)]
        gy = jnp.concatenate([w[0], w[2], w[4]], axis=1).astype(bf16)    # (D, 3D)
        gx = jnp.concatenate([w[1], w[3]], axis=1).astype(bf16)          # (D, 2D)
        return gy, gx, w[5].astype(bf16)

    g1y, g1x, g1u = pack_gate(params["g1_w"])
    g2y, g2x, g2u = pack_gate(params["g2_w"])
    bg = jnp.stack([params["g1_bg"][0, 0], params["g2_bg"][0, 0]])       # (2,) f32

    operands = (
        x,
        params["ln_g"], params["ln_b"],
        wqkv, bqkv, wo.astype(bf16), bo,
        params["w1"].astype(bf16), params["b1"],
        params["w2"].astype(bf16), params["b2"],
        g1y, g1x, g1u, g2y, g2x, g2u,
        bg,
    )

    def invariant(arr):
        nd = arr.ndim
        return pl.BlockSpec(arr.shape, lambda b, _nd=nd: (0,) * _nd)

    in_specs = [pl.BlockSpec((block_b, S, D), lambda b: (b, 0, 0))]
    in_specs += [invariant(a) for a in operands[1:-1]]
    in_specs += [pl.BlockSpec(memory_space=pltpu.MemorySpace.SMEM)]      # gate biases

    # VMEM budget: resident blocks are double-buffered by default; only raise the
    # scoped limit when the actual footprint demands it.
    block_bytes = sum(int(a.size) * a.dtype.itemsize for a in operands[1:-1])
    block_bytes += 2 * block_b * S * D * 4                               # x block + out block
    needed = 2 * block_bytes + (8 << 20)                                 # buffers + headroom
    vmem_limit = int(needed) if needed > (32 << 20) else None

    return pl.pallas_call(
        functools.partial(_layer_kernel, num_heads=num_heads),
        out_shape=jax.ShapeDtypeStruct((B, S, D), jnp.float32),
        grid=(B // block_b,),
        in_specs=in_specs,
        out_specs=pl.BlockSpec((block_b, S, D), lambda b: (b, 0, 0)),
        compiler_params=pltpu.CompilerParams(
            dimension_semantics=("parallel",),
            vmem_limit_bytes=vmem_limit,
        ),
    )(*operands)


# --------------------------- parameter init ------------------------------------
def init_params(key, D, M):
    ks = jax.random.split(key, 5)
    rnd = lambda k, shape, s: jax.random.normal(k, shape, jnp.float32) * s
    return {
        "ln_g": jnp.ones((1, D), jnp.float32),
        "ln_b": jnp.zeros((1, D), jnp.float32),
        "attn_w": rnd(ks[0], (4, D, D), 1.0 / D ** 0.5),
        "attn_b": jnp.zeros((4, 1, D), jnp.float32),
        "w1": rnd(ks[1], (D, M), 1.0 / D ** 0.5),
        "b1": jnp.zeros((1, M), jnp.float32),
        "w2": rnd(ks[2], (M, D), 1.0 / M ** 0.5),
        "b2": jnp.zeros((1, D), jnp.float32),
        "g1_w": rnd(ks[3], (6, D, D), 1.0 / D ** 0.5),
        "g1_bg": jnp.full((1, 1), 2.0, jnp.float32),
        "g2_w": rnd(ks[4], (6, D, D), 1.0 / D ** 0.5),
        "g2_bg": jnp.full((1, 1), 2.0, jnp.float32),
    }


# --------------------------- pure-JAX reference ---------------------------------
# Mirrors the kernel's MXU precision policy (bf16 operands, f32 accumulation) so the
# comparison isolates kernel structure / fusion / indexing correctness.
def _reference(x, p, num_heads):
    D = x.shape[-1]
    dh = D // num_heads
    bf16 = jnp.bfloat16

    def bdot(a, b):
        return jnp.dot(a.astype(bf16), b.astype(bf16), preferred_element_type=jnp.float32)

    def ln(v):
        mu = jnp.mean(v, -1, keepdims=True)
        var = jnp.mean((v - mu) ** 2, -1, keepdims=True)
        return (v - mu) / jnp.sqrt(var + 1e-5) * p["ln_g"] + p["ln_b"]

    def mha(y):
        S = y.shape[0]
        q = bdot(y, p["attn_w"][0]) + p["attn_b"][0]
        k = bdot(y, p["attn_w"][1]) + p["attn_b"][1]
        v = bdot(y, p["attn_w"][2]) + p["attn_b"][2]
        mask = jnp.tril(jnp.ones((S, S), bool))
        outs = []
        for h in range(num_heads):
            s = bdot(q[:, h * dh:(h + 1) * dh], k[:, h * dh:(h + 1) * dh].T) / dh ** 0.5
            s = jnp.where(mask, s, -1e30)
            pr = jax.nn.softmax(s, -1)
            outs.append(bdot(pr, v[:, h * dh:(h + 1) * dh]))
        return bdot(jnp.concatenate(outs, -1), p["attn_w"][3]) + p["attn_b"][3]

    def mlp(y):
        return bdot(jnp.maximum(bdot(y, p["w1"]) + p["b1"], 0.0), p["w2"]) + p["b2"]

    def gate(w, bg, xx, yy):
        r = jax.nn.sigmoid(bdot(yy, w[0]) + bdot(xx, w[1]))
        z = jax.nn.sigmoid(bdot(yy, w[2]) + bdot(xx, w[3]) - bg[0, 0])
        h = jnp.tanh(bdot(yy, w[4]) + bdot(r * xx, w[5]))
        return (1 - z) * xx + z * h

    def one(xb):
        y = mha(ln(xb))
        x1 = gate(p["g1_w"], p["g1_bg"], xb, jnp.maximum(y, 0.0))
        y2 = mlp(ln(x1))
        return gate(p["g2_w"], p["g2_bg"], x1, jnp.maximum(y2, 0.0))

    return jax.vmap(one)(x)


if __name__ == "__main__":
    B, S, D, H, M = 4, 16, 128, 4, 256     # small, lane-dense (D multiple of 128)
    key = jax.random.PRNGKey(0)
    kx, kp = jax.random.split(key)
    x = jax.random.normal(kx, (B, S, D), jnp.float32)
    params = init_params(kp, D, M)

    out = decoder_prexl_layer(x, params, num_heads=H, block_b=2)
    out = jax.block_until_ready(out)

    ref = _reference(x, params, H)
    assert out.shape == (B, S, D)
    assert bool(jnp.allclose(out, ref, atol=1e-2, rtol=1e-2)), "mismatch vs JAX reference"
    print("KERNEL_OK")
</pallas_src>

<mosaic_0001>
module attributes {stable_mosaic.version = 11 : i64} {
  func.func @_layer_kernel(%arg0: i32, %arg1: memref<2x16x128xf32, #tpu.memory_space<vmem>>, %arg2: memref<1x128xf32, #tpu.memory_space<vmem>>, %arg3: memref<1x128xf32, #tpu.memory_space<vmem>>, %arg4: memref<128x384xbf16, #tpu.memory_space<vmem>>, %arg5: memref<1x384xf32, #tpu.memory_space<vmem>>, %arg6: memref<128x128xbf16, #tpu.memory_space<vmem>>, %arg7: memref<1x128xf32, #tpu.memory_space<vmem>>, %arg8: memref<128x256xbf16, #tpu.memory_space<vmem>>, %arg9: memref<1x256xf32, #tpu.memory_space<vmem>>, %arg10: memref<256x128xbf16, #tpu.memory_space<vmem>>, %arg11: memref<1x128xf32, #tpu.memory_space<vmem>>, %arg12: memref<128x384xbf16, #tpu.memory_space<vmem>>, %arg13: memref<128x256xbf16, #tpu.memory_space<vmem>>, %arg14: memref<128x128xbf16, #tpu.memory_space<vmem>>, %arg15: memref<128x384xbf16, #tpu.memory_space<vmem>>, %arg16: memref<128x256xbf16, #tpu.memory_space<vmem>>, %arg17: memref<128x128xbf16, #tpu.memory_space<vmem>>, %arg18: memref<2xf32, #tpu.memory_space<smem>>, %arg19: memref<2x16x128xf32, #tpu.memory_space<vmem>>) attributes {dimension_semantics = [#tpu.dimension_semantics<parallel>], iteration_bounds = array<i64: 2>, scalar_prefetch = 0 : i64, scratch_operands = 0 : i64, tpu.core_type = #tpu.core_type<tc>, window_params = [{transform_indices = @transform_0, window_bounds = array<i64: 2, 16, 128>}, {pipeline_mode = #tpu.pipeline_mode<synchronous>, transform_indices = @transform_1, window_bounds = array<i64: 1, 128>}, {pipeline_mode = #tpu.pipeline_mode<synchronous>, transform_indices = @transform_2, window_bounds = array<i64: 1, 128>}, {pipeline_mode = #tpu.pipeline_mode<synchronous>, transform_indices = @transform_3, window_bounds = array<i64: 128, 384>}, {pipeline_mode = #tpu.pipeline_mode<synchronous>, transform_indices = @transform_4, window_bounds = array<i64: 1, 384>}, {pipeline_mode = #tpu.pipeline_mode<synchronous>, transform_indices = @transform_5, window_bounds = array<i64: 128, 128>}, {pipeline_mode = #tpu.pipeline_mode<synchronous>, transform_indices = @transform_6, window_bounds = array<i64: 1, 128>}, {pipeline_mode = #tpu.pipeline_mode<synchronous>, transform_indices = @transform_7, window_bounds = array<i64: 128, 256>}, {pipeline_mode = #tpu.pipeline_mode<synchronous>, transform_indices = @transform_8, window_bounds = array<i64: 1, 256>}, {pipeline_mode = #tpu.pipeline_mode<synchronous>, transform_indices = @transform_9, window_bounds = array<i64: 256, 128>}, {pipeline_mode = #tpu.pipeline_mode<synchronous>, transform_indices = @transform_10, window_bounds = array<i64: 1, 128>}, {pipeline_mode = #tpu.pipeline_mode<synchronous>, transform_indices = @transform_11, window_bounds = array<i64: 128, 384>}, {pipeline_mode = #tpu.pipeline_mode<synchronous>, transform_indices = @transform_12, window_bounds = array<i64: 128, 256>}, {pipeline_mode = #tpu.pipeline_mode<synchronous>, transform_indices = @transform_13, window_bounds = array<i64: 128, 128>}, {pipeline_mode = #tpu.pipeline_mode<synchronous>, transform_indices = @transform_14, window_bounds = array<i64: 128, 384>}, {pipeline_mode = #tpu.pipeline_mode<synchronous>, transform_indices = @transform_15, window_bounds = array<i64: 128, 256>}, {pipeline_mode = #tpu.pipeline_mode<synchronous>, transform_indices = @transform_16, window_bounds = array<i64: 128, 128>}, {transform_indices = @transform_17, window_bounds = array<i64: 2>}, {transform_indices = @transform_18, window_bounds = array<i64: 2, 16, 128>}]} {
    %c0 = arith.constant 0 : index
    %c0_0 = arith.constant 0 : index
    %c0_1 = arith.constant 0 : index
    %0 = vector.load %arg1[%c0, %c0_0, %c0_1] : memref<2x16x128xf32, #tpu.memory_space<vmem>>, vector<2x16x128xf32>
    %1 = vector.shape_cast %0 : vector<2x16x128xf32> to vector<32x128xf32>
    %c0_2 = arith.constant 0 : index
    %c0_3 = arith.constant 0 : index
    %2 = vector.load %arg2[%c0_2, %c0_3] : memref<1x128xf32, #tpu.memory_space<vmem>>, vector<1x128xf32>
    %c0_4 = arith.constant 0 : index
    %c0_5 = arith.constant 0 : index
    %3 = vector.load %arg3[%c0_4, %c0_5] : memref<1x128xf32, #tpu.memory_space<vmem>>, vector<1x128xf32>
    %cst = arith.constant dense<0.000000e+00> : vector<32xf32>
    %4 = vector.multi_reduction <add>, %1, %cst [1] : vector<32x128xf32> to vector<32xf32>
    %5 = vector.shape_cast %4 : vector<32xf32> to vector<32x1xf32>
    %cst_6 = arith.constant 1.280000e+02 : f32
    %6 = vector.broadcast %cst_6 : f32 to vector<32x1xf32>
    %7 = arith.divf %5, %6 : vector<32x1xf32>
    %8 = vector.broadcast %7 : vector<32x1xf32> to vector<32x128xf32>
    %9 = arith.subf %1, %8 : vector<32x128xf32>
    %10 = arith.mulf %9, %9 : vector<32x128xf32>
    %cst_7 = arith.constant dense<0.000000e+00> : vector<32xf32>
    %11 = vector.multi_reduction <add>, %10, %cst_7 [1] : vector<32x128xf32> to vector<32xf32>
    %12 = vector.shape_cast %11 : vector<32xf32> to vector<32x1xf32>
    %cst_8 = arith.constant 1.280000e+02 : f32
    %13 = vector.broadcast %cst_8 : f32 to vector<32x1xf32>
    %14 = arith.divf %12, %13 : vector<32x1xf32>
    %15 = vector.broadcast %7 : vector<32x1xf32> to vector<32x128xf32>
    %16 = arith.subf %1, %15 : vector<32x128xf32>
    %cst_9 = arith.constant 9.99999974E-6 : f32
    %17 = vector.broadcast %cst_9 : f32 to vector<32x1xf32>
    %18 = arith.addf %14, %17 : vector<32x1xf32>
    %19 = math.rsqrt %18 : vector<32x1xf32>
    %20 = vector.broadcast %19 : vector<32x1xf32> to vector<32x128xf32>
    %21 = arith.mulf %16, %20 : vector<32x128xf32>
    %22 = vector.broadcast %2 : vector<1x128xf32> to vector<32x128xf32>
    %23 = arith.mulf %21, %22 : vector<32x128xf32>
    %24 = vector.broadcast %3 : vector<1x128xf32> to vector<32x128xf32>
    %25 = arith.addf %23, %24 : vector<32x128xf32>
    %c0_10 = arith.constant 0 : index
    %c0_11 = arith.constant 0 : index
    %26 = vector.load %arg4[%c0_10, %c0_11] : memref<128x384xbf16, #tpu.memory_space<vmem>>, vector<128x384xbf16>
    %27 = arith.truncf %25 : vector<32x128xf32> to vector<32x128xbf16>
    %cst_12 = arith.constant dense<0.000000e+00> : vector<32x384xf32>
    %28 = tpu.matmul %27, %26, %cst_12 {dimension_numbers = #tpu.dot_dimension_numbers<[1], [0], [0], [1], [0, 0, 1, 1], [], []>} : vector<32x128xbf16>, vector<128x384xbf16>, vector<32x384xf32> -> vector<32x384xf32>
    %c0_13 = arith.constant 0 : index
    %c0_14 = arith.constant 0 : index
    %29 = vector.load %arg5[%c0_13, %c0_14] : memref<1x384xf32, #tpu.memory_space<vmem>>, vector<1x384xf32>
    %30 = vector.broadcast %29 : vector<1x384xf32> to vector<32x384xf32>
    %31 = arith.addf %28, %30 : vector<32x384xf32>
    %32 = vector.extract_strided_slice %31 {offsets = [0, 0], sizes = [32, 128], strides = [1, 1]} : vector<32x384xf32> to vector<32x128xf32>
    %33 = vector.shape_cast %32 : vector<32x128xf32> to vector<2x16x128xf32>
    %34 = arith.truncf %33 : vector<2x16x128xf32> to vector<2x16x128xbf16>
    %35 = vector.extract_strided_slice %31 {offsets = [0, 128], sizes = [32, 128], strides = [1, 1]} : vector<32x384xf32> to vector<32x128xf32>
    %36 = vector.shape_cast %35 : vector<32x128xf32> to vector<2x16x128xf32>
    %37 = arith.truncf %36 : vector<2x16x128xf32> to vector<2x16x128xbf16>
    %38 = vector.extract_strided_slice %31 {offsets = [0, 256], sizes = [32, 128], strides = [1, 1]} : vector<32x384xf32> to vector<32x128xf32>
    %39 = vector.shape_cast %38 : vector<32x128xf32> to vector<2x16x128xf32>
    %40 = arith.truncf %39 : vector<2x16x128xf32> to vector<2x16x128xbf16>
    %41 = tpu.iota {dimensions = array<i32: 1>} : vector<2x16x16xi32>
    %42 = tpu.iota {dimensions = array<i32: 2>} : vector<2x16x16xi32>
    %43 = arith.cmpi sle, %42, %41 : vector<2x16x16xi32>
    %44 = vector.extract_strided_slice %34 {offsets = [0, 0, 0], sizes = [2, 16, 32], strides = [1, 1, 1]} : vector<2x16x128xbf16> to vector<2x16x32xbf16>
    %45 = vector.extract_strided_slice %37 {offsets = [0, 0, 0], sizes = [2, 16, 32], strides = [1, 1, 1]} : vector<2x16x128xbf16> to vector<2x16x32xbf16>
    "tpu.trace_start"() <{level = 10 : i32, message = "bqd,bkd->bqk"}> : () -> ()
    %cst_15 = arith.constant dense<0.000000e+00> : vector<2x16x16xf32>
    %46 = tpu.matmul %44, %45, %cst_15 {dimension_numbers = #tpu.dot_dimension_numbers<[2], [2], [1], [1], [0, 0, 0, 1, 1, 1], [0], [0]>} : vector<2x16x32xbf16>, vector<2x16x32xbf16>, vector<2x16x16xf32> -> vector<2x16x16xf32>
    %cst_16 = arith.constant -1.000000e+30 : f32
    "tpu.trace_stop"() : () -> ()
    %47 = vector.broadcast %cst_16 : f32 to vector<2x16x16xf32>
    %48 = arith.select %43, %46, %47 : vector<2x16x16xi1>, vector<2x16x16xf32>
    %cst_17 = arith.constant dense<0xFF800000> : vector<2x16xf32>
    %49 = vector.multi_reduction <maximumf>, %48, %cst_17 [2] : vector<2x16x16xf32> to vector<2x16xf32>
    %50 = vector.shape_cast %49 : vector<2x16xf32> to vector<2x16x1xf32>
    %51 = vector.broadcast %50 : vector<2x16x1xf32> to vector<2x16x16xf32>
    %52 = arith.subf %48, %51 : vector<2x16x16xf32>
    %53 = math.exp %52 : vector<2x16x16xf32>
    %cst_18 = arith.constant dense<0.000000e+00> : vector<2x16xf32>
    %54 = vector.multi_reduction <add>, %53, %cst_18 [2] : vector<2x16x16xf32> to vector<2x16xf32>
    %55 = vector.shape_cast %54 : vector<2x16xf32> to vector<2x16x1xf32>
    %56 = tpu.reciprocal %55 {approx = true} : vector<2x16x1xf32> -> vector<2x16x1xf32>
    %57 = vector.broadcast %56 : vector<2x16x1xf32> to vector<2x16x16xf32>
    %58 = arith.mulf %53, %57 : vector<2x16x16xf32>
    %59 = arith.truncf %58 : vector<2x16x16xf32> to vector<2x16x16xbf16>
    %60 = vector.extract_strided_slice %40 {offsets = [0, 0, 0], sizes = [2, 16, 32], strides = [1, 1, 1]} : vector<2x16x128xbf16> to vector<2x16x32xbf16>
    "tpu.trace_start"() <{level = 10 : i32, message = "bqk,bkd->bqd"}> : () -> ()
    %cst_19 = arith.constant dense<0.000000e+00> : vector<2x16x32xf32>
    %61 = tpu.matmul %59, %60, %cst_19 {dimension_numbers = #tpu.dot_dimension_numbers<[2], [1], [1], [2], [0, 0, 0, 1, 1, 2], [0], [0]>} : vector<2x16x16xbf16>, vector<2x16x32xbf16>, vector<2x16x32xf32> -> vector<2x16x32xf32>
    "tpu.trace_stop"() : () -> ()
    %62 = vector.extract_strided_slice %34 {offsets = [0, 0, 32], sizes = [2, 16, 32], strides = [1, 1, 1]} : vector<2x16x128xbf16> to vector<2x16x32xbf16>
    %63 = vector.extract_strided_slice %37 {offsets = [0, 0, 32], sizes = [2, 16, 32], strides = [1, 1, 1]} : vector<2x16x128xbf16> to vector<2x16x32xbf16>
    "tpu.trace_start"() <{level = 10 : i32, message = "bqd,bkd->bqk"}> : () -> ()
    %cst_20 = arith.constant dense<0.000000e+00> : vector<2x16x16xf32>
    %64 = tpu.matmul %62, %63, %cst_20 {dimension_numbers = #tpu.dot_dimension_numbers<[2], [2], [1], [1], [0, 0, 0, 1, 1, 1], [0], [0]>} : vector<2x16x32xbf16>, vector<2x16x32xbf16>, vector<2x16x16xf32> -> vector<2x16x16xf32>
    %cst_21 = arith.constant -1.000000e+30 : f32
    "tpu.trace_stop"() : () -> ()
    %65 = vector.broadcast %cst_21 : f32 to vector<2x16x16xf32>
    %66 = arith.select %43, %64, %65 : vector<2x16x16xi1>, vector<2x16x16xf32>
    %cst_22 = arith.constant dense<0xFF800000> : vector<2x16xf32>
    %67 = vector.multi_reduction <maximumf>, %66, %cst_22 [2] : vector<2x16x16xf32> to vector<2x16xf32>
    %68 = vector.shape_cast %67 : vector<2x16xf32> to vector<2x16x1xf32>
    %69 = vector.broadcast %68 : vector<2x16x1xf32> to vector<2x16x16xf32>
    %70 = arith.subf %66, %69 : vector<2x16x16xf32>
    %71 = math.exp %70 : vector<2x16x16xf32>
    %cst_23 = arith.constant dense<0.000000e+00> : vector<2x16xf32>
    %72 = vector.multi_reduction <add>, %71, %cst_23 [2] : vector<2x16x16xf32> to vector<2x16xf32>
    %73 = vector.shape_cast %72 : vector<2x16xf32> to vector<2x16x1xf32>
    %74 = tpu.reciprocal %73 {approx = true} : vector<2x16x1xf32> -> vector<2x16x1xf32>
    %75 = vector.broadcast %74 : vector<2x16x1xf32> to vector<2x16x16xf32>
    %76 = arith.mulf %71, %75 : vector<2x16x16xf32>
    %77 = arith.truncf %76 : vector<2x16x16xf32> to vector<2x16x16xbf16>
    %78 = vector.extract_strided_slice %40 {offsets = [0, 0, 32], sizes = [2, 16, 32], strides = [1, 1, 1]} : vector<2x16x128xbf16> to vector<2x16x32xbf16>
    "tpu.trace_start"() <{level = 10 : i32, message = "bqk,bkd->bqd"}> : () -> ()
    %cst_24 = arith.constant dense<0.000000e+00> : vector<2x16x32xf32>
    %79 = tpu.matmul %77, %78, %cst_24 {dimension_numbers = #tpu.dot_dimension_numbers<[2], [1], [1], [2], [0, 0, 0, 1, 1, 2], [0], [0]>} : vector<2x16x16xbf16>, vector<2x16x32xbf16>, vector<2x16x32xf32> -> vector<2x16x32xf32>
    "tpu.trace_stop"() : () -> ()
    %80 = vector.extract_strided_slice %34 {offsets = [0, 0, 64], sizes = [2, 16, 32], strides = [1, 1, 1]} : vector<2x16x128xbf16> to vector<2x16x32xbf16>
    %81 = vector.extract_strided_slice %37 {offsets = [0, 0, 64], sizes = [2, 16, 32], strides = [1, 1, 1]} : vector<2x16x128xbf16> to vector<2x16x32xbf16>
    "tpu.trace_start"() <{level = 10 : i32, message = "bqd,bkd->bqk"}> : () -> ()
    %cst_25 = arith.constant dense<0.000000e+00> : vector<2x16x16xf32>
    %82 = tpu.matmul %80, %81, %cst_25 {dimension_numbers = #tpu.dot_dimension_numbers<[2], [2], [1], [1], [0, 0, 0, 1, 1, 1], [0], [0]>} : vector<2x16x32xbf16>, vector<2x16x32xbf16>, vector<2x16x16xf32> -> vector<2x16x16xf32>
    %cst_26 = arith.constant -1.000000e+30 : f32
    "tpu.trace_stop"() : () -> ()
    %83 = vector.broadcast %cst_26 : f32 to vector<2x16x16xf32>
    %84 = arith.select %43, %82, %83 : vector<2x16x16xi1>, vector<2x16x16xf32>
    %cst_27 = arith.constant dense<0xFF800000> : vector<2x16xf32>
    %85 = vector.multi_reduction <maximumf>, %84, %cst_27 [2] : vector<2x16x16xf32> to vector<2x16xf32>
    %86 = vector.shape_cast %85 : vector<2x16xf32> to vector<2x16x1xf32>
    %87 = vector.broadcast %86 : vector<2x16x1xf32> to vector<2x16x16xf32>
    %88 = arith.subf %84, %87 : vector<2x16x16xf32>
    %89 = math.exp %88 : vector<2x16x16xf32>
    %cst_28 = arith.constant dense<0.000000e+00> : vector<2x16xf32>
    %90 = vector.multi_reduction <add>, %89, %cst_28 [2] : vector<2x16x16xf32> to vector<2x16xf32>
    %91 = vector.shape_cast %90 : vector<2x16xf32> to vector<2x16x1xf32>
    %92 = tpu.reciprocal %91 {approx = true} : vector<2x16x1xf32> -> vector<2x16x1xf32>
    %93 = vector.broadcast %92 : vector<2x16x1xf32> to vector<2x16x16xf32>
    %94 = arith.mulf %89, %93 : vector<2x16x16xf32>
    %95 = arith.truncf %94 : vector<2x16x16xf32> to vector<2x16x16xbf16>
    %96 = vector.extract_strided_slice %40 {offsets = [0, 0, 64], sizes = [2, 16, 32], strides = [1, 1, 1]} : vector<2x16x128xbf16> to vector<2x16x32xbf16>
    "tpu.trace_start"() <{level = 10 : i32, message = "bqk,bkd->bqd"}> : () -> ()
    %cst_29 = arith.constant dense<0.000000e+00> : vector<2x16x32xf32>
    %97 = tpu.matmul %95, %96, %cst_29 {dimension_numbers = #tpu.dot_dimension_numbers<[2], [1], [1], [2], [0, 0, 0, 1, 1, 2], [0], [0]>} : vector<2x16x16xbf16>, vector<2x16x32xbf16>, vector<2x16x32xf32> -> vector<2x16x32xf32>
    "tpu.trace_stop"() : () -> ()
    %98 = vector.extract_strided_slice %34 {offsets = [0, 0, 96], sizes = [2, 16, 32], strides = [1, 1, 1]} : vector<2x16x128xbf16> to vector<2x16x32xbf16>
    %99 = vector.extract_strided_slice %37 {offsets = [0, 0, 96], sizes = [2, 16, 32], strides = [1, 1, 1]} : vector<2x16x128xbf16> to vector<2x16x32xbf16>
    "tpu.trace_start"() <{level = 10 : i32, message = "bqd,bkd->bqk"}> : () -> ()
    %cst_30 = arith.constant dense<0.000000e+00> : vector<2x16x16xf32>
    %100 = tpu.matmul %98, %99, %cst_30 {dimension_numbers = #tpu.dot_dimension_numbers<[2], [2], [1], [1], [0, 0, 0, 1, 1, 1], [0], [0]>} : vector<2x16x32xbf16>, vector<2x16x32xbf16>, vector<2x16x16xf32> -> vector<2x16x16xf32>
    %cst_31 = arith.constant -1.000000e+30 : f32
    "tpu.trace_stop"() : () -> ()
    %101 = vector.broadcast %cst_31 : f32 to vector<2x16x16xf32>
    %102 = arith.select %43, %100, %101 : vector<2x16x16xi1>, vector<2x16x16xf32>
    %cst_32 = arith.constant dense<0xFF800000> : vector<2x16xf32>
    %103 = vector.multi_reduction <maximumf>, %102, %cst_32 [2] : vector<2x16x16xf32> to vector<2x16xf32>
    %104 = vector.shape_cast %103 : vector<2x16xf32> to vector<2x16x1xf32>
    %105 = vector.broadcast %104 : vector<2x16x1xf32> to vector<2x16x16xf32>
    %106 = arith.subf %102, %105 : vector<2x16x16xf32>
    %107 = math.exp %106 : vector<2x16x16xf32>
    %cst_33 = arith.constant dense<0.000000e+00> : vector<2x16xf32>
    %108 = vector.multi_reduction <add>, %107, %cst_33 [2] : vector<2x16x16xf32> to vector<2x16xf32>
    %109 = vector.shape_cast %108 : vector<2x16xf32> to vector<2x16x1xf32>
    %110 = tpu.reciprocal %109 {approx = true} : vector<2x16x1xf32> -> vector<2x16x1xf32>
    %111 = vector.broadcast %110 : vector<2x16x1xf32> to vector<2x16x16xf32>
    %112 = arith.mulf %107, %111 : vector<2x16x16xf32>
    %113 = arith.truncf %112 : vector<2x16x16xf32> to vector<2x16x16xbf16>
    %114 = vector.extract_strided_slice %40 {offsets = [0, 0, 96], sizes = [2, 16, 32], strides = [1, 1, 1]} : vector<2x16x128xbf16> to vector<2x16x32xbf16>
    "tpu.trace_start"() <{level = 10 : i32, message = "bqk,bkd->bqd"}> : () -> ()
    %cst_34 = arith.constant dense<0.000000e+00> : vector<2x16x32xf32>
    %115 = tpu.matmul %113, %114, %cst_34 {dimension_numbers = #tpu.dot_dimension_numbers<[2], [1], [1], [2], [0, 0, 0, 1, 1, 2], [0], [0]>} : vector<2x16x16xbf16>, vector<2x16x32xbf16>, vector<2x16x32xf32> -> vector<2x16x32xf32>
    "tpu.trace_stop"() : () -> ()
    %116 = tpu.concatenate %61, %79, %97, %115 in 2 : vector<2x16x32xf32>, vector<2x16x32xf32>, vector<2x16x32xf32>, vector<2x16x32xf32> -> vector<2x16x128xf32>
    %117 = vector.shape_cast %116 : vector<2x16x128xf32> to vector<32x128xf32>
    %c0_35 = arith.constant 0 : index
    %c0_36 = arith.constant 0 : index
    %118 = vector.load %arg6[%c0_35, %c0_36] : memref<128x128xbf16, #tpu.memory_space<vmem>>, vector<128x128xbf16>
    %119 = arith.truncf %117 : vector<32x128xf32> to vector<32x128xbf16>
    %cst_37 = arith.constant dense<0.000000e+00> : vector<32x128xf32>
    %120 = tpu.matmul %119, %118, %cst_37 {dimension_numbers = #tpu.dot_dimension_numbers<[1], [0], [0], [1], [0, 0, 1, 1], [], []>} : vector<32x128xbf16>, vector<128x128xbf16>, vector<32x128xf32> -> vector<32x128xf32>
    %c0_38 = arith.constant 0 : index
    %c0_39 = arith.constant 0 : index
    %121 = vector.load %arg7[%c0_38, %c0_39] : memref<1x128xf32, #tpu.memory_space<vmem>>, vector<1x128xf32>
    %122 = vector.broadcast %121 : vector<1x128xf32> to vector<32x128xf32>
    %123 = arith.addf %120, %122 : vector<32x128xf32>
    %c0_40 = arith.constant 0 : index
    %124 = memref.load %arg18[%c0_40] : memref<2xf32, #tpu.memory_space<smem>>
    %cst_41 = arith.constant 0.000000e+00 : f32
    %125 = vector.broadcast %cst_41 : f32 to vector<32x128xf32>
    %126 = arith.maximumf %123, %125 : vector<32x128xf32>
    %c0_42 = arith.constant 0 : index
    %c0_43 = arith.constant 0 : index
    %127 = vector.load %arg12[%c0_42, %c0_43] : memref<128x384xbf16, #tpu.memory_space<vmem>>, vector<128x384xbf16>
    %128 = arith.truncf %126 : vector<32x128xf32> to vector<32x128xbf16>
    %cst_44 = arith.constant dense<0.000000e+00> : vector<32x384xf32>
    %129 = tpu.matmul %128, %127, %cst_44 {dimension_numbers = #tpu.dot_dimension_numbers<[1], [0], [0], [1], [0, 0, 1, 1], [], []>} : vector<32x128xbf16>, vector<128x384xbf16>, vector<32x384xf32> -> vector<32x384xf32>
    %c0_45 = arith.constant 0 : index
    %c0_46 = arith.constant 0 : index
    %130 = vector.load %arg13[%c0_45, %c0_46] : memref<128x256xbf16, #tpu.memory_space<vmem>>, vector<128x256xbf16>
    %131 = arith.truncf %1 : vector<32x128xf32> to vector<32x128xbf16>
    %cst_47 = arith.constant dense<0.000000e+00> : vector<32x256xf32>
    %132 = tpu.matmul %131, %130, %cst_47 {dimension_numbers = #tpu.dot_dimension_numbers<[1], [0], [0], [1], [0, 0, 1, 1], [], []>} : vector<32x128xbf16>, vector<128x256xbf16>, vector<32x256xf32> -> vector<32x256xf32>
    %133 = vector.extract_strided_slice %129 {offsets = [0, 0], sizes = [32, 128], strides = [1, 1]} : vector<32x384xf32> to vector<32x128xf32>
    %134 = vector.extract_strided_slice %132 {offsets = [0, 0], sizes = [32, 128], strides = [1, 1]} : vector<32x256xf32> to vector<32x128xf32>
    %135 = arith.addf %133, %134 : vector<32x128xf32>
    %136 = arith.negf %135 : vector<32x128xf32>
    %137 = math.exp %136 : vector<32x128xf32>
    %cst_48 = arith.constant 1.000000e+00 : f32
    %138 = vector.broadcast %cst_48 : f32 to vector<32x128xf32>
    %139 = arith.addf %138, %137 : vector<32x128xf32>
    %140 = arith.divf %138, %139 : vector<32x128xf32>
    %141 = vector.extract_strided_slice %129 {offsets = [0, 128], sizes = [32, 128], strides = [1, 1]} : vector<32x384xf32> to vector<32x128xf32>
    %142 = vector.extract_strided_slice %132 {offsets = [0, 128], sizes = [32, 128], strides = [1, 1]} : vector<32x256xf32> to vector<32x128xf32>
    %143 = arith.addf %141, %142 : vector<32x128xf32>
    %144 = vector.broadcast %124 : f32 to vector<32x128xf32>
    %145 = arith.subf %143, %144 : vector<32x128xf32>
    %146 = arith.negf %145 : vector<32x128xf32>
    %147 = math.exp %146 : vector<32x128xf32>
    %cst_49 = arith.constant 1.000000e+00 : f32
    %148 = vector.broadcast %cst_49 : f32 to vector<32x128xf32>
    %149 = arith.addf %148, %147 : vector<32x128xf32>
    %150 = arith.divf %148, %149 : vector<32x128xf32>
    %151 = vector.extract_strided_slice %129 {offsets = [0, 256], sizes = [32, 128], strides = [1, 1]} : vector<32x384xf32> to vector<32x128xf32>
    %152 = arith.mulf %140, %1 : vector<32x128xf32>
    %c0_50 = arith.constant 0 : index
    %c0_51 = arith.constant 0 : index
    %153 = vector.load %arg14[%c0_50, %c0_51] : memref<128x128xbf16, #tpu.memory_space<vmem>>, vector<128x128xbf16>
    %154 = arith.truncf %152 : vector<32x128xf32> to vector<32x128xbf16>
    %cst_52 = arith.constant dense<0.000000e+00> : vector<32x128xf32>
    %155 = tpu.matmul %154, %153, %cst_52 {dimension_numbers = #tpu.dot_dimension_numbers<[1], [0], [0], [1], [0, 0, 1, 1], [], []>} : vector<32x128xbf16>, vector<128x128xbf16>, vector<32x128xf32> -> vector<32x128xf32>
    %156 = arith.addf %151, %155 : vector<32x128xf32>
    %157 = math.tanh %156 : vector<32x128xf32>
    %cst_53 = arith.constant 1.000000e+00 : f32
    %158 = vector.broadcast %cst_53 : f32 to vector<32x128xf32>
    %159 = arith.subf %158, %150 : vector<32x128xf32>
    %160 = arith.mulf %159, %1 : vector<32x128xf32>
    %161 = arith.mulf %150, %157 : vector<32x128xf32>
    %162 = arith.addf %160, %161 : vector<32x128xf32>
    %cst_54 = arith.constant dense<0.000000e+00> : vector<32xf32>
    %163 = vector.multi_reduction <add>, %162, %cst_54 [1] : vector<32x128xf32> to vector<32xf32>
    %164 = vector.shape_cast %163 : vector<32xf32> to vector<32x1xf32>
    %cst_55 = arith.constant 1.280000e+02 : f32
    %165 = vector.broadcast %cst_55 : f32 to vector<32x1xf32>
    %166 = arith.divf %164, %165 : vector<32x1xf32>
    %167 = vector.broadcast %166 : vector<32x1xf32> to vector<32x128xf32>
    %168 = arith.subf %162, %167 : vector<32x128xf32>
    %169 = arith.mulf %168, %168 : vector<32x128xf32>
    %cst_56 = arith.constant dense<0.000000e+00> : vector<32xf32>
    %170 = vector.multi_reduction <add>, %169, %cst_56 [1] : vector<32x128xf32> to vector<32xf32>
    %171 = vector.shape_cast %170 : vector<32xf32> to vector<32x1xf32>
    %cst_57 = arith.constant 1.280000e+02 : f32
    %172 = vector.broadcast %cst_57 : f32 to vector<32x1xf32>
    %173 = arith.divf %171, %172 : vector<32x1xf32>
    %174 = vector.broadcast %166 : vector<32x1xf32> to vector<32x128xf32>
    %175 = arith.subf %162, %174 : vector<32x128xf32>
    %cst_58 = arith.constant 9.99999974E-6 : f32
    %176 = vector.broadcast %cst_58 : f32 to vector<32x1xf32>
    %177 = arith.addf %173, %176 : vector<32x1xf32>
    %178 = math.rsqrt %177 : vector<32x1xf32>
    %179 = vector.broadcast %178 : vector<32x1xf32> to vector<32x128xf32>
    %180 = arith.mulf %175, %179 : vector<32x128xf32>
    %181 = vector.broadcast %2 : vector<1x128xf32> to vector<32x128xf32>
    %182 = arith.mulf %180, %181 : vector<32x128xf32>
    %183 = vector.broadcast %3 : vector<1x128xf32> to vector<32x128xf32>
    %184 = arith.addf %182, %183 : vector<32x128xf32>
    %c0_59 = arith.constant 0 : index
    %c0_60 = arith.constant 0 : index
    %185 = vector.load %arg8[%c0_59, %c0_60] : memref<128x256xbf16, #tpu.memory_space<vmem>>, vector<128x256xbf16>
    %186 = arith.truncf %184 : vector<32x128xf32> to vector<32x128xbf16>
    %cst_61 = arith.constant dense<0.000000e+00> : vector<32x256xf32>
    %187 = tpu.matmul %186, %185, %cst_61 {dimension_numbers = #tpu.dot_dimension_numbers<[1], [0], [0], [1], [0, 0, 1, 1], [], []>} : vector<32x128xbf16>, vector<128x256xbf16>, vector<32x256xf32> -> vector<32x256xf32>
    %c0_62 = arith.constant 0 : index
    %c0_63 = arith.constant 0 : index
    %188 = vector.load %arg9[%c0_62, %c0_63] : memref<1x256xf32, #tpu.memory_space<vmem>>, vector<1x256xf32>
    %189 = vector.broadcast %188 : vector<1x256xf32> to vector<32x256xf32>
    %190 = arith.addf %187, %189 : vector<32x256xf32>
    %cst_64 = arith.constant 0.000000e+00 : f32
    %191 = vector.broadcast %cst_64 : f32 to vector<32x256xf32>
    %192 = arith.maximumf %190, %191 : vector<32x256xf32>
    %c0_65 = arith.constant 0 : index
    %c0_66 = arith.constant 0 : index
    %193 = vector.load %arg10[%c0_65, %c0_66] : memref<256x128xbf16, #tpu.memory_space<vmem>>, vector<256x128xbf16>
    %194 = arith.truncf %192 : vector<32x256xf32> to vector<32x256xbf16>
    %cst_67 = arith.constant dense<0.000000e+00> : vector<32x128xf32>
    %195 = tpu.matmul %194, %193, %cst_67 {dimension_numbers = #tpu.dot_dimension_numbers<[1], [0], [0], [1], [0, 0, 1, 1], [], []>} : vector<32x256xbf16>, vector<256x128xbf16>, vector<32x128xf32> -> vector<32x128xf32>
    %c0_68 = arith.constant 0 : index
    %c0_69 = arith.constant 0 : index
    %196 = vector.load %arg11[%c0_68, %c0_69] : memref<1x128xf32, #tpu.memory_space<vmem>>, vector<1x128xf32>
    %197 = vector.broadcast %196 : vector<1x128xf32> to vector<32x128xf32>
    %198 = arith.addf %195, %197 : vector<32x128xf32>
    %c1 = arith.constant 1 : index
    %199 = memref.load %arg18[%c1] : memref<2xf32, #tpu.memory_space<smem>>
    %cst_70 = arith.constant 0.000000e+00 : f32
    %200 = vector.broadcast %cst_70 : f32 to vector<32x128xf32>
    %201 = arith.maximumf %198, %200 : vector<32x128xf32>
    %c0_71 = arith.constant 0 : index
    %c0_72 = arith.constant 0 : index
    %202 = vector.load %arg15[%c0_71, %c0_72] : memref<128x384xbf16, #tpu.memory_space<vmem>>, vector<128x384xbf16>
    %203 = arith.truncf %201 : vector<32x128xf32> to vector<32x128xbf16>
    %cst_73 = arith.constant dense<0.000000e+00> : vector<32x384xf32>
    %204 = tpu.matmul %203, %202, %cst_73 {dimension_numbers = #tpu.dot_dimension_numbers<[1], [0], [0], [1], [0, 0, 1, 1], [], []>} : vector<32x128xbf16>, vector<128x384xbf16>, vector<32x384xf32> -> vector<32x384xf32>
    %c0_74 = arith.constant 0 : index
    %c0_75 = arith.constant 0 : index
    %205 = vector.load %arg16[%c0_74, %c0_75] : memref<128x256xbf16, #tpu.memory_space<vmem>>, vector<128x256xbf16>
    %206 = arith.truncf %162 : vector<32x128xf32> to vector<32x128xbf16>
    %cst_76 = arith.constant dense<0.000000e+00> : vector<32x256xf32>
    %207 = tpu.matmul %206, %205, %cst_76 {dimension_numbers = #tpu.dot_dimension_numbers<[1], [0], [0], [1], [0, 0, 1, 1], [], []>} : vector<32x128xbf16>, vector<128x256xbf16>, vector<32x256xf32> -> vector<32x256xf32>
    %208 = vector.extract_strided_slice %204 {offsets = [0, 0], sizes = [32, 128], strides = [1, 1]} : vector<32x384xf32> to vector<32x128xf32>
    %209 = vector.extract_strided_slice %207 {offsets = [0, 0], sizes = [32, 128], strides = [1, 1]} : vector<32x256xf32> to vector<32x128xf32>
    %210 = arith.addf %208, %209 : vector<32x128xf32>
    %211 = arith.negf %210 : vector<32x128xf32>
    %212 = math.exp %211 : vector<32x128xf32>
    %cst_77 = arith.constant 1.000000e+00 : f32
    %213 = vector.broadcast %cst_77 : f32 to vector<32x128xf32>
    %214 = arith.addf %213, %212 : vector<32x128xf32>
    %215 = arith.divf %213, %214 : vector<32x128xf32>
    %216 = vector.extract_strided_slice %204 {offsets = [0, 128], sizes = [32, 128], strides = [1, 1]} : vector<32x384xf32> to vector<32x128xf32>
    %217 = vector.extract_strided_slice %207 {offsets = [0, 128], sizes = [32, 128], strides = [1, 1]} : vector<32x256xf32> to vector<32x128xf32>
    %218 = arith.addf %216, %217 : vector<32x128xf32>
    %219 = vector.broadcast %199 : f32 to vector<32x128xf32>
    %220 = arith.subf %218, %219 : vector<32x128xf32>
    %221 = arith.negf %220 : vector<32x128xf32>
    %222 = math.exp %221 : vector<32x128xf32>
    %cst_78 = arith.constant 1.000000e+00 : f32
    %223 = vector.broadcast %cst_78 : f32 to vector<32x128xf32>
    %224 = arith.addf %223, %222 : vector<32x128xf32>
    %225 = arith.divf %223, %224 : vector<32x128xf32>
    %226 = vector.extract_strided_slice %204 {offsets = [0, 256], sizes = [32, 128], strides = [1, 1]} : vector<32x384xf32> to vector<32x128xf32>
    %227 = arith.mulf %215, %162 : vector<32x128xf32>
    %c0_79 = arith.constant 0 : index
    %c0_80 = arith.constant 0 : index
    %228 = vector.load %arg17[%c0_79, %c0_80] : memref<128x128xbf16, #tpu.memory_space<vmem>>, vector<128x128xbf16>
    %229 = arith.truncf %227 : vector<32x128xf32> to vector<32x128xbf16>
    %cst_81 = arith.constant dense<0.000000e+00> : vector<32x128xf32>
    %230 = tpu.matmul %229, %228, %cst_81 {dimension_numbers = #tpu.dot_dimension_numbers<[1], [0], [0], [1], [0, 0, 1, 1], [], []>} : vector<32x128xbf16>, vector<128x128xbf16>, vector<32x128xf32> -> vector<32x128xf32>
    %231 = arith.addf %226, %230 : vector<32x128xf32>
    %232 = math.tanh %231 : vector<32x128xf32>
    %cst_82 = arith.constant 1.000000e+00 : f32
    %233 = vector.broadcast %cst_82 : f32 to vector<32x128xf32>
    %234 = arith.subf %233, %225 : vector<32x128xf32>
    %235 = arith.mulf %234, %162 : vector<32x128xf32>
    %236 = arith.mulf %225, %232 : vector<32x128xf32>
    %237 = arith.addf %235, %236 : vector<32x128xf32>
    %238 = vector.shape_cast %237 : vector<32x128xf32> to vector<2x16x128xf32>
    %c0_83 = arith.constant 0 : index
    %c0_84 = arith.constant 0 : index
    %c0_85 = arith.constant 0 : index
    %239 = vector.load %arg19[%c0_83, %c0_84, %c0_85] : memref<2x16x128xf32, #tpu.memory_space<vmem>>, vector<2x16x128xf32>
    tpu.vector_store %arg19[%c0_83, %c0_84, %c0_85], %238 {strides = array<i32>} : memref<2x16x128xf32, #tpu.memory_space<vmem>>, vector<2x16x128xf32>,
    return
  }
  func.func @transform_0(%arg0: i32) -> (i32, i32, i32) {
    %c0_i32 = arith.constant 0 : i32
    %c0_i32_0 = arith.constant 0 : i32
    %c0_i32_1 = arith.constant 0 : i32
    return %arg0, %c0_i32, %c0_i32_0 : i32, i32, i32
  }
  func.func @transform_1(%arg0: i32) -> (i32, i32) {
    %c0_i32 = arith.constant 0 : i32
    %c0_i32_0 = arith.constant 0 : i32
    %c0_i32_1 = arith.constant 0 : i32
    return %c0_i32, %c0_i32_0 : i32, i32
  }
  func.func @transform_2(%arg0: i32) -> (i32, i32) {
    %c0_i32 = arith.constant 0 : i32
    %c0_i32_0 = arith.constant 0 : i32
    %c0_i32_1 = arith.constant 0 : i32
    return %c0_i32, %c0_i32_0 : i32, i32
  }
  func.func @transform_3(%arg0: i32) -> (i32, i32) {
    %c0_i32 = arith.constant 0 : i32
    %c0_i32_0 = arith.constant 0 : i32
    %c0_i32_1 = arith.constant 0 : i32
    return %c0_i32, %c0_i32_0 : i32, i32
  }
  func.func @transform_4(%arg0: i32) -> (i32, i32) {
    %c0_i32 = arith.constant 0 : i32
    %c0_i32_0 = arith.constant 0 : i32
    %c0_i32_1 = arith.constant 0 : i32
    return %c0_i32, %c0_i32_0 : i32, i32
  }
  func.func @transform_5(%arg0: i32) -> (i32, i32) {
    %c0_i32 = arith.constant 0 : i32
    %c0_i32_0 = arith.constant 0 : i32
    %c0_i32_1 = arith.constant 0 : i32
    return %c0_i32, %c0_i32_0 : i32, i32
  }
  func.func @transform_6(%arg0: i32) -> (i32, i32) {
    %c0_i32 = arith.constant 0 : i32
    %c0_i32_0 = arith.constant 0 : i32
    %c0_i32_1 = arith.constant 0 : i32
    return %c0_i32, %c0_i32_0 : i32, i32
  }
  func.func @transform_7(%arg0: i32) -> (i32, i32) {
    %c0_i32 = arith.constant 0 : i32
    %c0_i32_0 = arith.constant 0 : i32
    %c0_i32_1 = arith.constant 0 : i32
    return %c0_i32, %c0_i32_0 : i32, i32
  }
  func.func @transform_8(%arg0: i32) -> (i32, i32) {
    %c0_i32 = arith.constant 0 : i32
    %c0_i32_0 = arith.constant 0 : i32
    %c0_i32_1 = arith.constant 0 : i32
    return %c0_i32, %c0_i32_0 : i32, i32
  }
  func.func @transform_9(%arg0: i32) -> (i32, i32) {
    %c0_i32 = arith.constant 0 : i32
    %c0_i32_0 = arith.constant 0 : i32
    %c0_i32_1 = arith.constant 0 : i32
    return %c0_i32, %c0_i32_0 : i32, i32
  }
  func.func @transform_10(%arg0: i32) -> (i32, i32) {
    %c0_i32 = arith.constant 0 : i32
    %c0_i32_0 = arith.constant 0 : i32
    %c0_i32_1 = arith.constant 0 : i32
    return %c0_i32, %c0_i32_0 : i32, i32
  }
  func.func @transform_11(%arg0: i32) -> (i32, i32) {
    %c0_i32 = arith.constant 0 : i32
    %c0_i32_0 = arith.constant 0 : i32
    %c0_i32_1 = arith.constant 0 : i32
    return %c0_i32, %c0_i32_0 : i32, i32
  }
  func.func @transform_12(%arg0: i32) -> (i32, i32) {
    %c0_i32 = arith.constant 0 : i32
    %c0_i32_0 = arith.constant 0 : i32
    %c0_i32_1 = arith.constant 0 : i32
    return %c0_i32, %c0_i32_0 : i32, i32
  }
  func.func @transform_13(%arg0: i32) -> (i32, i32) {
    %c0_i32 = arith.constant 0 : i32
    %c0_i32_0 = arith.constant 0 : i32
    %c0_i32_1 = arith.constant 0 : i32
    return %c0_i32, %c0_i32_0 : i32, i32
  }
  func.func @transform_14(%arg0: i32) -> (i32, i32) {
    %c0_i32 = arith.constant 0 : i32
    %c0_i32_0 = arith.constant 0 : i32
    %c0_i32_1 = arith.constant 0 : i32
    return %c0_i32, %c0_i32_0 : i32, i32
  }
  func.func @transform_15(%arg0: i32) -> (i32, i32) {
    %c0_i32 = arith.constant 0 : i32
    %c0_i32_0 = arith.constant 0 : i32
    %c0_i32_1 = arith.constant 0 : i32
    return %c0_i32, %c0_i32_0 : i32, i32
  }
  func.func @transform_16(%arg0: i32) -> (i32, i32) {
    %c0_i32 = arith.constant 0 : i32
    %c0_i32_0 = arith.constant 0 : i32
    %c0_i32_1 = arith.constant 0 : i32
    return %c0_i32, %c0_i32_0 : i32, i32
  }
  func.func @transform_17(%arg0: i32) -> i32 {
    %c0_i32 = arith.constant 0 : i32
    %c0_i32_0 = arith.constant 0 : i32
    return %c0_i32 : i32
  }
  func.func @transform_18(%arg0: i32) -> (i32, i32, i32) {
    %c0_i32 = arith.constant 0 : i32
    %c0_i32_0 = arith.constant 0 : i32
    %c0_i32_1 = arith.constant 0 : i32
    return %arg0, %c0_i32, %c0_i32_0 : i32, i32, i32
  }
}

</mosaic_0001>

<llo_original>
// kernel: tpu_custom_call.1
$region0: #{tpu_custom_call.1}
  #allocation0 [shape = 'u32[]', space=smem, size = 0x4, offset = 0x4, fixed_abs, tag = 'smem constant byte address 0x4 - core index']
  #allocation1 [shape = 'u32[144,128]{1,0:T(1,128)}', space=vmem, size = 0x12000, scoped, tag = 'internal scratch']
  %s0 = inlined_call_operand.hbm [shape: f32[4,16,128], index: 0, kind: input, shape index: {}]
  %s1 = inlined_call_operand.vmem [shape: f32[1,128], index: 1, kind: input, shape index: {}]
  %s2 = inlined_call_operand.vmem [shape: f32[1,128], index: 2, kind: input, shape index: {}]
  %s3 = inlined_call_operand.hbm [shape: bf16[128,384], index: 3, kind: input, shape index: {}]
  %s4 = inlined_call_operand.vmem [shape: f32[1,384], index: 4, kind: input, shape index: {}]
  %s5 = inlined_call_operand.hbm [shape: bf16[128,128], index: 5, kind: input, shape index: {}]
  %s6 = inlined_call_operand.vmem [shape: f32[1,128], index: 6, kind: input, shape index: {}]
  %s7 = inlined_call_operand.hbm [shape: bf16[128,256], index: 7, kind: input, shape index: {}]
  %s8 = inlined_call_operand.vmem [shape: f32[1,256], index: 8, kind: input, shape index: {}]
  %s9 = inlined_call_operand.hbm [shape: bf16[256,128], index: 9, kind: input, shape index: {}]
  %s10 = inlined_call_operand.vmem [shape: f32[1,128], index: 10, kind: input, shape index: {}]
  %s11 = inlined_call_operand.hbm [shape: bf16[128,384], index: 11, kind: input, shape index: {}]
  %s12 = inlined_call_operand.hbm [shape: bf16[128,256], index: 12, kind: input, shape index: {}]
  %s13 = inlined_call_operand.hbm [shape: bf16[128,128], index: 13, kind: input, shape index: {}]
  %s14 = inlined_call_operand.hbm [shape: bf16[128,384], index: 14, kind: input, shape index: {}]
  %s15 = inlined_call_operand.hbm [shape: bf16[128,256], index: 15, kind: input, shape index: {}]
  %s16 = inlined_call_operand.hbm [shape: bf16[128,128], index: 16, kind: input, shape index: {}]
  %s17 = inlined_call_operand.vmem [shape: f32[2], index: 17, kind: input, shape index: {}]
  %s18 = inlined_call_operand.hbm [shape: f32[4,16,128], index: 18, kind: output, shape index: {}]
  %s19 = sld [smem:[#allocation0]]
  $region153: #{tpu_custom_call.1} parent=0
    _
  %s21 = ssub.s32 1, %s19
  %s22 = scalar_select 0, %s21, %s19
  $region1: #{tpu_custom_call.1} parent=0
    #allocation2 [shape = 'u8[32768]{0}', space=vmem, size = 0x8000, scoped, tag = 'input window, operand 0']
    #allocation3 [shape = 's32[2]{0}', space=sflag, size = 0x8, scoped, tag = 'scoped memory for tpu_custom_call.1']
    #allocation4 [shape = 's32[2]{0}', space=sflag, size = 0x8, scoped, tag = 'scoped memory for tpu_custom_call.1']
    #allocation5 [shape = 's32[2]{0}', space=sflag, size = 0x8, scoped, tag = 'scoped memory for tpu_custom_call.1']
    #allocation6 [shape = 'u8[98304]{0}', space=vmem, size = 0x18000, scoped, tag = 'input window, operand 3, single buffered']
    #allocation7 [shape = 's32[1]{0}', space=sflag, size = 0x4, scoped, tag = 'scoped memory for tpu_custom_call.1']
    #allocation8 [shape = 'u8[32768]{0}', space=vmem, size = 0x8000, scoped, tag = 'input window, operand 5, single buffered']
    #allocation9 [shape = 'u8[65536]{0}', space=vmem, size = 0x10000, scoped, tag = 'input window, operand 7, single buffered']
    #allocation10 [shape = 's32[1]{0}', space=sflag, size = 0x4, scoped, tag = 'scoped memory for tpu_custom_call.1']
    #allocation11 [shape = 'u8[65536]{0}', space=vmem, size = 0x10000, scoped, tag = 'input window, operand 9, single buffered']
    #allocation12 [shape = 'u8[98304]{0}', space=vmem, size = 0x18000, scoped, tag = 'input window, operand 11, single buffered']
    #allocation13 [shape = 's32[1]{0}', space=sflag, size = 0x4, scoped, tag = 'scoped memory for tpu_custom_call.1']
    #allocation14 [shape = 'u8[65536]{0}', space=vmem, size = 0x10000, scoped, tag = 'input window, operand 12, single buffered']
    #allocation15 [shape = 'u8[32768]{0}', space=vmem, size = 0x8000, scoped, tag = 'input window, operand 13, single buffered']
    #allocation16 [shape = 's32[1]{0}', space=sflag, size = 0x4, scoped, tag = 'scoped memory for tpu_custom_call.1']
    #allocation17 [shape = 'u8[98304]{0}', space=vmem, size = 0x18000, scoped, tag = 'input window, operand 14, single buffered']
    #allocation18 [shape = 'u8[65536]{0}', space=vmem, size = 0x10000, scoped, tag = 'input window, operand 15, single buffered']
    #allocation19 [shape = 's32[1]{0}', space=sflag, size = 0x4, scoped, tag = 'scoped memory for tpu_custom_call.1']
    #allocation20 [shape = 'u8[32768]{0}', space=vmem, size = 0x8000, scoped, tag = 'input window, operand 16, single buffered']
    #allocation21 [shape = 'u8[512]{0}', space=smem, size = 0x200, scoped, tag = 'input window, operand 17, single buffered']
    #allocation22 [shape = 'u8[32768]{0}', space=vmem, size = 0x8000, scoped, tag = 'output window, operand 0']
    %23 = vsyncpa [#allocation3], 0
    %s24 = scalar_lea.sflag [#allocation3], 1
    %25 = vsyncpa %s24, 0
    %26 = vsyncpa [#allocation7], 0
    %27 = vsyncpa [#allocation10], 0
    %28 = vsyncpa [#allocation13], 0
    %29 = vsyncpa [#allocation16], 0
    %30 = vsyncpa [#allocation19], 0
    %31 = vsyncpa [#allocation5], 0
    %32 = vsyncpa [#allocation4], 0
    %s33 = scalar_lea.sflag [#allocation4], 1
    %34 = vsyncpa %s33, 0
    loop: start=0, step=1, limit=4
    $region2: #{tpu_custom_call.1} parent=1 // loop_pre_header
      _
    $region3: #{tpu_custom_call.1} parent=1 // loop_header
      %s36 = sphi 0, %s40
      %p37 = scmp.ge.s32.totalorder %s36, 4
      %s46 = sphi 0, %s48
      %s49 = sphi 0, %s46
      %s50 = sphi 0, %s49
      %s66 = sphi 0, %s50
      %s70 = sphi 0, %s70
      %s72 = sphi 0, %s70
      %s73 = sphi 0, %s72
      %s87 = sphi 0, %s73
      %s91 = sphi 0, %s91
      %s93 = sphi 0, %s91
      %s94 = sphi 0, %s93
      %s108 = sphi 0, %s94
      %s112 = sphi 0, %s112
      %s114 = sphi 0, %s112
      %s115 = sphi 0, %s114
      %s129 = sphi 0, %s115
      %s133 = sphi 0, %s133
      %s135 = sphi 0, %s133
      %s136 = sphi 0, %s135
      %s150 = sphi 0, %s136
      %s154 = sphi 0, %s154
      %s156 = sphi 0, %s154
      %s157 = sphi 0, %s156
      %s171 = sphi 0, %s157
      %s175 = sphi 0, %s175
      %s177 = sphi 0, %s175
      %s178 = sphi 0, %s177
      %s192 = sphi 0, %s178
      %s196 = sphi 0, %s196
      %s198 = sphi 0, %s196
      %s199 = sphi 0, %s198
      %s213 = sphi 0, %s199
      %s217 = sphi 0, %s217
      %s219 = sphi 0, %s217
      %s220 = sphi 0, %s219
      %s234 = sphi 0, %s220
      %s238 = sphi 0, %s238
      %s240 = sphi 0, %s238
      %s241 = sphi 0, %s240
      %s255 = sphi 0, %s241
      %s259 = sphi 0, %s259
      %s261 = sphi 0, %s259
      %s262 = sphi 0, %s261
      %s276 = sphi 0, %s262
      %s280 = sphi 0, %s280
      %s282 = sphi 0, %s280
      %s283 = sphi 0, %s282
      %s297 = sphi 0, %s283
      %s301 = sphi 0, %s301
      %s303 = sphi 0, %s301
      %s304 = sphi 0, %s303
      %s318 = sphi 0, %s304
      %s322 = sphi 0, %s322
      %s324 = sphi 0, %s322
      %s325 = sphi 0, %s324
      %s339 = sphi 0, %s325
      %s343 = sphi 0, %s343
      %s345 = sphi 0, %s343
      %s346 = sphi 0, %s345
      %s360 = sphi 0, %s346
      %s364 = sphi 0, %s364
      %s366 = sphi 0, %s364
      %s367 = sphi 0, %s366
      %s381 = sphi 0, %s367
      %s385 = sphi 0, %s385
      %s387 = sphi 0, %s385
      %s388 = sphi 0, %s387
      %s402 = sphi 0, %s388
      %s406 = sphi 0, %s406
      %s408 = sphi 0, %s406
      %s409 = sphi 0, %s408
      %s423 = sphi 0, %s409
      %s429 = sphi 0, %s431
      %s432 = sphi 0, %s429
      %s433 = sphi 0, %s432
      %s449 = sphi 0, %s433
    $region4: #{tpu_custom_call.1} parent=1 // loop_header_branch
      %39 = sbr.rel (%p37) target = $region8
    $region5: #{tpu_custom_call.1} parent=1 // loop_body
      %s41 = ssub.s32 %s36, 1
      %s42 = ssub.s32 %s36, 2
      %s43 = sadd.s32 %s36, 1
      %s44 = ssub.s32 %s36, %s43
      %p45 = scmp.eq.s32.totalorder %s44, 0
      %s47 = sadd.s32 %s46, 1
      %s48 = scalar_select %p45, %s46, %s47
      %p51 = pneg %p45
      %p52 = scmp.eq.s32.totalorder %s36, 1
      %p53 = por %p51, %p52
      %p54 = scmp.ne.s32.totalorder %s46, %s49
      %p55 = scmp.eq.s32.totalorder %s36, 0
      %p56 = por %p54, %p55
      %p57 = scmp.ne.s32.totalorder %s46, %s49
      %p58 = scmp.eq.s32.totalorder %s41, 1
      %p59 = por %p57, %p58
      %p60 = scmp.ne.s32.totalorder %s49, %s50
      %p61 = scmp.eq.s32.totalorder %s41, 0
      %p62 = por %p60, %p61
      %p63 = scmp.ne.s32.totalorder %s49, %s50
      %p64 = scmp.eq.s32.totalorder %s42, 1
      %p65 = por %p63, %p64
      %p67 = scmp.ne.s32.totalorder %s50, %s66
      %p68 = scmp.eq.s32.totalorder %s42, 0
      %p69 = por %p67, %p68
      %s71 = sadd.s32 %s70, 1
      %p74 = scmp.eq.s32.totalorder %s36, 1
      %p75 = scmp.ne.s32.totalorder %s70, %s72
      %p76 = scmp.eq.s32.totalorder %s36, 0
      %p77 = por %p75, %p76
      %p78 = scmp.ne.s32.totalorder %s70, %s72
      %p79 = scmp.eq.s32.totalorder %s41, 1
      %p80 = por %p78, %p79
      %p81 = scmp.ne.s32.totalorder %s72, %s73
      %p82 = scmp.eq.s32.totalorder %s41, 0
      %p83 = por %p81, %p82
      %p84 = scmp.ne.s32.totalorder %s72, %s73
      %p85 = scmp.eq.s32.totalorder %s42, 1
      %p86 = por %p84, %p85
      %p88 = scmp.ne.s32.totalorder %s73, %s87
      %p89 = scmp.eq.s32.totalorder %s42, 0
      %p90 = por %p88, %p89
      %s92 = sadd.s32 %s91, 1
      %p95 = scmp.eq.s32.totalorder %s36, 1
      %p96 = scmp.ne.s32.totalorder %s91, %s93
      %p97 = scmp.eq.s32.totalorder %s36, 0
      %p98 = por %p96, %p97
      %p99 = scmp.ne.s32.totalorder %s91, %s93
      %p100 = scmp.eq.s32.totalorder %s41, 1
      %p101 = por %p99, %p100
      %p102 = scmp.ne.s32.totalorder %s93, %s94
      %p103 = scmp.eq.s32.totalorder %s41, 0
      %p104 = por %p102, %p103
      %p105 = scmp.ne.s32.totalorder %s93, %s94
      %p106 = scmp.eq.s32.totalorder %s42, 1
      %p107 = por %p105, %p106
      %p109 = scmp.ne.s32.totalorder %s94, %s108
      %p110 = scmp.eq.s32.totalorder %s42, 0
      %p111 = por %p109, %p110
      %s113 = sadd.s32 %s112, 1
      %p116 = scmp.eq.s32.totalorder %s36, 1
      %p117 = scmp.ne.s32.totalorder %s112, %s114
      %p118 = scmp.eq.s32.totalorder %s36, 0
      %p119 = por %p117, %p118
      %p120 = scmp.ne.s32.totalorder %s112, %s114
      %p121 = scmp.eq.s32.totalorder %s41, 1
      %p122 = por %p120, %p121
      %p123 = scmp.ne.s32.totalorder %s114, %s115
      %p124 = scmp.eq.s32.totalorder %s41, 0
      %p125 = por %p123, %p124
      %p126 = scmp.ne.s32.totalorder %s114, %s115
      %p127 = scmp.eq.s32.totalorder %s42, 1
      %p128 = por %p126, %p127
      %p130 = scmp.ne.s32.totalorder %s115, %s129
      %p131 = scmp.eq.s32.totalorder %s42, 0
      %p132 = por %p130, %p131
      %s134 = sadd.s32 %s133, 1
      %p137 = scmp.eq.s32.totalorder %s36, 1
      %p138 = scmp.ne.s32.totalorder %s133, %s135
      %p139 = scmp.eq.s32.totalorder %s36, 0
      %p140 = por %p138, %p139
      %p141 = scmp.ne.s32.totalorder %s133, %s135
      %p142 = scmp.eq.s32.totalorder %s41, 1
      %p143 = por %p141, %p142
      %p144 = scmp.ne.s32.totalorder %s135, %s136
      %p145 = scmp.eq.s32.totalorder %s41, 0
      %p146 = por %p144, %p145
      %p147 = scmp.ne.s32.totalorder %s135, %s136
      %p148 = scmp.eq.s32.totalorder %s42, 1
      %p149 = por %p147, %p148
      %p151 = scmp.ne.s32.totalorder %s136, %s150
      %p152 = scmp.eq.s32.totalorder %s42, 0
      %p153 = por %p151, %p152
      %s155 = sadd.s32 %s154, 1
      %p158 = scmp.eq.s32.totalorder %s36, 1
      %p159 = scmp.ne.s32.totalorder %s154, %s156
      %p160 = scmp.eq.s32.totalorder %s36, 0
      %p161 = por %p159, %p160
      %p162 = scmp.ne.s32.totalorder %s154, %s156
      %p163 = scmp.eq.s32.totalorder %s41, 1
      %p164 = por %p162, %p163
      %p165 = scmp.ne.s32.totalorder %s156, %s157
      %p166 = scmp.eq.s32.totalorder %s41, 0
      %p167 = por %p165, %p166
      %p168 = scmp.ne.s32.totalorder %s156, %s157
      %p169 = scmp.eq.s32.totalorder %s42, 1
      %p170 = por %p168, %p169
      %p172 = scmp.ne.s32.totalorder %s157, %s171
      %p173 = scmp.eq.s32.totalorder %s42, 0
      %p174 = por %p172, %p173
      %s176 = sadd.s32 %s175, 1
      %p179 = scmp.eq.s32.totalorder %s36, 1
      %p180 = scmp.ne.s32.totalorder %s175, %s177
      %p181 = scmp.eq.s32.totalorder %s36, 0
      %p182 = por %p180, %p181
      %p183 = scmp.ne.s32.totalorder %s175, %s177
      %p184 = scmp.eq.s32.totalorder %s41, 1
      %p185 = por %p183, %p184
      %p186 = scmp.ne.s32.totalorder %s177, %s178
      %p187 = scmp.eq.s32.totalorder %s41, 0
      %p188 = por %p186, %p187
      %p189 = scmp.ne.s32.totalorder %s177, %s178
      %p190 = scmp.eq.s32.totalorder %s42, 1
      %p191 = por %p189, %p190
      %p193 = scmp.ne.s32.totalorder %s178, %s192
      %p194 = scmp.eq.s32.totalorder %s42, 0
      %p195 = por %p193, %p194
      %s197 = sadd.s32 %s196, 1
      %p200 = scmp.eq.s32.totalorder %s36, 1
      %p201 = scmp.ne.s32.totalorder %s196, %s198
      %p202 = scmp.eq.s32.totalorder %s36, 0
      %p203 = por %p201, %p202
      %p204 = scmp.ne.s32.totalorder %s196, %s198
      %p205 = scmp.eq.s32.totalorder %s41, 1
      %p206 = por %p204, %p205
      %p207 = scmp.ne.s32.totalorder %s198, %s199
      %p208 = scmp.eq.s32.totalorder %s41, 0
      %p209 = por %p207, %p208
      %p210 = scmp.ne.s32.totalorder %s198, %s199
      %p211 = scmp.eq.s32.totalorder %s42, 1
      %p212 = por %p210, %p211
      %p214 = scmp.ne.s32.totalorder %s199, %s213
      %p215 = scmp.eq.s32.totalorder %s42, 0
      %p216 = por %p214, %p215
      %s218 = sadd.s32 %s217, 1
      %p221 = scmp.eq.s32.totalorder %s36, 1
      %p222 = scmp.ne.s32.totalorder %s217, %s219
      %p223 = scmp.eq.s32.totalorder %s36, 0
      %p224 = por %p222, %p223
      %p225 = scmp.ne.s32.totalorder %s217, %s219
      %p226 = scmp.eq.s32.totalorder %s41, 1
      %p227 = por %p225, %p226
      %p228 = scmp.ne.s32.totalorder %s219, %s220
      %p229 = scmp.eq.s32.totalorder %s41, 0
      %p230 = por %p228, %p229
      %p231 = scmp.ne.s32.totalorder %s219, %s220
      %p232 = scmp.eq.s32.totalorder %s42, 1
      %p233 = por %p231, %p232
      %p235 = scmp.ne.s32.totalorder %s220, %s234
      %p236 = scmp.eq.s32.totalorder %s42, 0
      %p237 = por %p235, %p236
      %s239 = sadd.s32 %s238, 1
      %p242 = scmp.eq.s32.totalorder %s36, 1
      %p243 = scmp.ne.s32.totalorder %s238, %s240
      %p244 = scmp.eq.s32.totalorder %s36, 0
      %p245 = por %p243, %p244
      %p246 = scmp.ne.s32.totalorder %s238, %s240
      %p247 = scmp.eq.s32.totalorder %s41, 1
      %p248 = por %p246, %p247
      %p249 = scmp.ne.s32.totalorder %s240, %s241
      %p250 = scmp.eq.s32.totalorder %s41, 0
      %p251 = por %p249, %p250
      %p252 = scmp.ne.s32.totalorder %s240, %s241
      %p253 = scmp.eq.s32.totalorder %s42, 1
      %p254 = por %p252, %p253
      %p256 = scmp.ne.s32.totalorder %s241, %s255
      %p257 = scmp.eq.s32.totalorder %s42, 0
      %p258 = por %p256, %p257
      %s260 = sadd.s32 %s259, 1
      %p263 = scmp.eq.s32.totalorder %s36, 1
      %p264 = scmp.ne.s32.totalorder %s259, %s261
      %p265 = scmp.eq.s32.totalorder %s36, 0
      %p266 = por %p264, %p265
      %p267 = scmp.ne.s32.totalorder %s259, %s261
      %p268 = scmp.eq.s32.totalorder %s41, 1
      %p269 = por %p267, %p268
      %p270 = scmp.ne.s32.totalorder %s261, %s262
      %p271 = scmp.eq.s32.totalorder %s41, 0
      %p272 = por %p270, %p271
      %p273 = scmp.ne.s32.totalorder %s261, %s262
      %p274 = scmp.eq.s32.totalorder %s42, 1
      %p275 = por %p273, %p274
      %p277 = scmp.ne.s32.totalorder %s262, %s276
      %p278 = scmp.eq.s32.totalorder %s42, 0
      %p279 = por %p277, %p278
      %s281 = sadd.s32 %s280, 1
      %p284 = scmp.eq.s32.totalorder %s36, 1
      %p285 = scmp.ne.s32.totalorder %s280, %s282
      %p286 = scmp.eq.s32.totalorder %s36, 0
      %p287 = por %p285, %p286
      %p288 = scmp.ne.s32.totalorder %s280, %s282
      %p289 = scmp.eq.s32.totalorder %s41, 1
      %p290 = por %p288, %p289
      %p291 = scmp.ne.s32.totalorder %s282, %s283
      %p292 = scmp.eq.s32.totalorder %s41, 0
      %p293 = por %p291, %p292
      %p294 = scmp.ne.s32.totalorder %s282, %s283
      %p295 = scmp.eq.s32.totalorder %s42, 1
      %p296 = por %p294, %p295
      %p298 = scmp.ne.s32.totalorder %s283, %s297
      %p299 = scmp.eq.s32.totalorder %s42, 0
      %p300 = por %p298, %p299
      %s302 = sadd.s32 %s301, 1
      %p305 = scmp.eq.s32.totalorder %s36, 1
      %p306 = scmp.ne.s32.totalorder %s301, %s303
      %p307 = scmp.eq.s32.totalorder %s36, 0
      %p308 = por %p306, %p307
      %p309 = scmp.ne.s32.totalorder %s301, %s303
      %p310 = scmp.eq.s32.totalorder %s41, 1
      %p311 = por %p309, %p310
      %p312 = scmp.ne.s32.totalorder %s303, %s304
      %p313 = scmp.eq.s32.totalorder %s41, 0
      %p314 = por %p312, %p313
      %p315 = scmp.ne.s32.totalorder %s303, %s304
      %p316 = scmp.eq.s32.totalorder %s42, 1
      %p317 = por %p315, %p316
      %p319 = scmp.ne.s32.totalorder %s304, %s318
      %p320 = scmp.eq.s32.totalorder %s42, 0
      %p321 = por %p319, %p320
      %s323 = sadd.s32 %s322, 1
      %p326 = scmp.eq.s32.totalorder %s36, 1
      %p327 = scmp.ne.s32.totalorder %s322, %s324
      %p328 = scmp.eq.s32.totalorder %s36, 0
      %p329 = por %p327, %p328
      %p330 = scmp.ne.s32.totalorder %s322, %s324
      %p331 = scmp.eq.s32.totalorder %s41, 1
      %p332 = por %p330, %p331
      %p333 = scmp.ne.s32.totalorder %s324, %s325
      %p334 = scmp.eq.s32.totalorder %s41, 0
      %p335 = por %p333, %p334
      %p336 = scmp.ne.s32.totalorder %s324, %s325
      %p337 = scmp.eq.s32.totalorder %s42, 1
      %p338 = por %p336, %p337
      %p340 = scmp.ne.s32.totalorder %s325, %s339
      %p341 = scmp.eq.s32.totalorder %s42, 0
      %p342 = por %p340, %p341
      %s344 = sadd.s32 %s343, 1
      %p347 = scmp.eq.s32.totalorder %s36, 1
      %p348 = scmp.ne.s32.totalorder %s343, %s345
      %p349 = scmp.eq.s32.totalorder %s36, 0
      %p350 = por %p348, %p349
      %p351 = scmp.ne.s32.totalorder %s343, %s345
      %p352 = scmp.eq.s32.totalorder %s41, 1
      %p353 = por %p351, %p352
      %p354 = scmp.ne.s32.totalorder %s345, %s346
      %p355 = scmp.eq.s32.totalorder %s41, 0
      %p356 = por %p354, %p355
      %p357 = scmp.ne.s32.totalorder %s345, %s346
      %p358 = scmp.eq.s32.totalorder %s42, 1
      %p359 = por %p357, %p358
      %p361 = scmp.ne.s32.totalorder %s346, %s360
      %p362 = scmp.eq.s32.totalorder %s42, 0
      %p363 = por %p361, %p362
      %s365 = sadd.s32 %s364, 1
      %p368 = scmp.eq.s32.totalorder %s36, 1
      %p369 = scmp.ne.s32.totalorder %s364, %s366
      %p370 = scmp.eq.s32.totalorder %s36, 0
      %p371 = por %p369, %p370
      %p372 = scmp.ne.s32.totalorder %s364, %s366
      %p373 = scmp.eq.s32.totalorder %s41, 1
      %p374 = por %p372, %p373
      %p375 = scmp.ne.s32.totalorder %s366, %s367
      %p376 = scmp.eq.s32.totalorder %s41, 0
      %p377 = por %p375, %p376
      %p378 = scmp.ne.s32.totalorder %s366, %s367
      %p379 = scmp.eq.s32.totalorder %s42, 1
      %p380 = por %p378, %p379
      %p382 = scmp.ne.s32.totalorder %s367, %s381
      %p383 = scmp.eq.s32.totalorder %s42, 0
      %p384 = por %p382, %p383
      %s386 = sadd.s32 %s385, 1
      %p389 = scmp.eq.s32.totalorder %s36, 1
      %p390 = scmp.ne.s32.totalorder %s385, %s387
      %p391 = scmp.eq.s32.totalorder %s36, 0
      %p392 = por %p390, %p391
      %p393 = scmp.ne.s32.totalorder %s385, %s387
      %p394 = scmp.eq.s32.totalorder %s41, 1
      %p395 = por %p393, %p394
      %p396 = scmp.ne.s32.totalorder %s387, %s388
      %p397 = scmp.eq.s32.totalorder %s41, 0
      %p398 = por %p396, %p397
      %p399 = scmp.ne.s32.totalorder %s387, %s388
      %p400 = scmp.eq.s32.totalorder %s42, 1
      %p401 = por %p399, %p400
      %p403 = scmp.ne.s32.totalorder %s388, %s402
      %p404 = scmp.eq.s32.totalorder %s42, 0
      %p405 = por %p403, %p404
      %s407 = sadd.s32 %s406, 1
      %p410 = scmp.eq.s32.totalorder %s36, 1
      %p411 = scmp.ne.s32.totalorder %s406, %s408
      %p412 = scmp.eq.s32.totalorder %s36, 0
      %p413 = por %p411, %p412
      %p414 = scmp.ne.s32.totalorder %s406, %s408
      %p415 = scmp.eq.s32.totalorder %s41, 1
      %p416 = por %p414, %p415
      %p417 = scmp.ne.s32.totalorder %s408, %s409
      %p418 = scmp.eq.s32.totalorder %s41, 0
      %p419 = por %p417, %p418
      %p420 = scmp.ne.s32.totalorder %s408, %s409
      %p421 = scmp.eq.s32.totalorder %s42, 1
      %p422 = por %p420, %p421
      %p424 = scmp.ne.s32.totalorder %s409, %s423
      %p425 = scmp.eq.s32.totalorder %s42, 0
      %p426 = por %p424, %p425
      %s427 = ssub.s32 %s36, %s43
      %p428 = scmp.eq.s32.totalorder %s427, 0
      %s430 = sadd.s32 %s429, 1
      %s431 = scalar_select %p428, %s429, %s430
      %p434 = pneg %p428
      %p435 = scmp.eq.s32.totalorder %s36, 1
      %p436 = por %p434, %p435
      %p437 = scmp.ne.s32.totalorder %s429, %s432
      %p438 = scmp.eq.s32.totalorder %s36, 0
      %p439 = por %p437, %p438
      %p440 = scmp.ne.s32.totalorder %s429, %s432
      %p441 = scmp.eq.s32.totalorder %s41, 1
      %p442 = por %p440, %p441
      %p443 = scmp.ne.s32.totalorder %s432, %s433
      %p444 = scmp.eq.s32.totalorder %s41, 0
      %p445 = por %p443, %p444
      %p446 = scmp.ne.s32.totalorder %s432, %s433
      %p447 = scmp.eq.s32.totalorder %s42, 1
      %p448 = por %p446, %p447
      %p450 = scmp.ne.s32.totalorder %s433, %s449
      %p451 = scmp.eq.s32.totalorder %s42, 0
      %p452 = por %p450, %p451
      %p453 = scmp.le.s32.totalorder 1, %s36
      %p454 = scmp.lt.s32.totalorder %s36, 3
      %p455 = pnand %p453, %p454
      %p456 = pneg %p455
      // Predicated region
      $region9: #{tpu_custom_call.1} parent=5 // pred_check
        _
      $region10: #{tpu_custom_call.1} parent=5 // pred_check_branch
        %458 = sbr.rel (%p455) target = $region12
      $region11: #{tpu_custom_call.1} parent=5 // pred_region
        %s459 = ssub.s32 %s36, 1
        // Predicated region
        $region13: #{tpu_custom_call.1} parent=11 // pred_check
          %p460 = pneg %p83
        $region14: #{tpu_custom_call.1} parent=11 // pred_check_branch
          %462 = sbr.rel (%p460) target = $region16
        $region15: #{tpu_custom_call.1} parent=11 // pred_region
          _
        $region16: #{tpu_custom_call.1} parent=11 // pred_fallthru
          _
        // Predicated region
        $region17: #{tpu_custom_call.1} parent=11 // pred_check
          %p463 = pneg %p104
        $region18: #{tpu_custom_call.1} parent=11 // pred_check_branch
          %465 = sbr.rel (%p463) target = $region20
        $region19: #{tpu_custom_call.1} parent=11 // pred_region
          _
        $region20: #{tpu_custom_call.1} parent=11 // pred_fallthru
          _
        // Predicated region
        $region21: #{tpu_custom_call.1} parent=11 // pred_check
          %p466 = pneg %p125
        $region22: #{tpu_custom_call.1} parent=11 // pred_check_branch
          %468 = sbr.rel (%p466) target = $region24
        $region23: #{tpu_custom_call.1} parent=11 // pred_region
          %s470 = ssub.s32 3072, 3072
          %471 = vsyncadd [#allocation7], %s470
          %s472 = sshll.u32 [#allocation6], 4
          %s473 = int_to_ptr.vmem [resolvable:$true] %s472
          %478 = dma.hbm_to_vmem [thread:$0]  %s3, 3072, %s473, [#allocation7], 192, 192, 12
        $region24: #{tpu_custom_call.1} parent=11 // pred_fallthru
          _
        // Predicated region
        $region25: #{tpu_custom_call.1} parent=11 // pred_check
          %p479 = pneg %p146
        $region26: #{tpu_custom_call.1} parent=11 // pred_check_branch
          %481 = sbr.rel (%p479) target = $region28
        $region27: #{tpu_custom_call.1} parent=11 // pred_region
          _
        $region28: #{tpu_custom_call.1} parent=11 // pred_fallthru
          _
        // Predicated region
        $region29: #{tpu_custom_call.1} parent=11 // pred_check
          %p482 = pneg %p167
        $region30: #{tpu_custom_call.1} parent=11 // pred_check_branch
          %484 = sbr.rel (%p482) target = $region32
        $region31: #{tpu_custom_call.1} parent=11 // pred_region
          %s486 = ssub.s32 1024, 1024
          %487 = vsyncadd [#allocation7], %s486
          %s488 = sshll.u32 [#allocation8], 4
          %s489 = int_to_ptr.vmem [resolvable:$true] %s488
          %494 = dma.hbm_to_vmem [thread:$0]  %s5, 1024, %s489, [#allocation7], 64, 64, 4
        $region32: #{tpu_custom_call.1} parent=11 // pred_fallthru
          _
        // Predicated region
        $region33: #{tpu_custom_call.1} parent=11 // pred_check
          %p495 = pneg %p188
        $region34: #{tpu_custom_call.1} parent=11 // pred_check_branch
          %497 = sbr.rel (%p495) target = $region36
        $region35: #{tpu_custom_call.1} parent=11 // pred_region
          _
        $region36: #{tpu_custom_call.1} parent=11 // pred_fallthru
          _
        // Predicated region
        $region37: #{tpu_custom_call.1} parent=11 // pred_check
          %p498 = pneg %p209
        $region38: #{tpu_custom_call.1} parent=11 // pred_check_branch
          %500 = sbr.rel (%p498) target = $region40
        $region39: #{tpu_custom_call.1} parent=11 // pred_region
          %s502 = ssub.s32 2048, 2048
          %503 = vsyncadd [#allocation10], %s502
          %s504 = sshll.u32 [#allocation9], 4
          %s505 = int_to_ptr.vmem [resolvable:$true] %s504
          %510 = dma.hbm_to_vmem [thread:$0]  %s7, 2048, %s505, [#allocation10], 128, 128, 8
        $region40: #{tpu_custom_call.1} parent=11 // pred_fallthru
          _
        // Predicated region
        $region41: #{tpu_custom_call.1} parent=11 // pred_check
          %p511 = pneg %p230
        $region42: #{tpu_custom_call.1} parent=11 // pred_check_branch
          %513 = sbr.rel (%p511) target = $region44
        $region43: #{tpu_custom_call.1} parent=11 // pred_region
          _
        $region44: #{tpu_custom_call.1} parent=11 // pred_fallthru
          _
        // Predicated region
        $region45: #{tpu_custom_call.1} parent=11 // pred_check
          %p514 = pneg %p251
        $region46: #{tpu_custom_call.1} parent=11 // pred_check_branch
          %516 = sbr.rel (%p514) target = $region48
        $region47: #{tpu_custom_call.1} parent=11 // pred_region
          %s518 = ssub.s32 2048, 2048
          %519 = vsyncadd [#allocation10], %s518
          %s520 = sshll.u32 [#allocation11], 4
          %s521 = int_to_ptr.vmem [resolvable:$true] %s520
          %526 = dma.hbm_to_vmem [thread:$0]  %s9, 2048, %s521, [#allocation10], 64, 64, 4
        $region48: #{tpu_custom_call.1} parent=11 // pred_fallthru
          _
        // Predicated region
        $region49: #{tpu_custom_call.1} parent=11 // pred_check
          %p527 = pneg %p272
        $region50: #{tpu_custom_call.1} parent=11 // pred_check_branch
          %529 = sbr.rel (%p527) target = $region52
        $region51: #{tpu_custom_call.1} parent=11 // pred_region
          _
        $region52: #{tpu_custom_call.1} parent=11 // pred_fallthru
          _
        // Predicated region
        $region53: #{tpu_custom_call.1} parent=11 // pred_check
          %p530 = pneg %p293
        $region54: #{tpu_custom_call.1} parent=11 // pred_check_branch
          %532 = sbr.rel (%p530) target = $region56
        $region55: #{tpu_custom_call.1} parent=11 // pred_region
          %s534 = ssub.s32 3072, 3072
          %535 = vsyncadd [#allocation13], %s534
          %s536 = sshll.u32 [#allocation12], 4
          %s537 = int_to_ptr.vmem [resolvable:$true] %s536
          %542 = dma.hbm_to_vmem [thread:$0]  %s11, 3072, %s537, [#allocation13], 192, 192, 12
        $region56: #{tpu_custom_call.1} parent=11 // pred_fallthru
          _
        // Predicated region
        $region57: #{tpu_custom_call.1} parent=11 // pred_check
          %p543 = pneg %p314
        $region58: #{tpu_custom_call.1} parent=11 // pred_check_branch
          %545 = sbr.rel (%p543) target = $region60
        $region59: #{tpu_custom_call.1} parent=11 // pred_region
          %s547 = ssub.s32 2048, 2048
          %548 = vsyncadd [#allocation13], %s547
          %s549 = sshll.u32 [#allocation14], 4
          %s550 = int_to_ptr.vmem [resolvable:$true] %s549
          %555 = dma.hbm_to_vmem [thread:$0]  %s12, 2048, %s550, [#allocation13], 128, 128, 8
        $region60: #{tpu_custom_call.1} parent=11 // pred_fallthru
          _
        // Predicated region
        $region61: #{tpu_custom_call.1} parent=11 // pred_check
          %p556 = pneg %p335
        $region62: #{tpu_custom_call.1} parent=11 // pred_check_branch
          %558 = sbr.rel (%p556) target = $region64
        $region63: #{tpu_custom_call.1} parent=11 // pred_region
          %s560 = ssub.s32 1024, 1024
          %561 = vsyncadd [#allocation16], %s560
          %s562 = sshll.u32 [#allocation15], 4
          %s563 = int_to_ptr.vmem [resolvable:$true] %s562
          %568 = dma.hbm_to_vmem [thread:$0]  %s13, 1024, %s563, [#allocation16], 64, 64, 4
        $region64: #{tpu_custom_call.1} parent=11 // pred_fallthru
          _
        // Predicated region
        $region65: #{tpu_custom_call.1} parent=11 // pred_check
          %p569 = pneg %p356
        $region66: #{tpu_custom_call.1} parent=11 // pred_check_branch
          %571 = sbr.rel (%p569) target = $region68
        $region67: #{tpu_custom_call.1} parent=11 // pred_region
          %s573 = ssub.s32 3072, 3072
          %574 = vsyncadd [#allocation16], %s573
          %s575 = sshll.u32 [#allocation17], 4
          %s576 = int_to_ptr.vmem [resolvable:$true] %s575
          %581 = dma.hbm_to_vmem [thread:$0]  %s14, 3072, %s576, [#allocation16], 192, 192, 12
        $region68: #{tpu_custom_call.1} parent=11 // pred_fallthru
          _
        // Predicated region
        $region69: #{tpu_custom_call.1} parent=11 // pred_check
          %p582 = pneg %p377
        $region70: #{tpu_custom_call.1} parent=11 // pred_check_branch
          %584 = sbr.rel (%p582) target = $region72
        $region71: #{tpu_custom_call.1} parent=11 // pred_region
          %s586 = ssub.s32 2048, 2048
          %587 = vsyncadd [#allocation19], %s586
          %s588 = sshll.u32 [#allocation18], 4
          %s589 = int_to_ptr.vmem [resolvable:$true] %s588
          %594 = dma.hbm_to_vmem [thread:$0]  %s15, 2048, %s589, [#allocation19], 128, 128, 8
        $region72: #{tpu_custom_call.1} parent=11 // pred_fallthru
          _
        // Predicated region
        $region73: #{tpu_custom_call.1} parent=11 // pred_check
          %p595 = pneg %p398
        $region74: #{tpu_custom_call.1} parent=11 // pred_check_branch
          %597 = sbr.rel (%p595) target = $region76
        $region75: #{tpu_custom_call.1} parent=11 // pred_region
          %s599 = ssub.s32 1024, 1024
          %600 = vsyncadd [#allocation19], %s599
          %s601 = sshll.u32 [#allocation20], 4
          %s602 = int_to_ptr.vmem [resolvable:$true] %s601
          %607 = dma.hbm_to_vmem [thread:$0]  %s16, 1024, %s602, [#allocation19], 64, 64, 4
        $region76: #{tpu_custom_call.1} parent=11 // pred_fallthru
          _
        // Predicated region
        $region77: #{tpu_custom_call.1} parent=11 // pred_check
          %p608 = pneg %p419
        $region78: #{tpu_custom_call.1} parent=11 // pred_check_branch
          %610 = sbr.rel (%p608) target = $region80
        $region79: #{tpu_custom_call.1} parent=11 // pred_region
          %s612 = ssub.s32 16, 16
          %613 = vsyncadd [#allocation5], %s612
          %s615 = sshll.u32 %s17, 4
          %s616 = int_to_ptr.vmem [resolvable:$true] %s615
          %618 = dma.vmem_to_smem %s616, 16, [#allocation21], [#allocation5]
        $region80: #{tpu_custom_call.1} parent=11 // pred_fallthru
          _
      $region12: #{tpu_custom_call.1} parent=5 // pred_fallthru
        _
      %p619 = scmp.lt.s32.totalorder %s36, 2
      // Predicated region
      $region81: #{tpu_custom_call.1} parent=5 // pred_check
        %p620 = pneg %p619
      $region82: #{tpu_custom_call.1} parent=5 // pred_check_branch
        %622 = sbr.rel (%p620) target = $region84
      $region83: #{tpu_custom_call.1} parent=5 // pred_region
        // Predicated region
        $region85: #{tpu_custom_call.1} parent=83 // pred_check
          %p623 = pneg %p56
        $region86: #{tpu_custom_call.1} parent=83 // pred_check_branch
          %625 = sbr.rel (%p623) target = $region88
        $region87: #{tpu_custom_call.1} parent=83 // pred_region
          %s626 = sand.u32 %s46, 1
          %s627 = scalar_lea.sflag [#allocation3], %s626
          %s628 = sand.u32 %s46, 1
          %s629 = smul.addr %s628, 32
          %s630 = scalar_lea.vmem [#allocation2], %s629
          %s631 = smul.u32 2, %s36
          %s633 = ssub.s32 512, 512
          %634 = vsyncadd %s627, %s633
          %s635 = smul.addr %s631, 2
          %s636 = smul.addr %s635, 128
          %s637 = scalar_lea.hbm %s0, %s636
          %s638 = sshll.u32 %s630, 4
          %s639 = int_to_ptr.vmem [resolvable:$true] %s638
          %644 = dma.hbm_to_vmem [thread:$0]  %s637, 512, %s639, %s627, 128, 128, 8
        $region88: #{tpu_custom_call.1} parent=83 // pred_fallthru
          _
      $region84: #{tpu_custom_call.1} parent=5 // pred_fallthru
        _
      %p645 = scmp.le.s32.totalorder 1, %s36
      %p646 = scmp.lt.s32.totalorder %s36, 3
      %p647 = pnand %p645, %p646
      %p648 = pneg %p647
      // Predicated region
      $region89: #{tpu_custom_call.1} parent=5 // pred_check
        _
      $region90: #{tpu_custom_call.1} parent=5 // pred_check_branch
        %650 = sbr.rel (%p647) target = $region92
      $region91: #{tpu_custom_call.1} parent=5 // pred_region
        %s651 = ssub.s32 %s36, 1
        %s652 = sand.u32 %s49, 1
        %s653 = scalar_lea.sflag [#allocation3], %s652
        %s654 = sand.u32 %s49, 1
        %s655 = smul.addr %s654, 32
        %s656 = scalar_lea.vmem [#allocation2], %s655
        // Predicated region
        $region93: #{tpu_custom_call.1} parent=91 // pred_check
          %p657 = pneg %p62
        $region94: #{tpu_custom_call.1} parent=91 // pred_check_branch
          %659 = sbr.rel (%p657) target = $region96
        $region95: #{tpu_custom_call.1} parent=91 // pred_region
          %660 = dma.done %s653, 512
        $region96: #{tpu_custom_call.1} parent=91 // pred_fallthru
          _
        // Predicated region
        $region97: #{tpu_custom_call.1} parent=91 // pred_check
          %p661 = pneg %p125
        $region98: #{tpu_custom_call.1} parent=91 // pred_check_branch
          %663 = sbr.rel (%p661) target = $region100
        $region99: #{tpu_custom_call.1} parent=91 // pred_region
          %664 = dma.done [#allocation7], 3072
        $region100: #{tpu_custom_call.1} parent=91 // pred_fallthru
          _
        // Predicated region
        $region101: #{tpu_custom_call.1} parent=91 // pred_check
          %p665 = pneg %p167
        $region102: #{tpu_custom_call.1} parent=91 // pred_check_branch
          %667 = sbr.rel (%p665) target = $region104
        $region103: #{tpu_custom_call.1} parent=91 // pred_region
          %668 = dma.done [#allocation7], 1024
        $region104: #{tpu_custom_call.1} parent=91 // pred_fallthru
          _
        // Predicated region
        $region105: #{tpu_custom_call.1} parent=91 // pred_check
          %p669 = pneg %p209
        $region106: #{tpu_custom_call.1} parent=91 // pred_check_branch
          %671 = sbr.rel (%p669) target = $region108
        $region107: #{tpu_custom_call.1} parent=91 // pred_region
          %672 = dma.done [#allocation10], 2048
        $region108: #{tpu_custom_call.1} parent=91 // pred_fallthru
          _
        // Predicated region
        $region109: #{tpu_custom_call.1} parent=91 // pred_check
          %p673 = pneg %p251
        $region110: #{tpu_custom_call.1} parent=91 // pred_check_branch
          %675 = sbr.rel (%p673) target = $region112
        $region111: #{tpu_custom_call.1} parent=91 // pred_region
          %676 = dma.done [#allocation10], 2048
        $region112: #{tpu_custom_call.1} parent=91 // pred_fallthru
          _
        // Predicated region
        $region113: #{tpu_custom_call.1} parent=91 // pred_check
          %p677 = pneg %p293
        $region114: #{tpu_custom_call.1} parent=91 // pred_check_branch
          %679 = sbr.rel (%p677) target = $region116
        $region115: #{tpu_custom_call.1} parent=91 // pred_region
          %680 = dma.done [#allocation13], 3072
        $region116: #{tpu_custom_call.1} parent=91 // pred_fallthru
          _
        // Predicated region
        $region117: #{tpu_custom_call.1} parent=91 // pred_check
          %p681 = pneg %p314
        $region118: #{tpu_custom_call.1} parent=91 // pred_check_branch
          %683 = sbr.rel (%p681) target = $region120
        $region119: #{tpu_custom_call.1} parent=91 // pred_region
          %684 = dma.done [#allocation13], 2048
        $region120: #{tpu_custom_call.1} parent=91 // pred_fallthru
          _
        // Predicated region
        $region121: #{tpu_custom_call.1} parent=91 // pred_check
          %p685 = pneg %p335
        $region122: #{tpu_custom_call.1} parent=91 // pred_check_branch
          %687 = sbr.rel (%p685) target = $region124
        $region123: #{tpu_custom_call.1} parent=91 // pred_region
          %688 = dma.done [#allocation16], 1024
        $region124: #{tpu_custom_call.1} parent=91 // pred_fallthru
          _
        // Predicated region
        $region125: #{tpu_custom_call.1} parent=91 // pred_check
          %p689 = pneg %p356
        $region126: #{tpu_custom_call.1} parent=91 // pred_check_branch
          %691 = sbr.rel (%p689) target = $region128
        $region127: #{tpu_custom_call.1} parent=91 // pred_region
          %692 = dma.done [#allocation16], 3072
        $region128: #{tpu_custom_call.1} parent=91 // pred_fallthru
          _
        // Predicated region
        $region129: #{tpu_custom_call.1} parent=91 // pred_check
          %p693 = pneg %p377
        $region130: #{tpu_custom_call.1} parent=91 // pred_check_branch
          %695 = sbr.rel (%p693) target = $region132
        $region131: #{tpu_custom_call.1} parent=91 // pred_region
          %696 = dma.done [#allocation19], 2048
        $region132: #{tpu_custom_call.1} parent=91 // pred_fallthru
          _
        // Predicated region
        $region133: #{tpu_custom_call.1} parent=91 // pred_check
          %p697 = pneg %p398
        $region134: #{tpu_custom_call.1} parent=91 // pred_check_branch
          %699 = sbr.rel (%p697) target = $region136
        $region135: #{tpu_custom_call.1} parent=91 // pred_region
          %700 = dma.done [#allocation19], 1024
        $region136: #{tpu_custom_call.1} parent=91 // pred_fallthru
          _
        // Predicated region
        $region137: #{tpu_custom_call.1} parent=91 // pred_check
          %p701 = pneg %p419
        $region138: #{tpu_custom_call.1} parent=91 // pred_check_branch
          %703 = sbr.rel (%p701) target = $region140
        $region139: #{tpu_custom_call.1} parent=91 // pred_region
          %704 = dma.done [#allocation5], 16
        $region140: #{tpu_custom_call.1} parent=91 // pred_fallthru
          _
        %705 = sfence
        %s706 = sand.u32 %s49, 1
        %s707 = scalar_lea.sflag [#allocation3], %s706
        %s708 = sand.u32 %s49, 1
        %s709 = smul.addr %s708, 32
        %s710 = scalar_lea.vmem [#allocation2], %s709
        %p711 = pneg %p62
        %p712 = pneg %p59
        %p713 = pneg %p83
        %p714 = pneg %p80
        %p715 = pneg %p104
        %p716 = pneg %p101
        %p717 = pneg %p125
        %p718 = pneg %p122
        %p719 = pneg %p146
        %p720 = pneg %p143
        %p721 = pneg %p167
        %p722 = pneg %p164
        %p723 = pneg %p188
        %p724 = pneg %p185
        %p725 = pneg %p209
        %p726 = pneg %p206
        %p727 = pneg %p230
        %p728 = pneg %p227
        %p729 = pneg %p251
        %p730 = pneg %p248
        %p731 = pneg %p272
        %p732 = pneg %p269
        %p733 = pneg %p293
        %p734 = pneg %p290
        %p735 = pneg %p314
        %p736 = pneg %p311
        %p737 = pneg %p335
        %p738 = pneg %p332
        %p739 = pneg %p356
        %p740 = pneg %p353
        %p741 = pneg %p377
        %p742 = pneg %p374
        %p743 = pneg %p398
        %p744 = pneg %p395
        %p745 = pneg %p419
        %p746 = pneg %p416
        %p747 = pneg %p445
        %p748 = pneg %p442
        %s749 = sand.u32 %s432, 1
        %s750 = scalar_lea.sflag [#allocation4], %s749
        %s751 = sand.u32 %s432, 1
        %s752 = smul.addr %s751, 32
        %s753 = scalar_lea.vmem [#allocation22], %s752
        %s754 = smul.u32 2, %s41
        %s755 = smul.u32 2, %s41
        %v757 = vld [vmem:[%s656] sm:$0xff]
        %v758 = vld [vmem:[%s656 + $0x8] sm:$0xff]
        %v759 = vld [vmem:[%s656 + $0x10] sm:$0xff]
        %v760 = vld [vmem:[%s656 + $0x18] sm:$0xff]
        %v761 = vld [vmem:[%s1] sm:$0x1]
        %v762 = vld [vmem:[%s2] sm:$0x1]
        %763 = vadd.xlane.f32.xlu0 %v757
        %v764 = vpop.xlane.xlu0 %763
        %765 = vadd.xlane.f32.xlu0 %v758
        %v766 = vpop.xlane.xlu0 %765
        %767 = vadd.xlane.f32.xlu0 %v759
        %v768 = vpop.xlane.xlu0 %767
        %769 = vadd.xlane.f32.xlu0 %v760
        %v770 = vpop.xlane.xlu0 %769
        %v771 = vrcp.pop 128.0
        %v772 = vmul.f32 %v764, %v771
        %v773 = vmul.f32 %v766, %v771
        %v774 = vmul.f32 %v768, %v771
        %v775 = vmul.f32 %v770, %v771
        %v776 = vsub.f32 %v757, %v772
        %v777 = vsub.f32 %v758, %v773
        %v778 = vsub.f32 %v759, %v774
        %v779 = vsub.f32 %v760, %v775
        %v780 = vmul.f32 %v776, %v776
        %v781 = vmul.f32 %v777, %v777
        %v782 = vmul.f32 %v778, %v778
        %v783 = vmul.f32 %v779, %v779
        %784 = vadd.xlane.f32.xlu0 %v780
        %v785 = vpop.xlane.xlu0 %784
        %786 = vadd.xlane.f32.xlu0 %v781
        %v787 = vpop.xlane.xlu0 %786
        %788 = vadd.xlane.f32.xlu0 %v782
        %v789 = vpop.xlane.xlu0 %788
        %790 = vadd.xlane.f32.xlu0 %v783
        %v791 = vpop.xlane.xlu0 %790
        %v792 = vmul.f32 %v785, %v771
        %v793 = vmul.f32 %v787, %v771
        %v794 = vmul.f32 %v789, %v771
        %v795 = vmul.f32 %v791, %v771
        %v796 = vadd.f32 %v792, 1e-05
        %v797 = vadd.f32 %v793, 1e-05
        %v798 = vadd.f32 %v794, 1e-05
        %v799 = vadd.f32 %v795, 1e-05
        %v800 = vrsqrt.pop %v796
        %v801 = vrsqrt.pop %v797
        %v802 = vrsqrt.pop %v798
        %v803 = vrsqrt.pop %v799
        %v804 = vmul.f32 %v776, %v800
        %v805 = vmul.f32 %v777, %v801
        %v806 = vmul.f32 %v778, %v802
        %v807 = vmul.f32 %v779, %v803
        %v809 = vlaneseq
        %v810 = vshrl.u32 %v809, 7
        %v811 = vsub.s32 0, %v810
        %v812 = vrot.slane %v761, %v811
        %v814 = vmul.f32 %v804, %v812
        %v815 = vmul.f32 %v805, %v812
        %v816 = vmul.f32 %v806, %v812
        %v817 = vmul.f32 %v807, %v812
        %v819 = vlaneseq
        %v820 = vshrl.u32 %v819, 7
        %v821 = vsub.s32 0, %v820
        %v822 = vrot.slane %v762, %v821
        %v824 = vadd.f32 %v814, %v822
        %v825 = vadd.f32 %v815, %v822
        %v826 = vadd.f32 %v816, %v822
        %v827 = vadd.f32 %v817, %v822
        %v828 = vld [vmem:[#allocation6] sm:$0xff]
        %v829 = vld [vmem:[#allocation6 + $0x8] sm:$0xf]
        %v830 = vld [vmem:[#allocation6 + $0xc] sm:$0xff]
        %v831 = vld [vmem:[#allocation6 + $0x14] sm:$0xf]
        %v832 = vld [vmem:[#allocation6 + $0x18] sm:$0xff]
        %v833 = vld [vmem:[#allocation6 + $0x20] sm:$0xf]
        %v834 = vld [vmem:[#allocation6 + $0x24] sm:$0xff]
        %v835 = vld [vmem:[#allocation6 + $0x2c] sm:$0xf]
        %v836 = vld [vmem:[#allocation6 + $0x30] sm:$0xff]
        %v837 = vld [vmem:[#allocation6 + $0x38] sm:$0xf]
        %v838 = vld [vmem:[#allocation6 + $0x3c] sm:$0xff]
        %v839 = vld [vmem:[#allocation6 + $0x44] sm:$0xf]
        %v840 = vld [vmem:[#allocation6 + $0x48] sm:$0xff]
        %v841 = vld [vmem:[#allocation6 + $0x50] sm:$0xf]
        %v842 = vld [vmem:[#allocation6 + $0x54] sm:$0xff]
        %v843 = vld [vmem:[#allocation6 + $0x5c] sm:$0xf]
        %v844 = vld [vmem:[#allocation6 + $0x60] sm:$0xff]
        %v845 = vld [vmem:[#allocation6 + $0x68] sm:$0xf]
        %v846 = vld [vmem:[#allocation6 + $0x6c] sm:$0xff]
        %v847 = vld [vmem:[#allocation6 + $0x74] sm:$0xf]
        %v848 = vld [vmem:[#allocation6 + $0x78] sm:$0xff]
        %v849 = vld [vmem:[#allocation6 + $0x80] sm:$0xf]
        %v850 = vld [vmem:[#allocation6 + $0x84] sm:$0xff]
        %v851 = vld [vmem:[#allocation6 + $0x8c] sm:$0xf]
        %v852 = vld [vmem:[#allocation6 + $0x90] sm:$0xff]
        %v853 = vld [vmem:[#allocation6 + $0x98] sm:$0xf]
        %v854 = vld [vmem:[#allocation6 + $0x9c] sm:$0xff]
        %v855 = vld [vmem:[#allocation6 + $0xa4] sm:$0xf]
        %v856 = vld [vmem:[#allocation6 + $0xa8] sm:$0xff]
        %v857 = vld [vmem:[#allocation6 + $0xb0] sm:$0xf]
        %v858 = vld [vmem:[#allocation6 + $0xb4] sm:$0xff]
        %v859 = vld [vmem:[#allocation6 + $0xbc] sm:$0xf]
        %v860 = vpack.c.bf16 %v825, %v824
        %v861 = vpack.c.bf16 %v827, %v826
        %v862 = vld [vmem:[%s4] sm:$0x7]
        %v864 = vlaneseq
        %v865 = vshrl.u32 %v864, 7
        %v866 = vsub.s32 0, %v865
        %v867 = vrot.slane %v862, %v866
        %v868 = vlaneseq
        %v869 = vshrl.u32 %v868, 7
        %v870 = vsub.s32 1, %v869
        %v871 = vrot.slane %v862, %v870
        %v872 = vlaneseq
        %v873 = vshrl.u32 %v872, 7
        %v874 = vsub.s32 2, %v873
        %v875 = vrot.slane %v862, %v874
        %v911 = vunpack.c.l.b16 %v828
        %v912 = vunpack.c.h.b16 %v828
        %v913 = vunpack.c.l.b16 %v829
        %v914 = vunpack.c.l.b16 %v830
        %v915 = vunpack.c.h.b16 %v830
        %v916 = vunpack.c.l.b16 %v831
        %v917 = vunpack.c.l.b16 %v832
        %v918 = vunpack.c.h.b16 %v832
        %v919 = vunpack.c.l.b16 %v833
        %v920 = vunpack.c.l.b16 %v834
        %v921 = vunpack.c.h.b16 %v834
        %v922 = vunpack.c.l.b16 %v835
        %v923 = vunpack.c.l.b16 %v836
        %v924 = vunpack.c.h.b16 %v836
        %v925 = vunpack.c.l.b16 %v837
        %v926 = vunpack.c.l.b16 %v838
        %v927 = vunpack.c.h.b16 %v838
        %v928 = vunpack.c.l.b16 %v839
        %v929 = vunpack.c.l.b16 %v840
        %v930 = vunpack.c.h.b16 %v840
        %v931 = vunpack.c.l.b16 %v841
        %v932 = vunpack.c.l.b16 %v842
        %v933 = vunpack.c.h.b16 %v842
        %v934 = vunpack.c.l.b16 %v843
        %v935 = vunpack.c.l.b16 %v844
        %v936 = vunpack.c.h.b16 %v844
        %v937 = vunpack.c.l.b16 %v845
        %v938 = vunpack.c.l.b16 %v846
        %v939 = vunpack.c.h.b16 %v846
        %v940 = vunpack.c.l.b16 %v847
        %v941 = vunpack.c.l.b16 %v848
        %v942 = vunpack.c.h.b16 %v848
        %v943 = vunpack.c.l.b16 %v849
        %v944 = vunpack.c.l.b16 %v850
        %v945 = vunpack.c.h.b16 %v850
        %v946 = vunpack.c.l.b16 %v851
        %v947 = vunpack.c.l.b16 %v852
        %v948 = vunpack.c.h.b16 %v852
        %v949 = vunpack.c.l.b16 %v853
        %v950 = vunpack.c.l.b16 %v854
        %v951 = vunpack.c.h.b16 %v854
        %v952 = vunpack.c.l.b16 %v855
        %v953 = vunpack.c.l.b16 %v856
        %v954 = vunpack.c.h.b16 %v856
        %v955 = vunpack.c.l.b16 %v857
        %v956 = vunpack.c.l.b16 %v858
        %v957 = vunpack.c.h.b16 %v858
        %v958 = vunpack.c.l.b16 %v859
        %v959 = vpack.c.b16 %v914, %v911
        %v960 = vpack.c.b16 %v915, %v912
        %v961 = vpack.c.b16 %v916, %v913
        %v962 = vpack.c.b16 %v920, %v917
        %v963 = vpack.c.b16 %v921, %v918
        %v964 = vpack.c.b16 %v922, %v919
        %v965 = vpack.c.b16 %v926, %v923
        %v966 = vpack.c.b16 %v927, %v924
        %v967 = vpack.c.b16 %v928, %v925
        %v968 = vpack.c.b16 %v932, %v929
        %v969 = vpack.c.b16 %v933, %v930
        %v970 = vpack.c.b16 %v934, %v931
        %v971 = vpack.c.b16 %v938, %v935
        %v972 = vpack.c.b16 %v939, %v936
        %v973 = vpack.c.b16 %v940, %v937
        %v974 = vpack.c.b16 %v944, %v941
        %v975 = vpack.c.b16 %v945, %v942
        %v976 = vpack.c.b16 %v946, %v943
        %v977 = vpack.c.b16 %v950, %v947
        %v978 = vpack.c.b16 %v951, %v948
        %v979 = vpack.c.b16 %v952, %v949
        %v980 = vpack.c.b16 %v956, %v953
        %v981 = vpack.c.b16 %v957, %v954
        %v982 = vpack.c.b16 %v958, %v955
        %1007 = vmatprep.subr.bf16.mxu0 %v960
        %1008 = vmatpush1.bf16.msra.mxu0 %v959
        %1009 = vmatprep.subr.bf16.mxu0 %v963
        %1010 = vmatpush1.bf16.msra.mxu0 %v962
        %1011 = vmatprep.subr.bf16.mxu0 %v966
        %1012 = vmatpush1.bf16.msra.mxu0 %v965
        %1013 = vmatprep.subr.bf16.mxu0 %v969
        %1014 = vmatpush1.bf16.msra.mxu0 %v968
        %1015 = vmatprep.subr.bf16.mxu0 %v972
        %1016 = vmatpush1.bf16.msra.mxu0 %v971
        %1017 = vmatprep.subr.bf16.mxu0 %v975
        %1018 = vmatpush1.bf16.msra.mxu0 %v974
        %1019 = vmatprep.subr.bf16.mxu0 %v978
        %1020 = vmatpush1.bf16.msra.mxu0 %v977
        %1021 = vmatprep.subr.bf16.mxu0 %v981
        %1022 = vmatpush1.bf16.msra.mxu0 %v980
        %1023 = vmatprep.subr.bf16.mxu0 0
        %1024 = vmatpush1.bf16.msra.mxu0 0
        %1025 = vmatprep.subr.bf16.mxu0 0
        %1026 = vmatpush1.bf16.msra.mxu0 0
        %1027 = vmatprep.subr.bf16.mxu0 0
        %1028 = vmatpush1.bf16.msra.mxu0 0
        %1029 = vmatprep.subr.bf16.mxu0 0
        %1030 = vmatpush1.bf16.msra.mxu0 0
        %1031 = vmatprep.subr.bf16.mxu0 0
        %1032 = vmatpush1.bf16.msra.mxu0 0
        %1033 = vmatprep.subr.bf16.mxu0 0
        %1034 = vmatpush1.bf16.msra.mxu0 0
        %1035 = vmatprep.subr.bf16.mxu0 0
        %1036 = vmatpush1.bf16.msra.mxu0 0
        %1037 = vmatprep.subr.bf16.mxu0 0
        %1038 = vmatpush1.bf16.msra.mxu0 0
        %1039 = vmatprep.mubr.bf16.mxu0 0
        %1040 = vmatmul.mubr.bf16.gmra.mrb[0].mxu0 %v860
        %v1041 = vpop.f32.mrb[0].mxu0
        %v1042 = vadd.f32 %v867, %v1041
        %v1043 = vpop.f32.mrb[0].mxu0
        %v1044 = vadd.f32 %v871, %v1043
        %v1045 = vpop.f32.mrb[0].mxu0
        %v1046 = vadd.f32 %v867, %v1045
        %v1047 = vpop.f32.mrb[0].mxu0
        %v1048 = vadd.f32 %v871, %v1047
        %1049 = vmatprep.mubr.bf16.mxu0 0
        %1050 = vmatmul.mubr.bf16.gmra.mrb[0].mxu0 %v861
        %v1051 = vpop.f32.mrb[0].mxu0
        %v1052 = vadd.f32 %v867, %v1051
        %v1053 = vpop.f32.mrb[0].mxu0
        %v1054 = vadd.f32 %v871, %v1053
        %v1055 = vpop.f32.mrb[0].mxu0
        %v1056 = vadd.f32 %v867, %v1055
        %v1057 = vpop.f32.mrb[0].mxu0
        %v1058 = vadd.f32 %v871, %v1057
        %1059 = vdwg.mxu0
        %1060 = vmatprep.subr.bf16.mxu0 0
        %1061 = vmatpush1.bf16.msra.mxu0 %v961
        %1062 = vmatprep.subr.bf16.mxu0 0
        %1063 = vmatpush1.bf16.msra.mxu0 %v964
        %1064 = vmatprep.subr.bf16.mxu0 0
        %1065 = vmatpush1.bf16.msra.mxu0 %v967
        %1066 = vmatprep.subr.bf16.mxu0 0
        %1067 = vmatpush1.bf16.msra.mxu0 %v970
        %1068 = vmatprep.subr.bf16.mxu0 0
        %1069 = vmatpush1.bf16.msra.mxu0 %v973
        %1070 = vmatprep.subr.bf16.mxu0 0
        %1071 = vmatpush1.bf16.msra.mxu0 %v976
        %1072 = vmatprep.subr.bf16.mxu0 0
        %1073 = vmatpush1.bf16.msra.mxu0 %v979
        %1074 = vmatprep.subr.bf16.mxu0 0
        %1075 = vmatpush1.bf16.msra.mxu0 %v982
        %1076 = vmatprep.subr.bf16.mxu0 0
        %1077 = vmatpush1.bf16.msra.mxu0 0
        %1078 = vmatprep.subr.bf16.mxu0 0
        %1079 = vmatpush1.bf16.msra.mxu0 0
        %1080 = vmatprep.subr.bf16.mxu0 0
        %1081 = vmatpush1.bf16.msra.mxu0 0
        %1082 = vmatprep.subr.bf16.mxu0 0
        %1083 = vmatpush1.bf16.msra.mxu0 0
        %1084 = vmatprep.subr.bf16.mxu0 0
        %1085 = vmatpush1.bf16.msra.mxu0 0
        %1086 = vmatprep.subr.bf16.mxu0 0
        %1087 = vmatpush1.bf16.msra.mxu0 0
        %1088 = vmatprep.subr.bf16.mxu0 0
        %1089 = vmatpush1.bf16.msra.mxu0 0
        %1090 = vmatprep.subr.bf16.mxu0 0
        %1091 = vmatpush1.bf16.msra.mxu0 0
        %1092 = vmatprep.mubr.bf16.mxu0 0
        %1093 = vmatmul.mubr.bf16.gmra.mrb[0].mxu0 %v860
        %v1094 = vpop.f32.mrb[0].mxu0
        %v1095 = vadd.f32 %v875, %v1094
        %v1096 = vpop.f32.mrb[0].mxu0
        %v1097 = vpop.f32.mrb[0].mxu0
        %v1098 = vadd.f32 %v875, %v1097
        %v1099 = vpop.f32.mrb[0].mxu0
        %1100 = vmatprep.mubr.bf16.mxu0 0
        %1101 = vmatmul.mubr.bf16.gmra.mrb[0].mxu0 %v861
        %v1102 = vpop.f32.mrb[0].mxu0
        %v1103 = vadd.f32 %v875, %v1102
        %v1104 = vpop.f32.mrb[0].mxu0
        %v1105 = vpop.f32.mrb[0].mxu0
        %v1106 = vadd.f32 %v875, %v1105
        %v1107 = vpop.f32.mrb[0].mxu0
        %1108 = vdwg.mxu0
        %v1109 = vpack.c.bf16 %v1046, %v1042
        %v1110 = vpack.c.bf16 %v1056, %v1052
        %v1111 = vpack.c.bf16 %v1048, %v1044
        %v1112 = vpack.c.bf16 %v1058, %v1054
        %v1113 = vpack.c.bf16 %v1098, %v1095
        %v1114 = vpack.c.bf16 %v1106, %v1103
        %v1115 = vlaneseq
        %v1116 = vshrl.u32 %v1115, 7
        %v1117 = vadd.s32 %v1116, 8
        %v1118 = vlaneseq
        %v1119 = vand.u32 %v1118, 127
        %vm1120 = vcmp.le.s32.totalorder %v1119, %v1116
        %vm1121 = vcmp.le.s32.totalorder %v1119, %v1117
        %vm1122 = vcmask 261120
        %v1124 = vsel %vm1122, %v1109, 0
        %v1127 = vsel %vm1122, %v1111, 0
        %1129 = vmatprep.subr.bf16.mxu0 0
        %1130 = vmatpush1.bf16.xpose.msra.mxu0 %v1127
        %1131 = vmatprep.subr.bf16.mxu0 0
        %1132 = vmatpush1.bf16.xpose.msra.mxu0 0
        %1133 = vmatprep.subr.bf16.mxu0 0
        %1134 = vmatpush1.bf16.xpose.msra.mxu0 0
        %1135 = vmatprep.subr.bf16.mxu0 0
        %1136 = vmatpush1.bf16.xpose.msra.mxu0 0
        %1137 = vmatprep.subr.bf16.mxu0 0
        %1138 = vmatpush1.bf16.xpose.msra.mxu0 0
        %1139 = vmatprep.subr.bf16.mxu0 0
        %1140 = vmatpush1.bf16.xpose.msra.mxu0 0
        %1141 = vmatprep.subr.bf16.mxu0 0
        %1142 = vmatpush1.bf16.xpose.msra.mxu0 0
        %1143 = vmatprep.subr.bf16.mxu0 0
        %1144 = vmatpush1.bf16.xpose.msra.mxu0 0
        %1145 = vmatprep.subr.bf16.mxu0 0
        %1146 = vmatpush1.bf16.xpose.msra.mxu0 0
        %1147 = vmatprep.subr.bf16.mxu0 0
        %1148 = vmatpush1.bf16.xpose.msra.mxu0 0
        %1149 = vmatprep.subr.bf16.mxu0 0
        %1150 = vmatpush1.bf16.xpose.msra.mxu0 0
        %1151 = vmatprep.subr.bf16.mxu0 0
        %1152 = vmatpush1.bf16.xpose.msra.mxu0 0
        %1153 = vmatprep.subr.bf16.mxu0 0
        %1154 = vmatpush1.bf16.xpose.msra.mxu0 0
        %1155 = vmatprep.subr.bf16.mxu0 0
        %1156 = vmatpush1.bf16.xpose.msra.mxu0 0
        %1157 = vmatprep.subr.bf16.mxu0 0
        %1158 = vmatpush1.bf16.xpose.msra.mxu0 0
        %1159 = vmatprep.subr.bf16.mxu0 0
        %1160 = vmatpush1.bf16.xpose.msra.mxu0 0
        %1161 = vmatprep.mubr.bf16.mxu0 0
        %1162 = vmatmul.mubr.bf16.gmra.mrb[0].mxu0 %v1124
        %v1163 = vpop.f32.mrb[0].mxu0
        %v1164 = vadd.f32 0.0, %v1163
        %v1165 = vpop.f32.mrb[0].mxu0
        %v1166 = vpop.f32.mrb[0].mxu0
        %v1167 = vadd.f32 0.0, %v1166
        %v1168 = vpop.f32.mrb[0].mxu0
        %1169 = vdwg.mxu0
        %v1171 = vsel %vm1122, %v1110, 0
        %v1174 = vsel %vm1122, %v1112, 0
        %1176 = vmatprep.subr.bf16.mxu0 0
        %1177 = vmatpush1.bf16.xpose.msra.mxu0 %v1174
        %1178 = vmatprep.subr.bf16.mxu0 0
        %1179 = vmatpush1.bf16.xpose.msra.mxu0 0
        %1180 = vmatprep.subr.bf16.mxu0 0
        %1181 = vmatpush1.bf16.xpose.msra.mxu0 0
        %1182 = vmatprep.subr.bf16.mxu0 0
        %1183 = vmatpush1.bf16.xpose.msra.mxu0 0
        %1184 = vmatprep.subr.bf16.mxu0 0
        %1185 = vmatpush1.bf16.xpose.msra.mxu0 0
        %1186 = vmatprep.subr.bf16.mxu0 0
        %1187 = vmatpush1.bf16.xpose.msra.mxu0 0
        %1188 = vmatprep.subr.bf16.mxu0 0
        %1189 = vmatpush1.bf16.xpose.msra.mxu0 0
        %1190 = vmatprep.subr.bf16.mxu0 0
        %1191 = vmatpush1.bf16.xpose.msra.mxu0 0
        %1192 = vmatprep.subr.bf16.mxu0 0
        %1193 = vmatpush1.bf16.xpose.msra.mxu0 0
        %1194 = vmatprep.subr.bf16.mxu0 0
        %1195 = vmatpush1.bf16.xpose.msra.mxu0 0
        %1196 = vmatprep.subr.bf16.mxu0 0
        %1197 = vmatpush1.bf16.xpose.msra.mxu0 0
        %1198 = vmatprep.subr.bf16.mxu0 0
        %1199 = vmatpush1.bf16.xpose.msra.mxu0 0
        %1200 = vmatprep.subr.bf16.mxu0 0
        %1201 = vmatpush1.bf16.xpose.msra.mxu0 0
        %1202 = vmatprep.subr.bf16.mxu0 0
        %1203 = vmatpush1.bf16.xpose.msra.mxu0 0
        %1204 = vmatprep.subr.bf16.mxu0 0
        %1205 = vmatpush1.bf16.xpose.msra.mxu0 0
        %1206 = vmatprep.subr.bf16.mxu0 0
        %1207 = vmatpush1.bf16.xpose.msra.mxu0 0
        %1208 = vmatprep.mubr.bf16.mxu0 0
        %1209 = vmatmul.mubr.bf16.gmra.mrb[0].mxu0 %v1171
        %v1210 = vpop.f32.mrb[0].mxu0
        %v1211 = vadd.f32 0.0, %v1210
        %v1212 = vpop.f32.mrb[0].mxu0
        %v1213 = vpop.f32.mrb[0].mxu0
        %v1214 = vadd.f32 0.0, %v1213
        %v1215 = vpop.f32.mrb[0].mxu0
        %1216 = vdwg.mxu0
        %v1217 = vsel %vm1120, %v1164, -1e+30
        %v1218 = vsel %vm1121, %v1167, -1e+30
        %v1219 = vsel %vm1120, %v1211, -1e+30
        %v1220 = vsel %vm1121, %v1214, -1e+30
        %vm1221 = vcmask 130048
        %v1222 = vsel %vm1221, %v1217, -inf
        %1223 = vmax.xlane.f32.xlu0 %v1222
        %v1224 = vpop.xlane.xlu0 %1223
        %v1225 = vsel %vm1221, %v1218, -inf
        %1226 = vmax.xlane.f32.xlu0 %v1225
        %v1227 = vpop.xlane.xlu0 %1226
        %v1228 = vsel %vm1221, %v1219, -inf
        %1229 = vmax.xlane.f32.xlu0 %v1228
        %v1230 = vpop.xlane.xlu0 %1229
        %v1231 = vsel %vm1221, %v1220, -inf
        %1232 = vmax.xlane.f32.xlu0 %v1231
        %v1233 = vpop.xlane.xlu0 %1232
        %v1234 = vsub.f32 %v1217, %v1224
        %v1235 = vsub.f32 %v1218, %v1227
        %v1236 = vsub.f32 %v1219, %v1230
        %v1237 = vsub.f32 %v1220, %v1233
        %v1238 = vmul.f32 %v1234, 1.442695
        %v1239 = vpow.pop %v1238
        %v1240 = vmul.f32 %v1235, 1.442695
        %v1241 = vpow.pop %v1240
        %v1242 = vmul.f32 %v1236, 1.442695
        %v1243 = vpow.pop %v1242
        %v1244 = vmul.f32 %v1237, 1.442695
        %v1245 = vpow.pop %v1244
        %v1246 = vsel %vm1221, %v1239, 0.0
        %1247 = vadd.xlane.f32.xlu0 %v1246
        %v1248 = vpop.xlane.xlu0 %1247
        %v1249 = vsel %vm1221, %v1241, 0.0
        %1250 = vadd.xlane.f32.xlu0 %v1249
        %v1251 = vpop.xlane.xlu0 %1250
        %v1252 = vsel %vm1221, %v1243, 0.0
        %1253 = vadd.xlane.f32.xlu0 %v1252
        %v1254 = vpop.xlane.xlu0 %1253
        %v1255 = vsel %vm1221, %v1245, 0.0
        %1256 = vadd.xlane.f32.xlu0 %v1255
        %v1257 = vpop.xlane.xlu0 %1256
        %v1258 = vrcp.pop %v1248
        %v1259 = vrcp.pop %v1251
        %v1260 = vrcp.pop %v1254
        %v1261 = vrcp.pop %v1257
        %v1262 = vmul.f32 %v1239, %v1258
        %v1263 = vmul.f32 %v1241, %v1259
        %v1264 = vmul.f32 %v1243, %v1260
        %v1265 = vmul.f32 %v1245, %v1261
        %v1266 = vpack.c.bf16 %v1263, %v1262
        %v1267 = vpack.c.bf16 %v1265, %v1264
        %v1269 = vsel %vm1221, %v1266, 0
        %1271 = vmatprep.subr.bf16.mxu0 0
        %1272 = vmatpush1.bf16.msra.mxu0 %v1113
        %1273 = vmatprep.subr.bf16.mxu0 0
        %1274 = vmatpush1.bf16.msra.mxu0 0
        %1275 = vmatprep.subr.bf16.mxu0 0
        %1276 = vmatpush1.bf16.msra.mxu0 0
        %1277 = vmatprep.subr.bf16.mxu0 0
        %1278 = vmatpush1.bf16.msra.mxu0 0
        %1279 = vmatprep.subr.bf16.mxu0 0
        %1280 = vmatpush1.bf16.msra.mxu0 0
        %1281 = vmatprep.subr.bf16.mxu0 0
        %1282 = vmatpush1.bf16.msra.mxu0 0
        %1283 = vmatprep.subr.bf16.mxu0 0
        %1284 = vmatpush1.bf16.msra.mxu0 0
        %1285 = vmatprep.subr.bf16.mxu0 0
        %1286 = vmatpush1.bf16.msra.mxu0 0
        %1287 = vmatprep.subr.bf16.mxu0 0
        %1288 = vmatpush1.bf16.msra.mxu0 0
        %1289 = vmatprep.subr.bf16.mxu0 0
        %1290 = vmatpush1.bf16.msra.mxu0 0
        %1291 = vmatprep.subr.bf16.mxu0 0
        %1292 = vmatpush1.bf16.msra.mxu0 0
        %1293 = vmatprep.subr.bf16.mxu0 0
        %1294 = vmatpush1.bf16.msra.mxu0 0
        %1295 = vmatprep.subr.bf16.mxu0 0
        %1296 = vmatpush1.bf16.msra.mxu0 0
        %1297 = vmatprep.subr.bf16.mxu0 0
        %1298 = vmatpush1.bf16.msra.mxu0 0
        %1299 = vmatprep.subr.bf16.mxu0 0
        %1300 = vmatpush1.bf16.msra.mxu0 0
        %1301 = vmatprep.subr.bf16.mxu0 0
        %1302 = vmatpush1.bf16.msra.mxu0 0
        %1303 = vmatprep.mubr.bf16.mxu0 0
        %1304 = vmatmul.mubr.bf16.gmra.mrb[0].mxu0 %v1269
        %v1305 = vpop.f32.mrb[0].mxu0
        %v1306 = vadd.f32 0.0, %v1305
        %v1307 = vpop.f32.mrb[0].mxu0
        %v1308 = vpop.f32.mrb[0].mxu0
        %v1309 = vadd.f32 0.0, %v1308
        %v1310 = vpop.f32.mrb[0].mxu0
        %1311 = vdwg.mxu0
        %v1313 = vsel %vm1221, %v1267, 0
        %1315 = vmatprep.subr.bf16.mxu0 0
        %1316 = vmatpush1.bf16.msra.mxu0 %v1114
        %1317 = vmatprep.subr.bf16.mxu0 0
        %1318 = vmatpush1.bf16.msra.mxu0 0
        %1319 = vmatprep.subr.bf16.mxu0 0
        %1320 = vmatpush1.bf16.msra.mxu0 0
        %1321 = vmatprep.subr.bf16.mxu0 0
        %1322 = vmatpush1.bf16.msra.mxu0 0
        %1323 = vmatprep.subr.bf16.mxu0 0
        %1324 = vmatpush1.bf16.msra.mxu0 0
        %1325 = vmatprep.subr.bf16.mxu0 0
        %1326 = vmatpush1.bf16.msra.mxu0 0
        %1327 = vmatprep.subr.bf16.mxu0 0
        %1328 = vmatpush1.bf16.msra.mxu0 0
        %1329 = vmatprep.subr.bf16.mxu0 0
        %1330 = vmatpush1.bf16.msra.mxu0 0
        %1331 = vmatprep.subr.bf16.mxu0 0
        %1332 = vmatpush1.bf16.msra.mxu0 0
        %1333 = vmatprep.subr.bf16.mxu0 0
        %1334 = vmatpush1.bf16.msra.mxu0 0
        %1335 = vmatprep.subr.bf16.mxu0 0
        %1336 = vmatpush1.bf16.msra.mxu0 0
        %1337 = vmatprep.subr.bf16.mxu0 0
        %1338 = vmatpush1.bf16.msra.mxu0 0
        %1339 = vmatprep.subr.bf16.mxu0 0
        %1340 = vmatpush1.bf16.msra.mxu0 0
        %1341 = vmatprep.subr.bf16.mxu0 0
        %1342 = vmatpush1.bf16.msra.mxu0 0
        %1343 = vmatprep.subr.bf16.mxu0 0
        %1344 = vmatpush1.bf16.msra.mxu0 0
        %1345 = vmatprep.subr.bf16.mxu0 0
        %1346 = vmatpush1.bf16.msra.mxu0 0
        %1347 = vmatprep.mubr.bf16.mxu0 0
        %1348 = vmatmul.mubr.bf16.gmra.mrb[0].mxu0 %v1313
        %v1349 = vpop.f32.mrb[0].mxu0
        %v1350 = vadd.f32 0.0, %v1349
        %v1351 = vpop.f32.mrb[0].mxu0
        %v1352 = vpop.f32.mrb[0].mxu0
        %v1353 = vadd.f32 0.0, %v1352
        %v1354 = vpop.f32.mrb[0].mxu0
        %1355 = vdwg.mxu0
        %1357 = vrot.lane.b32.xlu0 %v1109, 96
        %v1358 = vpop.permute.xlu0 %1357
        %1360 = vrot.lane.b32.xlu0 %v1111, 96
        %v1361 = vpop.permute.xlu0 %1360
        %v1363 = vsel %vm1122, %v1358, 0
        %v1366 = vsel %vm1122, %v1361, 0
        %1368 = vmatprep.subr.bf16.mxu0 0
        %1369 = vmatpush1.bf16.xpose.msra.mxu0 %v1366
        %1370 = vmatprep.subr.bf16.mxu0 0
        %1371 = vmatpush1.bf16.xpose.msra.mxu0 0
        %1372 = vmatprep.subr.bf16.mxu0 0
        %1373 = vmatpush1.bf16.xpose.msra.mxu0 0
        %1374 = vmatprep.subr.bf16.mxu0 0
        %1375 = vmatpush1.bf16.xpose.msra.mxu0 0
        %1376 = vmatprep.subr.bf16.mxu0 0
        %1377 = vmatpush1.bf16.xpose.msra.mxu0 0
        %1378 = vmatprep.subr.bf16.mxu0 0
        %1379 = vmatpush1.bf16.xpose.msra.mxu0 0
        %1380 = vmatprep.subr.bf16.mxu0 0
        %1381 = vmatpush1.bf16.xpose.msra.mxu0 0
        %1382 = vmatprep.subr.bf16.mxu0 0
        %1383 = vmatpush1.bf16.xpose.msra.mxu0 0
        %1384 = vmatprep.subr.bf16.mxu0 0
        %1385 = vmatpush1.bf16.xpose.msra.mxu0 0
        %1386 = vmatprep.subr.bf16.mxu0 0
        %1387 = vmatpush1.bf16.xpose.msra.mxu0 0
        %1388 = vmatprep.subr.bf16.mxu0 0
        %1389 = vmatpush1.bf16.xpose.msra.mxu0 0
        %1390 = vmatprep.subr.bf16.mxu0 0
        %1391 = vmatpush1.bf16.xpose.msra.mxu0 0
        %1392 = vmatprep.subr.bf16.mxu0 0
        %1393 = vmatpush1.bf16.xpose.msra.mxu0 0
        %1394 = vmatprep.subr.bf16.mxu0 0
        %1395 = vmatpush1.bf16.xpose.msra.mxu0 0
        %1396 = vmatprep.subr.bf16.mxu0 0
        %1397 = vmatpush1.bf16.xpose.msra.mxu0 0
        %1398 = vmatprep.subr.bf16.mxu0 0
        %1399 = vmatpush1.bf16.xpose.msra.mxu0 0
        %1400 = vmatprep.mubr.bf16.mxu0 0
        %1401 = vmatmul.mubr.bf16.gmra.mrb[0].mxu0 %v1363
        %v1402 = vpop.f32.mrb[0].mxu0
        %v1403 = vadd.f32 0.0, %v1402
        %v1404 = vpop.f32.mrb[0].mxu0
        %v1405 = vpop.f32.mrb[0].mxu0
        %v1406 = vadd.f32 0.0, %v1405
        %v1407 = vpop.f32.mrb[0].mxu0
        %1408 = vdwg.mxu0
        %1410 = vrot.lane.b32.xlu0 %v1110, 96
        %v1411 = vpop.permute.xlu0 %1410
        %1413 = vrot.lane.b32.xlu0 %v1112, 96
        %v1414 = vpop.permute.xlu0 %1413
        %v1416 = vsel %vm1122, %v1411, 0
        %v1419 = vsel %vm1122, %v1414, 0
        %1421 = vmatprep.subr.bf16.mxu0 0
        %1422 = vmatpush1.bf16.xpose.msra.mxu0 %v1419
        %1423 = vmatprep.subr.bf16.mxu0 0
        %1424 = vmatpush1.bf16.xpose.msra.mxu0 0
        %1425 = vmatprep.subr.bf16.mxu0 0
        %1426 = vmatpush1.bf16.xpose.msra.mxu0 0
        %1427 = vmatprep.subr.bf16.mxu0 0
        %1428 = vmatpush1.bf16.xpose.msra.mxu0 0
        %1429 = vmatprep.subr.bf16.mxu0 0
        %1430 = vmatpush1.bf16.xpose.msra.mxu0 0
        %1431 = vmatprep.subr.bf16.mxu0 0
        %1432 = vmatpush1.bf16.xpose.msra.mxu0 0
        %1433 = vmatprep.subr.bf16.mxu0 0
        %1434 = vmatpush1.bf16.xpose.msra.mxu0 0
        %1435 = vmatprep.subr.bf16.mxu0 0
        %1436 = vmatpush1.bf16.xpose.msra.mxu0 0
        %1437 = vmatprep.subr.bf16.mxu0 0
        %1438 = vmatpush1.bf16.xpose.msra.mxu0 0
        %1439 = vmatprep.subr.bf16.mxu0 0
        %1440 = vmatpush1.bf16.xpose.msra.mxu0 0
        %1441 = vmatprep.subr.bf16.mxu0 0
        %1442 = vmatpush1.bf16.xpose.msra.mxu0 0
        %1443 = vmatprep.subr.bf16.mxu0 0
        %1444 = vmatpush1.bf16.xpose.msra.mxu0 0
        %1445 = vmatprep.subr.bf16.mxu0 0
        %1446 = vmatpush1.bf16.xpose.msra.mxu0 0
        %1447 = vmatprep.subr.bf16.mxu0 0
        %1448 = vmatpush1.bf16.xpose.msra.mxu0 0
        %1449 = vmatprep.subr.bf16.mxu0 0
        %1450 = vmatpush1.bf16.xpose.msra.mxu0 0
        %1451 = vmatprep.subr.bf16.mxu0 0
        %1452 = vmatpush1.bf16.xpose.msra.mxu0 0
        %1453 = vmatprep.mubr.bf16.mxu0 0
        %1454 = vmatmul.mubr.bf16.gmra.mrb[0].mxu0 %v1416
        %v1455 = vpop.f32.mrb[0].mxu0
        %v1456 = vadd.f32 0.0, %v1455
        %v1457 = vpop.f32.mrb[0].mxu0
        %v1458 = vpop.f32.mrb[0].mxu0
        %v1459 = vadd.f32 0.0, %v1458
        %v1460 = vpop.f32.mrb[0].mxu0
        %1461 = vdwg.mxu0
        %v1462 = vsel %vm1120, %v1403, -1e+30
        %v1463 = vsel %vm1121, %v1406, -1e+30
        %v1464 = vsel %vm1120, %v1456, -1e+30
        %v1465 = vsel %vm1121, %v1459, -1e+30
        %v1466 = vsel %vm1221, %v1462, -inf
        %1467 = vmax.xlane.f32.xlu0 %v1466
        %v1468 = vpop.xlane.xlu0 %1467
        %v1469 = vsel %vm1221, %v1463, -inf
        %1470 = vmax.xlane.f32.xlu0 %v1469
        %v1471 = vpop.xlane.xlu0 %1470
        %v1472 = vsel %vm1221, %v1464, -inf
        %1473 = vmax.xlane.f32.xlu0 %v1472
        %v1474 = vpop.xlane.xlu0 %1473
        %v1475 = vsel %vm1221, %v1465, -inf
        %1476 = vmax.xlane.f32.xlu0 %v1475
        %v1477 = vpop.xlane.xlu0 %1476
        %v1478 = vsub.f32 %v1462, %v1468
        %v1479 = vsub.f32 %v1463, %v1471
        %v1480 = vsub.f32 %v1464, %v1474
        %v1481 = vsub.f32 %v1465, %v1477
        %v1482 = vmul.f32 %v1478, 1.442695
        %v1483 = vpow.pop %v1482
        %v1484 = vmul.f32 %v1479, 1.442695
        %v1485 = vpow.pop %v1484
        %v1486 = vmul.f32 %v1480, 1.442695
        %v1487 = vpow.pop %v1486
        %v1488 = vmul.f32 %v1481, 1.442695
        %v1489 = vpow.pop %v1488
        %v1490 = vsel %vm1221, %v1483, 0.0
        %1491 = vadd.xlane.f32.xlu0 %v1490
        %v1492 = vpop.xlane.xlu0 %1491
        %v1493 = vsel %vm1221, %v1485, 0.0
        %1494 = vadd.xlane.f32.xlu0 %v1493
        %v1495 = vpop.xlane.xlu0 %1494
        %v1496 = vsel %vm1221, %v1487, 0.0
        %1497 = vadd.xlane.f32.xlu0 %v1496
        %v1498 = vpop.xlane.xlu0 %1497
        %v1499 = vsel %vm1221, %v1489, 0.0
        %1500 = vadd.xlane.f32.xlu0 %v1499
        %v1501 = vpop.xlane.xlu0 %1500
        %v1502 = vrcp.pop %v1492
        %v1503 = vrcp.pop %v1495
        %v1504 = vrcp.pop %v1498
        %v1505 = vrcp.pop %v1501
        %v1506 = vmul.f32 %v1483, %v1502
        %v1507 = vmul.f32 %v1485, %v1503
        %v1508 = vmul.f32 %v1487, %v1504
        %v1509 = vmul.f32 %v1489, %v1505
        %v1510 = vpack.c.bf16 %v1507, %v1506
        %v1511 = vpack.c.bf16 %v1509, %v1508
        %1513 = vrot.lane.b32.xlu0 %v1113, 96
        %v1514 = vpop.permute.xlu0 %1513
        %v1517 = vsel %vm1221, %v1510, 0
        %1519 = vmatprep.subr.bf16.mxu0 0
        %1520 = vmatpush1.bf16.msra.mxu0 %v1514
        %1521 = vmatprep.subr.bf16.mxu0 0
        %1522 = vmatpush1.bf16.msra.mxu0 0
        %1523 = vmatprep.subr.bf16.mxu0 0
        %1524 = vmatpush1.bf16.msra.mxu0 0
        %1525 = vmatprep.subr.bf16.mxu0 0
        %1526 = vmatpush1.bf16.msra.mxu0 0
        %1527 = vmatprep.subr.bf16.mxu0 0
        %1528 = vmatpush1.bf16.msra.mxu0 0
        %1529 = vmatprep.subr.bf16.mxu0 0
        %1530 = vmatpush1.bf16.msra.mxu0 0
        %1531 = vmatprep.subr.bf16.mxu0 0
        %1532 = vmatpush1.bf16.msra.mxu0 0
        %1533 = vmatprep.subr.bf16.mxu0 0
        %1534 = vmatpush1.bf16.msra.mxu0 0
        %1535 = vmatprep.subr.bf16.mxu0 0
        %1536 = vmatpush1.bf16.msra.mxu0 0
        %1537 = vmatprep.subr.bf16.mxu0 0
        %1538 = vmatpush1.bf16.msra.mxu0 0
        %1539 = vmatprep.subr.bf16.mxu0 0
        %1540 = vmatpush1.bf16.msra.mxu0 0
        %1541 = vmatprep.subr.bf16.mxu0 0
        %1542 = vmatpush1.bf16.msra.mxu0 0
        %1543 = vmatprep.subr.bf16.mxu0 0
        %1544 = vmatpush1.bf16.msra.mxu0 0
        %1545 = vmatprep.subr.bf16.mxu0 0
        %1546 = vmatpush1.bf16.msra.mxu0 0
        %1547 = vmatprep.subr.bf16.mxu0 0
        %1548 = vmatpush1.bf16.msra.mxu0 0
        %1549 = vmatprep.subr.bf16.mxu0 0
        %1550 = vmatpush1.bf16.msra.mxu0 0
        %1551 = vmatprep.mubr.bf16.mxu0 0
        %1552 = vmatmul.mubr.bf16.gmra.mrb[0].mxu0 %v1517
        %v1553 = vpop.f32.mrb[0].mxu0
        %v1554 = vadd.f32 0.0, %v1553
        %v1555 = vpop.f32.mrb[0].mxu0
        %v1556 = vpop.f32.mrb[0].mxu0
        %v1557 = vadd.f32 0.0, %v1556
        %v1558 = vpop.f32.mrb[0].mxu0
        %1559 = vdwg.mxu0
        %1561 = vrot.lane.b32.xlu0 %v1114, 96
        %v1562 = vpop.permute.xlu0 %1561
        %v1565 = vsel %vm1221, %v1511, 0
        %1567 = vmatprep.subr.bf16.mxu0 0
        %1568 = vmatpush1.bf16.msra.mxu0 %v1562
        %1569 = vmatprep.subr.bf16.mxu0 0
        %1570 = vmatpush1.bf16.msra.mxu0 0
        %1571 = vmatprep.subr.bf16.mxu0 0
        %1572 = vmatpush1.bf16.msra.mxu0 0
        %1573 = vmatprep.subr.bf16.mxu0 0
        %1574 = vmatpush1.bf16.msra.mxu0 0
        %1575 = vmatprep.subr.bf16.mxu0 0
        %1576 = vmatpush1.bf16.msra.mxu0 0
        %1577 = vmatprep.subr.bf16.mxu0 0
        %1578 = vmatpush1.bf16.msra.mxu0 0
        %1579 = vmatprep.subr.bf16.mxu0 0
        %1580 = vmatpush1.bf16.msra.mxu0 0
        %1581 = vmatprep.subr.bf16.mxu0 0
        %1582 = vmatpush1.bf16.msra.mxu0 0
        %1583 = vmatprep.subr.bf16.mxu0 0
        %1584 = vmatpush1.bf16.msra.mxu0 0
        %1585 = vmatprep.subr.bf16.mxu0 0
        %1586 = vmatpush1.bf16.msra.mxu0 0
        %1587 = vmatprep.subr.bf16.mxu0 0
        %1588 = vmatpush1.bf16.msra.mxu0 0
        %1589 = vmatprep.subr.bf16.mxu0 0
        %1590 = vmatpush1.bf16.msra.mxu0 0
        %1591 = vmatprep.subr.bf16.mxu0 0
        %1592 = vmatpush1.bf16.msra.mxu0 0
        %1593 = vmatprep.subr.bf16.mxu0 0
        %1594 = vmatpush1.bf16.msra.mxu0 0
        %1595 = vmatprep.subr.bf16.mxu0 0
        %1596 = vmatpush1.bf16.msra.mxu0 0
        %1597 = vmatprep.subr.bf16.mxu0 0
        %1598 = vmatpush1.bf16.msra.mxu0 0
        %1599 = vmatprep.mubr.bf16.mxu0 0
        %1600 = vmatmul.mubr.bf16.gmra.mrb[0].mxu0 %v1565
        %v1601 = vpop.f32.mrb[0].mxu0
        %v1602 = vadd.f32 0.0, %v1601
        %v1603 = vpop.f32.mrb[0].mxu0
        %v1604 = vpop.f32.mrb[0].mxu0
        %v1605 = vadd.f32 0.0, %v1604
        %v1606 = vpop.f32.mrb[0].mxu0
        %1607 = vdwg.mxu0
        %1608 = vrot.lane.b32.xlu0 %v1109, 64
        %v1609 = vpop.permute.xlu0 %1608
        %1610 = vrot.lane.b32.xlu0 %v1111, 64
        %v1611 = vpop.permute.xlu0 %1610
        %v1613 = vsel %vm1122, %v1609, 0
        %v1616 = vsel %vm1122, %v1611, 0
        %1618 = vmatprep.subr.bf16.mxu0 0
        %1619 = vmatpush1.bf16.xpose.msra.mxu0 %v1616
        %1620 = vmatprep.subr.bf16.mxu0 0
        %1621 = vmatpush1.bf16.xpose.msra.mxu0 0
        %1622 = vmatprep.subr.bf16.mxu0 0
        %1623 = vmatpush1.bf16.xpose.msra.mxu0 0
        %1624 = vmatprep.subr.bf16.mxu0 0
        %1625 = vmatpush1.bf16.xpose.msra.mxu0 0
        %1626 = vmatprep.subr.bf16.mxu0 0
        %1627 = vmatpush1.bf16.xpose.msra.mxu0 0
        %1628 = vmatprep.subr.bf16.mxu0 0
        %1629 = vmatpush1.bf16.xpose.msra.mxu0 0
        %1630 = vmatprep.subr.bf16.mxu0 0
        %1631 = vmatpush1.bf16.xpose.msra.mxu0 0
        %1632 = vmatprep.subr.bf16.mxu0 0
        %1633 = vmatpush1.bf16.xpose.msra.mxu0 0
        %1634 = vmatprep.subr.bf16.mxu0 0
        %1635 = vmatpush1.bf16.xpose.msra.mxu0 0
        %1636 = vmatprep.subr.bf16.mxu0 0
        %1637 = vmatpush1.bf16.xpose.msra.mxu0 0
        %1638 = vmatprep.subr.bf16.mxu0 0
        %1639 = vmatpush1.bf16.xpose.msra.mxu0 0
        %1640 = vmatprep.subr.bf16.mxu0 0
        %1641 = vmatpush1.bf16.xpose.msra.mxu0 0
        %1642 = vmatprep.subr.bf16.mxu0 0
        %1643 = vmatpush1.bf16.xpose.msra.mxu0 0
        %1644 = vmatprep.subr.bf16.mxu0 0
        %1645 = vmatpush1.bf16.xpose.msra.mxu0 0
        %1646 = vmatprep.subr.bf16.mxu0 0
        %1647 = vmatpush1.bf16.xpose.msra.mxu0 0
        %1648 = vmatprep.subr.bf16.mxu0 0
        %1649 = vmatpush1.bf16.xpose.msra.mxu0 0
        %1650 = vmatprep.mubr.bf16.mxu0 0
        %1651 = vmatmul.mubr.bf16.gmra.mrb[0].mxu0 %v1613
        %v1652 = vpop.f32.mrb[0].mxu0
        %v1653 = vadd.f32 0.0, %v1652
        %v1654 = vpop.f32.mrb[0].mxu0
        %v1655 = vpop.f32.mrb[0].mxu0
        %v1656 = vadd.f32 0.0, %v1655
        %v1657 = vpop.f32.mrb[0].mxu0
        %1658 = vdwg.mxu0
        %1659 = vrot.lane.b32.xlu0 %v1110, 64
        %v1660 = vpop.permute.xlu0 %1659
        %1661 = vrot.lane.b32.xlu0 %v1112, 64
        %v1662 = vpop.permute.xlu0 %1661
        %v1664 = vsel %vm1122, %v1660, 0
        %v1667 = vsel %vm1122, %v1662, 0
        %1669 = vmatprep.subr.bf16.mxu0 0
        %1670 = vmatpush1.bf16.xpose.msra.mxu0 %v1667
        %1671 = vmatprep.subr.bf16.mxu0 0
        %1672 = vmatpush1.bf16.xpose.msra.mxu0 0
        %1673 = vmatprep.subr.bf16.mxu0 0
        %1674 = vmatpush1.bf16.xpose.msra.mxu0 0
        %1675 = vmatprep.subr.bf16.mxu0 0
        %1676 = vmatpush1.bf16.xpose.msra.mxu0 0
        %1677 = vmatprep.subr.bf16.mxu0 0
        %1678 = vmatpush1.bf16.xpose.msra.mxu0 0
        %1679 = vmatprep.subr.bf16.mxu0 0
        %1680 = vmatpush1.bf16.xpose.msra.mxu0 0
        %1681 = vmatprep.subr.bf16.mxu0 0
        %1682 = vmatpush1.bf16.xpose.msra.mxu0 0
        %1683 = vmatprep.subr.bf16.mxu0 0
        %1684 = vmatpush1.bf16.xpose.msra.mxu0 0
        %1685 = vmatprep.subr.bf16.mxu0 0
        %1686 = vmatpush1.bf16.xpose.msra.mxu0 0
        %1687 = vmatprep.subr.bf16.mxu0 0
        %1688 = vmatpush1.bf16.xpose.msra.mxu0 0
        %1689 = vmatprep.subr.bf16.mxu0 0
        %1690 = vmatpush1.bf16.xpose.msra.mxu0 0
        %1691 = vmatprep.subr.bf16.mxu0 0
        %1692 = vmatpush1.bf16.xpose.msra.mxu0 0
        %1693 = vmatprep.subr.bf16.mxu0 0
        %1694 = vmatpush1.bf16.xpose.msra.mxu0 0
        %1695 = vmatprep.subr.bf16.mxu0 0
        %1696 = vmatpush1.bf16.xpose.msra.mxu0 0
        %1697 = vmatprep.subr.bf16.mxu0 0
        %1698 = vmatpush1.bf16.xpose.msra.mxu0 0
        %1699 = vmatprep.subr.bf16.mxu0 0
        %1700 = vmatpush1.bf16.xpose.msra.mxu0 0
        %1701 = vmatprep.mubr.bf16.mxu0 0
        %1702 = vmatmul.mubr.bf16.gmra.mrb[0].mxu0 %v1664
        %v1703 = vpop.f32.mrb[0].mxu0
        %v1704 = vadd.f32 0.0, %v1703
        %v1705 = vpop.f32.mrb[0].mxu0
        %v1706 = vpop.f32.mrb[0].mxu0
        %v1707 = vadd.f32 0.0, %v1706
        %v1708 = vpop.f32.mrb[0].mxu0
        %1709 = vdwg.mxu0
        %v1710 = vsel %vm1120, %v1653, -1e+30
        %v1711 = vsel %vm1121, %v1656, -1e+30
        %v1712 = vsel %vm1120, %v1704, -1e+30
        %v1713 = vsel %vm1121, %v1707, -1e+30
        %v1714 = vsel %vm1221, %v1710, -inf
        %1715 = vmax.xlane.f32.xlu0 %v1714
        %v1716 = vpop.xlane.xlu0 %1715
        %v1717 = vsel %vm1221, %v1711, -inf
        %1718 = vmax.xlane.f32.xlu0 %v1717
        %v1719 = vpop.xlane.xlu0 %1718
        %v1720 = vsel %vm1221, %v1712, -inf
        %1721 = vmax.xlane.f32.xlu0 %v1720
        %v1722 = vpop.xlane.xlu0 %1721
        %v1723 = vsel %vm1221, %v1713, -inf
        %1724 = vmax.xlane.f32.xlu0 %v1723
        %v1725 = vpop.xlane.xlu0 %1724
        %v1726 = vsub.f32 %v1710, %v1716
        %v1727 = vsub.f32 %v1711, %v1719
        %v1728 = vsub.f32 %v1712, %v1722
        %v1729 = vsub.f32 %v1713, %v1725
        %v1730 = vmul.f32 %v1726, 1.442695
        %v1731 = vpow.pop %v1730
        %v1732 = vmul.f32 %v1727, 1.442695
        %v1733 = vpow.pop %v1732
        %v1734 = vmul.f32 %v1728, 1.442695
        %v1735 = vpow.pop %v1734
        %v1736 = vmul.f32 %v1729, 1.442695
        %v1737 = vpow.pop %v1736
        %v1738 = vsel %vm1221, %v1731, 0.0
        %1739 = vadd.xlane.f32.xlu0 %v1738
        %v1740 = vpop.xlane.xlu0 %1739
        %v1741 = vsel %vm1221, %v1733, 0.0
        %1742 = vadd.xlane.f32.xlu0 %v1741
        %v1743 = vpop.xlane.xlu0 %1742
        %v1744 = vsel %vm1221, %v1735, 0.0
        %1745 = vadd.xlane.f32.xlu0 %v1744
        %v1746 = vpop.xlane.xlu0 %1745
        %v1747 = vsel %vm1221, %v1737, 0.0
        %1748 = vadd.xlane.f32.xlu0 %v1747
        %v1749 = vpop.xlane.xlu0 %1748
        %v1750 = vrcp.pop %v1740
        %v1751 = vrcp.pop %v1743
        %v1752 = vrcp.pop %v1746
        %v1753 = vrcp.pop %v1749
        %v1754 = vmul.f32 %v1731, %v1750
        %v1755 = vmul.f32 %v1733, %v1751
        %v1756 = vmul.f32 %v1735, %v1752
        %v1757 = vmul.f32 %v1737, %v1753
        %v1758 = vpack.c.bf16 %v1755, %v1754
        %v1759 = vpack.c.bf16 %v1757, %v1756
        %1760 = vrot.lane.b32.xlu0 %v1113, 64
        %v1761 = vpop.permute.xlu0 %1760
        %v1764 = vsel %vm1221, %v1758, 0
        %1766 = vmatprep.subr.bf16.mxu0 0
        %1767 = vmatpush1.bf16.msra.mxu0 %v1761
        %1768 = vmatprep.subr.bf16.mxu0 0
        %1769 = vmatpush1.bf16.msra.mxu0 0
        %1770 = vmatprep.subr.bf16.mxu0 0
        %1771 = vmatpush1.bf16.msra.mxu0 0
        %1772 = vmatprep.subr.bf16.mxu0 0
        %1773 = vmatpush1.bf16.msra.mxu0 0
        %1774 = vmatprep.subr.bf16.mxu0 0
        %1775 = vmatpush1.bf16.msra.mxu0 0
        %1776 = vmatprep.subr.bf16.mxu0 0
        %1777 = vmatpush1.bf16.msra.mxu0 0
        %1778 = vmatprep.subr.bf16.mxu0 0
        %1779 = vmatpush1.bf16.msra.mxu0 0
        %1780 = vmatprep.subr.bf16.mxu0 0
        %1781 = vmatpush1.bf16.msra.mxu0 0
        %1782 = vmatprep.subr.bf16.mxu0 0
        %1783 = vmatpush1.bf16.msra.mxu0 0
        %1784 = vmatprep.subr.bf16.mxu0 0
        %1785 = vmatpush1.bf16.msra.mxu0 0
        %1786 = vmatprep.subr.bf16.mxu0 0
        %1787 = vmatpush1.bf16.msra.mxu0 0
        %1788 = vmatprep.subr.bf16.mxu0 0
        %1789 = vmatpush1.bf16.msra.mxu0 0
        %1790 = vmatprep.subr.bf16.mxu0 0
        %1791 = vmatpush1.bf16.msra.mxu0 0
        %1792 = vmatprep.subr.bf16.mxu0 0
        %1793 = vmatpush1.bf16.msra.mxu0 0
        %1794 = vmatprep.subr.bf16.mxu0 0
        %1795 = vmatpush1.bf16.msra.mxu0 0
        %1796 = vmatprep.subr.bf16.mxu0 0
        %1797 = vmatpush1.bf16.msra.mxu0 0
        %1798 = vmatprep.mubr.bf16.mxu0 0
        %1799 = vmatmul.mubr.bf16.gmra.mrb[0].mxu0 %v1764
        %v1800 = vpop.f32.mrb[0].mxu0
        %v1801 = vadd.f32 0.0, %v1800
        %v1802 = vpop.f32.mrb[0].mxu0
        %v1803 = vpop.f32.mrb[0].mxu0
        %v1804 = vadd.f32 0.0, %v1803
        %v1805 = vpop.f32.mrb[0].mxu0
        %1806 = vdwg.mxu0
        %1807 = vrot.lane.b32.xlu0 %v1114, 64
        %v1808 = vpop.permute.xlu0 %1807
        %v1811 = vsel %vm1221, %v1759, 0
        %1813 = vmatprep.subr.bf16.mxu0 0
        %1814 = vmatpush1.bf16.msra.mxu0 %v1808
        %1815 = vmatprep.subr.bf16.mxu0 0
        %1816 = vmatpush1.bf16.msra.mxu0 0
        %1817 = vmatprep.subr.bf16.mxu0 0
        %1818 = vmatpush1.bf16.msra.mxu0 0
        %1819 = vmatprep.subr.bf16.mxu0 0
        %1820 = vmatpush1.bf16.msra.mxu0 0
        %1821 = vmatprep.subr.bf16.mxu0 0
        %1822 = vmatpush1.bf16.msra.mxu0 0
        %1823 = vmatprep.subr.bf16.mxu0 0
        %1824 = vmatpush1.bf16.msra.mxu0 0
        %1825 = vmatprep.subr.bf16.mxu0 0
        %1826 = vmatpush1.bf16.msra.mxu0 0
        %1827 = vmatprep.subr.bf16.mxu0 0
        %1828 = vmatpush1.bf16.msra.mxu0 0
        %1829 = vmatprep.subr.bf16.mxu0 0
        %1830 = vmatpush1.bf16.msra.mxu0 0
        %1831 = vmatprep.subr.bf16.mxu0 0
        %1832 = vmatpush1.bf16.msra.mxu0 0
        %1833 = vmatprep.subr.bf16.mxu0 0
        %1834 = vmatpush1.bf16.msra.mxu0 0
        %1835 = vmatprep.subr.bf16.mxu0 0
        %1836 = vmatpush1.bf16.msra.mxu0 0
        %1837 = vmatprep.subr.bf16.mxu0 0
        %1838 = vmatpush1.bf16.msra.mxu0 0
        %1839 = vmatprep.subr.bf16.mxu0 0
        %1840 = vmatpush1.bf16.msra.mxu0 0
        %1841 = vmatprep.subr.bf16.mxu0 0
        %1842 = vmatpush1.bf16.msra.mxu0 0
        %1843 = vmatprep.subr.bf16.mxu0 0
        %1844 = vmatpush1.bf16.msra.mxu0 0
        %1845 = vmatprep.mubr.bf16.mxu0 0
        %1846 = vmatmul.mubr.bf16.gmra.mrb[0].mxu0 %v1811
        %v1847 = vpop.f32.mrb[0].mxu0
        %v1848 = vadd.f32 0.0, %v1847
        %v1849 = vpop.f32.mrb[0].mxu0
        %v1850 = vpop.f32.mrb[0].mxu0
        %v1851 = vadd.f32 0.0, %v1850
        %v1852 = vpop.f32.mrb[0].mxu0
        %1853 = vdwg.mxu0
        %1854 = vrot.lane.b32.xlu0 %v1109, 32
        %v1855 = vpop.permute.xlu0 %1854
        %1856 = vrot.lane.b32.xlu0 %v1111, 32
        %v1857 = vpop.permute.xlu0 %1856
        %v1859 = vsel %vm1122, %v1855, 0
        %v1862 = vsel %vm1122, %v1857, 0
        %1864 = vmatprep.subr.bf16.mxu0 0
        %1865 = vmatpush1.bf16.xpose.msra.mxu0 %v1862
        %1866 = vmatprep.subr.bf16.mxu0 0
        %1867 = vmatpush1.bf16.xpose.msra.mxu0 0
        %1868 = vmatprep.subr.bf16.mxu0 0
        %1869 = vmatpush1.bf16.xpose.msra.mxu0 0
        %1870 = vmatprep.subr.bf16.mxu0 0
        %1871 = vmatpush1.bf16.xpose.msra.mxu0 0
        %1872 = vmatprep.subr.bf16.mxu0 0
        %1873 = vmatpush1.bf16.xpose.msra.mxu0 0
        %1874 = vmatprep.subr.bf16.mxu0 0
        %1875 = vmatpush1.bf16.xpose.msra.mxu0 0
        %1876 = vmatprep.subr.bf16.mxu0 0
        %1877 = vmatpush1.bf16.xpose.msra.mxu0 0
        %1878 = vmatprep.subr.bf16.mxu0 0
        %1879 = vmatpush1.bf16.xpose.msra.mxu0 0
        %1880 = vmatprep.subr.bf16.mxu0 0
        %1881 = vmatpush1.bf16.xpose.msra.mxu0 0
        %1882 = vmatprep.subr.bf16.mxu0 0
        %1883 = vmatpush1.bf16.xpose.msra.mxu0 0
        %1884 = vmatprep.subr.bf16.mxu0 0
        %1885 = vmatpush1.bf16.xpose.msra.mxu0 0
        %1886 = vmatprep.subr.bf16.mxu0 0
        %1887 = vmatpush1.bf16.xpose.msra.mxu0 0
        %1888 = vmatprep.subr.bf16.mxu0 0
        %1889 = vmatpush1.bf16.xpose.msra.mxu0 0
        %1890 = vmatprep.subr.bf16.mxu0 0
        %1891 = vmatpush1.bf16.xpose.msra.mxu0 0
        %1892 = vmatprep.subr.bf16.mxu0 0
        %1893 = vmatpush1.bf16.xpose.msra.mxu0 0
        %1894 = vmatprep.subr.bf16.mxu0 0
        %1895 = vmatpush1.bf16.xpose.msra.mxu0 0
        %1896 = vmatprep.mubr.bf16.mxu0 0
        %1897 = vmatmul.mubr.bf16.gmra.mrb[0].mxu0 %v1859
        %v1898 = vpop.f32.mrb[0].mxu0
        %v1899 = vadd.f32 0.0, %v1898
        %v1900 = vpop.f32.mrb[0].mxu0
        %v1901 = vpop.f32.mrb[0].mxu0
        %v1902 = vadd.f32 0.0, %v1901
        %v1903 = vpop.f32.mrb[0].mxu0
        %1904 = vdwg.mxu0
        %1905 = vrot.lane.b32.xlu0 %v1110, 32
        %v1906 = vpop.permute.xlu0 %1905
        %1907 = vrot.lane.b32.xlu0 %v1112, 32
        %v1908 = vpop.permute.xlu0 %1907
        %v1910 = vsel %vm1122, %v1906, 0
        %v1913 = vsel %vm1122, %v1908, 0
        %1915 = vmatprep.subr.bf16.mxu0 0
        %1916 = vmatpush1.bf16.xpose.msra.mxu0 %v1913
        %1917 = vmatprep.subr.bf16.mxu0 0
        %1918 = vmatpush1.bf16.xpose.msra.mxu0 0
        %1919 = vmatprep.subr.bf16.mxu0 0
        %1920 = vmatpush1.bf16.xpose.msra.mxu0 0
        %1921 = vmatprep.subr.bf16.mxu0 0
        %1922 = vmatpush1.bf16.xpose.msra.mxu0 0
        %1923 = vmatprep.subr.bf16.mxu0 0
        %1924 = vmatpush1.bf16.xpose.msra.mxu0 0
        %1925 = vmatprep.subr.bf16.mxu0 0
        %1926 = vmatpush1.bf16.xpose.msra.mxu0 0
        %1927 = vmatprep.subr.bf16.mxu0 0
        %1928 = vmatpush1.bf16.xpose.msra.mxu0 0
        %1929 = vmatprep.subr.bf16.mxu0 0
        %1930 = vmatpush1.bf16.xpose.msra.mxu0 0
        %1931 = vmatprep.subr.bf16.mxu0 0
        %1932 = vmatpush1.bf16.xpose.msra.mxu0 0
        %1933 = vmatprep.subr.bf16.mxu0 0
        %1934 = vmatpush1.bf16.xpose.msra.mxu0 0
        %1935 = vmatprep.subr.bf16.mxu0 0
        %1936 = vmatpush1.bf16.xpose.msra.mxu0 0
        %1937 = vmatprep.subr.bf16.mxu0 0
        %1938 = vmatpush1.bf16.xpose.msra.mxu0 0
        %1939 = vmatprep.subr.bf16.mxu0 0
        %1940 = vmatpush1.bf16.xpose.msra.mxu0 0
        %1941 = vmatprep.subr.bf16.mxu0 0
        %1942 = vmatpush1.bf16.xpose.msra.mxu0 0
        %1943 = vmatprep.subr.bf16.mxu0 0
        %1944 = vmatpush1.bf16.xpose.msra.mxu0 0
        %1945 = vmatprep.subr.bf16.mxu0 0
        %1946 = vmatpush1.bf16.xpose.msra.mxu0 0
        %1947 = vmatprep.mubr.bf16.mxu0 0
        %1948 = vmatmul.mubr.bf16.gmra.mrb[0].mxu0 %v1910
        %v1949 = vpop.f32.mrb[0].mxu0
        %v1950 = vadd.f32 0.0, %v1949
        %v1951 = vpop.f32.mrb[0].mxu0
        %v1952 = vpop.f32.mrb[0].mxu0
        %v1953 = vadd.f32 0.0, %v1952
        %v1954 = vpop.f32.mrb[0].mxu0
        %1955 = vdwg.mxu0
        %v1956 = vsel %vm1120, %v1899, -1e+30
        %v1957 = vsel %vm1121, %v1902, -1e+30
        %v1958 = vsel %vm1120, %v1950, -1e+30
        %v1959 = vsel %vm1121, %v1953, -1e+30
        %v1960 = vsel %vm1221, %v1956, -inf
        %1961 = vmax.xlane.f32.xlu0 %v1960
        %v1962 = vpop.xlane.xlu0 %1961
        %v1963 = vsel %vm1221, %v1957, -inf
        %1964 = vmax.xlane.f32.xlu0 %v1963
        %v1965 = vpop.xlane.xlu0 %1964
        %v1966 = vsel %vm1221, %v1958, -inf
        %1967 = vmax.xlane.f32.xlu0 %v1966
        %v1968 = vpop.xlane.xlu0 %1967
        %v1969 = vsel %vm1221, %v1959, -inf
        %1970 = vmax.xlane.f32.xlu0 %v1969
        %v1971 = vpop.xlane.xlu0 %1970
        %v1972 = vsub.f32 %v1956, %v1962
        %v1973 = vsub.f32 %v1957, %v1965
        %v1974 = vsub.f32 %v1958, %v1968
        %v1975 = vsub.f32 %v1959, %v1971
        %v1976 = vmul.f32 %v1972, 1.442695
        %v1977 = vpow.pop %v1976
        %v1978 = vmul.f32 %v1973, 1.442695
        %v1979 = vpow.pop %v1978
        %v1980 = vmul.f32 %v1974, 1.442695
        %v1981 = vpow.pop %v1980
        %v1982 = vmul.f32 %v1975, 1.442695
        %v1983 = vpow.pop %v1982
        %v1984 = vsel %vm1221, %v1977, 0.0
        %1985 = vadd.xlane.f32.xlu0 %v1984
        %v1986 = vpop.xlane.xlu0 %1985
        %v1987 = vsel %vm1221, %v1979, 0.0
        %1988 = vadd.xlane.f32.xlu0 %v1987
        %v1989 = vpop.xlane.xlu0 %1988
        %v1990 = vsel %vm1221, %v1981, 0.0
        %1991 = vadd.xlane.f32.xlu0 %v1990
        %v1992 = vpop.xlane.xlu0 %1991
        %v1993 = vsel %vm1221, %v1983, 0.0
        %1994 = vadd.xlane.f32.xlu0 %v1993
        %v1995 = vpop.xlane.xlu0 %1994
        %v1996 = vrcp.pop %v1986
        %v1997 = vrcp.pop %v1989
        %v1998 = vrcp.pop %v1992
        %v1999 = vrcp.pop %v1995
        %v2000 = vmul.f32 %v1977, %v1996
        %v2001 = vmul.f32 %v1979, %v1997
        %v2002 = vmul.f32 %v1981, %v1998
        %v2003 = vmul.f32 %v1983, %v1999
        %v2004 = vpack.c.bf16 %v2001, %v2000
        %v2005 = vpack.c.bf16 %v2003, %v2002
        %2006 = vrot.lane.b32.xlu0 %v1113, 32
        %v2007 = vpop.permute.xlu0 %2006
        %v2010 = vsel %vm1221, %v2004, 0
        %2012 = vmatprep.subr.bf16.mxu0 0
        %2013 = vmatpush1.bf16.msra.mxu0 %v2007
        %2014 = vmatprep.subr.bf16.mxu0 0
        %2015 = vmatpush1.bf16.msra.mxu0 0
        %2016 = vmatprep.subr.bf16.mxu0 0
        %2017 = vmatpush1.bf16.msra.mxu0 0
        %2018 = vmatprep.subr.bf16.mxu0 0
        %2019 = vmatpush1.bf16.msra.mxu0 0
        %2020 = vmatprep.subr.bf16.mxu0 0
        %2021 = vmatpush1.bf16.msra.mxu0 0
        %2022 = vmatprep.subr.bf16.mxu0 0
        %2023 = vmatpush1.bf16.msra.mxu0 0
        %2024 = vmatprep.subr.bf16.mxu0 0
        %2025 = vmatpush1.bf16.msra.mxu0 0
        %2026 = vmatprep.subr.bf16.mxu0 0
        %2027 = vmatpush1.bf16.msra.mxu0 0
        %2028 = vmatprep.subr.bf16.mxu0 0
        %2029 = vmatpush1.bf16.msra.mxu0 0
        %2030 = vmatprep.subr.bf16.mxu0 0
        %2031 = vmatpush1.bf16.msra.mxu0 0
        %2032 = vmatprep.subr.bf16.mxu0 0
        %2033 = vmatpush1.bf16.msra.mxu0 0
        %2034 = vmatprep.subr.bf16.mxu0 0
        %2035 = vmatpush1.bf16.msra.mxu0 0
        %2036 = vmatprep.subr.bf16.mxu0 0
        %2037 = vmatpush1.bf16.msra.mxu0 0
        %2038 = vmatprep.subr.bf16.mxu0 0
        %2039 = vmatpush1.bf16.msra.mxu0 0
        %2040 = vmatprep.subr.bf16.mxu0 0
        %2041 = vmatpush1.bf16.msra.mxu0 0
        %2042 = vmatprep.subr.bf16.mxu0 0
        %2043 = vmatpush1.bf16.msra.mxu0 0
        %2044 = vmatprep.mubr.bf16.mxu0 0
        %2045 = vmatmul.mubr.bf16.gmra.mrb[0].mxu0 %v2010
        %v2046 = vpop.f32.mrb[0].mxu0
        %v2047 = vadd.f32 0.0, %v2046
        %v2048 = vpop.f32.mrb[0].mxu0
        %v2049 = vpop.f32.mrb[0].mxu0
        %v2050 = vadd.f32 0.0, %v2049
        %v2051 = vpop.f32.mrb[0].mxu0
        %2052 = vdwg.mxu0
        %2053 = vrot.lane.b32.xlu0 %v1114, 32
        %v2054 = vpop.permute.xlu0 %2053
        %v2057 = vsel %vm1221, %v2005, 0
        %2059 = vmatprep.subr.bf16.mxu0 0
        %2060 = vmatpush1.bf16.msra.mxu0 %v2054
        %2061 = vmatprep.subr.bf16.mxu0 0
        %2062 = vmatpush1.bf16.msra.mxu0 0
        %2063 = vmatprep.subr.bf16.mxu0 0
        %2064 = vmatpush1.bf16.msra.mxu0 0
        %2065 = vmatprep.subr.bf16.mxu0 0
        %2066 = vmatpush1.bf16.msra.mxu0 0
        %2067 = vmatprep.subr.bf16.mxu0 0
        %2068 = vmatpush1.bf16.msra.mxu0 0
        %2069 = vmatprep.subr.bf16.mxu0 0
        %2070 = vmatpush1.bf16.msra.mxu0 0
        %2071 = vmatprep.subr.bf16.mxu0 0
        %2072 = vmatpush1.bf16.msra.mxu0 0
        %2073 = vmatprep.subr.bf16.mxu0 0
        %2074 = vmatpush1.bf16.msra.mxu0 0
        %2075 = vmatprep.subr.bf16.mxu0 0
        %2076 = vmatpush1.bf16.msra.mxu0 0
        %2077 = vmatprep.subr.bf16.mxu0 0
        %2078 = vmatpush1.bf16.msra.mxu0 0
        %2079 = vmatprep.subr.bf16.mxu0 0
        %2080 = vmatpush1.bf16.msra.mxu0 0
        %2081 = vmatprep.subr.bf16.mxu0 0
        %2082 = vmatpush1.bf16.msra.mxu0 0
        %2083 = vmatprep.subr.bf16.mxu0 0
        %2084 = vmatpush1.bf16.msra.mxu0 0
        %2085 = vmatprep.subr.bf16.mxu0 0
        %2086 = vmatpush1.bf16.msra.mxu0 0
        %2087 = vmatprep.subr.bf16.mxu0 0
        %2088 = vmatpush1.bf16.msra.mxu0 0
        %2089 = vmatprep.subr.bf16.mxu0 0
        %2090 = vmatpush1.bf16.msra.mxu0 0
        %2091 = vmatprep.mubr.bf16.mxu0 0
        %2092 = vmatmul.mubr.bf16.gmra.mrb[0].mxu0 %v2057
        %v2093 = vpop.f32.mrb[0].mxu0
        %v2094 = vadd.f32 0.0, %v2093
        %v2095 = vpop.f32.mrb[0].mxu0
        %v2096 = vpop.f32.mrb[0].mxu0
        %v2097 = vadd.f32 0.0, %v2096
        %v2098 = vpop.f32.mrb[0].mxu0
        %2099 = vdwg.mxu0
        %2104 = vrot.lane.b32.xlu0 %v1554, 32
        %v2105 = vpop.permute.xlu0 %2104
        %2106 = vrot.lane.b32.xlu0 %v1557, 32
        %v2107 = vpop.permute.xlu0 %2106
        %2108 = vrot.lane.b32.xlu0 %v1602, 32
        %v2109 = vpop.permute.xlu0 %2108
        %2110 = vrot.lane.b32.xlu0 %v1605, 32
        %v2111 = vpop.permute.xlu0 %2110
        %2120 = vrot.lane.b32.xlu0 %v1801, 64
        %v2121 = vpop.permute.xlu0 %2120
        %2122 = vrot.lane.b32.xlu0 %v1804, 64
        %v2123 = vpop.permute.xlu0 %2122
        %2124 = vrot.lane.b32.xlu0 %v1848, 64
        %v2125 = vpop.permute.xlu0 %2124
        %2126 = vrot.lane.b32.xlu0 %v1851, 64
        %v2127 = vpop.permute.xlu0 %2126
        %2136 = vrot.lane.b32.xlu0 %v2047, 96
        %v2137 = vpop.permute.xlu0 %2136
        %2138 = vrot.lane.b32.xlu0 %v2050, 96
        %v2139 = vpop.permute.xlu0 %2138
        %2140 = vrot.lane.b32.xlu0 %v2094, 96
        %v2141 = vpop.permute.xlu0 %2140
        %2142 = vrot.lane.b32.xlu0 %v2097, 96
        %v2143 = vpop.permute.xlu0 %2142
        %v2148 = vsel %vm1122, %v1306, %v2105
        %v2149 = vsel %vm1122, %v1309, %v2107
        %v2150 = vsel %vm1122, %v1350, %v2109
        %v2151 = vsel %vm1122, %v1353, %v2111
        %vm2152 = vcmask 523264
        %v2153 = vsel %vm2152, %v2148, %v2121
        %v2154 = vsel %vm2152, %v2149, %v2123
        %v2155 = vsel %vm2152, %v2150, %v2125
        %v2156 = vsel %vm2152, %v2151, %v2127
        %vm2157 = vcmask 785408
        %v2158 = vsel %vm2157, %v2153, %v2137
        %v2159 = vsel %vm2157, %v2154, %v2139
        %v2160 = vsel %vm2157, %v2155, %v2141
        %v2161 = vsel %vm2157, %v2156, %v2143
        %v2162 = vld [vmem:[#allocation8] sm:$0xf]
        %v2163 = vld [vmem:[#allocation8 + $0x4] sm:$0xf]
        %v2164 = vld [vmem:[#allocation8 + $0x8] sm:$0xf]
        %v2165 = vld [vmem:[#allocation8 + $0xc] sm:$0xf]
        %v2166 = vld [vmem:[#allocation8 + $0x10] sm:$0xf]
        %v2167 = vld [vmem:[#allocation8 + $0x14] sm:$0xf]
        %v2168 = vld [vmem:[#allocation8 + $0x18] sm:$0xf]
        %v2169 = vld [vmem:[#allocation8 + $0x1c] sm:$0xf]
        %v2170 = vld [vmem:[#allocation8 + $0x20] sm:$0xf]
        %v2171 = vld [vmem:[#allocation8 + $0x24] sm:$0xf]
        %v2172 = vld [vmem:[#allocation8 + $0x28] sm:$0xf]
        %v2173 = vld [vmem:[#allocation8 + $0x2c] sm:$0xf]
        %v2174 = vld [vmem:[#allocation8 + $0x30] sm:$0xf]
        %v2175 = vld [vmem:[#allocation8 + $0x34] sm:$0xf]
        %v2176 = vld [vmem:[#allocation8 + $0x38] sm:$0xf]
        %v2177 = vld [vmem:[#allocation8 + $0x3c] sm:$0xf]
        %v2178 = vpack.c.bf16 %v2159, %v2158
        %v2179 = vpack.c.bf16 %v2161, %v2160
        %v2180 = vld [vmem:[%s6] sm:$0x1]
        %v2182 = vlaneseq
        %v2183 = vshrl.u32 %v2182, 7
        %v2184 = vsub.s32 0, %v2183
        %v2185 = vrot.slane %v2180, %v2184
        %v2203 = vunpack.c.l.b16 %v2162
        %v2204 = vunpack.c.l.b16 %v2163
        %v2205 = vunpack.c.l.b16 %v2164
        %v2206 = vunpack.c.l.b16 %v2165
        %v2207 = vunpack.c.l.b16 %v2166
        %v2208 = vunpack.c.l.b16 %v2167
        %v2209 = vunpack.c.l.b16 %v2168
        %v2210 = vunpack.c.l.b16 %v2169
        %v2211 = vunpack.c.l.b16 %v2170
        %v2212 = vunpack.c.l.b16 %v2171
        %v2213 = vunpack.c.l.b16 %v2172
        %v2214 = vunpack.c.l.b16 %v2173
        %v2215 = vunpack.c.l.b16 %v2174
        %v2216 = vunpack.c.l.b16 %v2175
        %v2217 = vunpack.c.l.b16 %v2176
        %v2218 = vunpack.c.l.b16 %v2177
        %v2219 = vpack.c.b16 %v2204, %v2203
        %v2220 = vpack.c.b16 %v2206, %v2205
        %v2221 = vpack.c.b16 %v2208, %v2207
        %v2222 = vpack.c.b16 %v2210, %v2209
        %v2223 = vpack.c.b16 %v2212, %v2211
        %v2224 = vpack.c.b16 %v2214, %v2213
        %v2225 = vpack.c.b16 %v2216, %v2215
        %v2226 = vpack.c.b16 %v2218, %v2217
        %2235 = vmatprep.subr.bf16.mxu0 0
        %2236 = vmatpush1.bf16.msra.mxu0 %v2219
        %2237 = vmatprep.subr.bf16.mxu0 0
        %2238 = vmatpush1.bf16.msra.mxu0 %v2220
        %2239 = vmatprep.subr.bf16.mxu0 0
        %2240 = vmatpush1.bf16.msra.mxu0 %v2221
        %2241 = vmatprep.subr.bf16.mxu0 0
        %2242 = vmatpush1.bf16.msra.mxu0 %v2222
        %2243 = vmatprep.subr.bf16.mxu0 0
        %2244 = vmatpush1.bf16.msra.mxu0 %v2223
        %2245 = vmatprep.subr.bf16.mxu0 0
        %2246 = vmatpush1.bf16.msra.mxu0 %v2224
        %2247 = vmatprep.subr.bf16.mxu0 0
        %2248 = vmatpush1.bf16.msra.mxu0 %v2225
        %2249 = vmatprep.subr.bf16.mxu0 0
        %2250 = vmatpush1.bf16.msra.mxu0 %v2226
        %2251 = vmatprep.subr.bf16.mxu0 0
        %2252 = vmatpush1.bf16.msra.mxu0 0
        %2253 = vmatprep.subr.bf16.mxu0 0
        %2254 = vmatpush1.bf16.msra.mxu0 0
        %2255 = vmatprep.subr.bf16.mxu0 0
        %2256 = vmatpush1.bf16.msra.mxu0 0
        %2257 = vmatprep.subr.bf16.mxu0 0
        %2258 = vmatpush1.bf16.msra.mxu0 0
        %2259 = vmatprep.subr.bf16.mxu0 0
        %2260 = vmatpush1.bf16.msra.mxu0 0
        %2261 = vmatprep.subr.bf16.mxu0 0
        %2262 = vmatpush1.bf16.msra.mxu0 0
        %2263 = vmatprep.subr.bf16.mxu0 0
        %2264 = vmatpush1.bf16.msra.mxu0 0
        %2265 = vmatprep.subr.bf16.mxu0 0
        %2266 = vmatpush1.bf16.msra.mxu0 0
        %2267 = vmatprep.mubr.bf16.mxu0 0
        %2268 = vmatmul.mubr.bf16.gmra.mrb[0].mxu0 %v2178
        %v2269 = vpop.f32.mrb[0].mxu0
        %v2270 = vadd.f32 %v2185, %v2269
        %v2271 = vpop.f32.mrb[0].mxu0
        %v2272 = vpop.f32.mrb[0].mxu0
        %v2273 = vadd.f32 %v2185, %v2272
        %v2274 = vpop.f32.mrb[0].mxu0
        %2275 = vmatprep.mubr.bf16.mxu0 0
        %2276 = vmatmul.mubr.bf16.gmra.mrb[0].mxu0 %v2179
        %v2277 = vpop.f32.mrb[0].mxu0
        %v2278 = vadd.f32 %v2185, %v2277
        %v2279 = vpop.f32.mrb[0].mxu0
        %v2280 = vpop.f32.mrb[0].mxu0
        %v2281 = vadd.f32 %v2185, %v2280
        %v2282 = vpop.f32.mrb[0].mxu0
        %2283 = vdwg.mxu0
        %s2284 = sld [smem:[#allocation21]]
        %v2285 = vmax.f32 %v2270, 0.0
        %v2286 = vmax.f32 %v2273, 0.0
        %v2287 = vmax.f32 %v2278, 0.0
        %v2288 = vmax.f32 %v2281, 0.0
        %v2289 = vld [vmem:[#allocation12] sm:$0xff]
        %v2290 = vld [vmem:[#allocation12 + $0x8] sm:$0xf]
        %v2291 = vld [vmem:[#allocation12 + $0xc] sm:$0xff]
        %v2292 = vld [vmem:[#allocation12 + $0x14] sm:$0xf]
        %v2293 = vld [vmem:[#allocation12 + $0x18] sm:$0xff]
        %v2294 = vld [vmem:[#allocation12 + $0x20] sm:$0xf]
        %v2295 = vld [vmem:[#allocation12 + $0x24] sm:$0xff]
        %v2296 = vld [vmem:[#allocation12 + $0x2c] sm:$0xf]
        %v2297 = vld [vmem:[#allocation12 + $0x30] sm:$0xff]
        %v2298 = vld [vmem:[#allocation12 + $0x38] sm:$0xf]
        %v2299 = vld [vmem:[#allocation12 + $0x3c] sm:$0xff]
        %v2300 = vld [vmem:[#allocation12 + $0x44] sm:$0xf]
        %v2301 = vld [vmem:[#allocation12 + $0x48] sm:$0xff]
        %v2302 = vld [vmem:[#allocation12 + $0x50] sm:$0xf]
        %v2303 = vld [vmem:[#allocation12 + $0x54] sm:$0xff]
        %v2304 = vld [vmem:[#allocation12 + $0x5c] sm:$0xf]
        %v2305 = vld [vmem:[#allocation12 + $0x60] sm:$0xff]
        %v2306 = vld [vmem:[#allocation12 + $0x68] sm:$0xf]
        %v2307 = vld [vmem:[#allocation12 + $0x6c] sm:$0xff]
        %v2308 = vld [vmem:[#allocation12 + $0x74] sm:$0xf]
        %v2309 = vld [vmem:[#allocation12 + $0x78] sm:$0xff]
        %v2310 = vld [vmem:[#allocation12 + $0x80] sm:$0xf]
        %v2311 = vld [vmem:[#allocation12 + $0x84] sm:$0xff]
        %v2312 = vld [vmem:[#allocation12 + $0x8c] sm:$0xf]
        %v2313 = vld [vmem:[#allocation12 + $0x90] sm:$0xff]
        %v2314 = vld [vmem:[#allocation12 + $0x98] sm:$0xf]
        %v2315 = vld [vmem:[#allocation12 + $0x9c] sm:$0xff]
        %v2316 = vld [vmem:[#allocation12 + $0xa4] sm:$0xf]
        %v2317 = vld [vmem:[#allocation12 + $0xa8] sm:$0xff]
        %v2318 = vld [vmem:[#allocation12 + $0xb0] sm:$0xf]
        %v2319 = vld [vmem:[#allocation12 + $0xb4] sm:$0xff]
        %v2320 = vld [vmem:[#allocation12 + $0xbc] sm:$0xf]
        %v2321 = vpack.c.bf16 %v2286, %v2285
        %v2322 = vpack.c.bf16 %v2288, %v2287
        %v2355 = vunpack.c.l.b16 %v2289
        %v2356 = vunpack.c.h.b16 %v2289
        %v2357 = vunpack.c.l.b16 %v2290
        %v2358 = vunpack.c.l.b16 %v2291
        %v2359 = vunpack.c.h.b16 %v2291
        %v2360 = vunpack.c.l.b16 %v2292
        %v2361 = vunpack.c.l.b16 %v2293
        %v2362 = vunpack.c.h.b16 %v2293
        %v2363 = vunpack.c.l.b16 %v2294
        %v2364 = vunpack.c.l.b16 %v2295
        %v2365 = vunpack.c.h.b16 %v2295
        %v2366 = vunpack.c.l.b16 %v2296
        %v2367 = vunpack.c.l.b16 %v2297
        %v2368 = vunpack.c.h.b16 %v2297
        %v2369 = vunpack.c.l.b16 %v2298
        %v2370 = vunpack.c.l.b16 %v2299
        %v2371 = vunpack.c.h.b16 %v2299
        %v2372 = vunpack.c.l.b16 %v2300
        %v2373 = vunpack.c.l.b16 %v2301
        %v2374 = vunpack.c.h.b16 %v2301
        %v2375 = vunpack.c.l.b16 %v2302
        %v2376 = vunpack.c.l.b16 %v2303
        %v2377 = vunpack.c.h.b16 %v2303
        %v2378 = vunpack.c.l.b16 %v2304
        %v2379 = vunpack.c.l.b16 %v2305
        %v2380 = vunpack.c.h.b16 %v2305
        %v2381 = vunpack.c.l.b16 %v2306
        %v2382 = vunpack.c.l.b16 %v2307
        %v2383 = vunpack.c.h.b16 %v2307
        %v2384 = vunpack.c.l.b16 %v2308
        %v2385 = vunpack.c.l.b16 %v2309
        %v2386 = vunpack.c.h.b16 %v2309
        %v2387 = vunpack.c.l.b16 %v2310
        %v2388 = vunpack.c.l.b16 %v2311
        %v2389 = vunpack.c.h.b16 %v2311
        %v2390 = vunpack.c.l.b16 %v2312
        %v2391 = vunpack.c.l.b16 %v2313
        %v2392 = vunpack.c.h.b16 %v2313
        %v2393 = vunpack.c.l.b16 %v2314
        %v2394 = vunpack.c.l.b16 %v2315
        %v2395 = vunpack.c.h.b16 %v2315
        %v2396 = vunpack.c.l.b16 %v2316
        %v2397 = vunpack.c.l.b16 %v2317
        %v2398 = vunpack.c.h.b16 %v2317
        %v2399 = vunpack.c.l.b16 %v2318
        %v2400 = vunpack.c.l.b16 %v2319
        %v2401 = vunpack.c.h.b16 %v2319
        %v2402 = vunpack.c.l.b16 %v2320
        %v2403 = vpack.c.b16 %v2358, %v2355
        %v2404 = vpack.c.b16 %v2359, %v2356
        %v2405 = vpack.c.b16 %v2360, %v2357
        %v2406 = vpack.c.b16 %v2364, %v2361
        %v2407 = vpack.c.b16 %v2365, %v2362
        %v2408 = vpack.c.b16 %v2366, %v2363
        %v2409 = vpack.c.b16 %v2370, %v2367
        %v2410 = vpack.c.b16 %v2371, %v2368
        %v2411 = vpack.c.b16 %v2372, %v2369
        %v2412 = vpack.c.b16 %v2376, %v2373
        %v2413 = vpack.c.b16 %v2377, %v2374
        %v2414 = vpack.c.b16 %v2378, %v2375
        %v2415 = vpack.c.b16 %v2382, %v2379
        %v2416 = vpack.c.b16 %v2383, %v2380
        %v2417 = vpack.c.b16 %v2384, %v2381
        %v2418 = vpack.c.b16 %v2388, %v2385
        %v2419 = vpack.c.b16 %v2389, %v2386
        %v2420 = vpack.c.b16 %v2390, %v2387
        %v2421 = vpack.c.b16 %v2394, %v2391
        %v2422 = vpack.c.b16 %v2395, %v2392
        %v2423 = vpack.c.b16 %v2396, %v2393
        %v2424 = vpack.c.b16 %v2400, %v2397
        %v2425 = vpack.c.b16 %v2401, %v2398
        %v2426 = vpack.c.b16 %v2402, %v2399
        %2451 = vmatprep.subr.bf16.mxu0 %v2404
        %2452 = vmatpush1.bf16.msra.mxu0 %v2403
        %2453 = vmatprep.subr.bf16.mxu0 %v2407
        %2454 = vmatpush1.bf16.msra.mxu0 %v2406
        %2455 = vmatprep.subr.bf16.mxu0 %v2410
        %2456 = vmatpush1.bf16.msra.mxu0 %v2409
        %2457 = vmatprep.subr.bf16.mxu0 %v2413
        %2458 = vmatpush1.bf16.msra.mxu0 %v2412
        %2459 = vmatprep.subr.bf16.mxu0 %v2416
        %2460 = vmatpush1.bf16.msra.mxu0 %v2415
        %2461 = vmatprep.subr.bf16.mxu0 %v2419
        %2462 = vmatpush1.bf16.msra.mxu0 %v2418
        %2463 = vmatprep.subr.bf16.mxu0 %v2422
        %2464 = vmatpush1.bf16.msra.mxu0 %v2421
        %2465 = vmatprep.subr.bf16.mxu0 %v2425
        %2466 = vmatpush1.bf16.msra.mxu0 %v2424
        %2467 = vmatprep.subr.bf16.mxu0 0
        %2468 = vmatpush1.bf16.msra.mxu0 0
        %2469 = vmatprep.subr.bf16.mxu0 0
        %2470 = vmatpush1.bf16.msra.mxu0 0
        %2471 = vmatprep.subr.bf16.mxu0 0
        %2472 = vmatpush1.bf16.msra.mxu0 0
        %2473 = vmatprep.subr.bf16.mxu0 0
        %2474 = vmatpush1.bf16.msra.mxu0 0
        %2475 = vmatprep.subr.bf16.mxu0 0
        %2476 = vmatpush1.bf16.msra.mxu0 0
        %2477 = vmatprep.subr.bf16.mxu0 0
        %2478 = vmatpush1.bf16.msra.mxu0 0
        %2479 = vmatprep.subr.bf16.mxu0 0
        %2480 = vmatpush1.bf16.msra.mxu0 0
        %2481 = vmatprep.subr.bf16.mxu0 0
        %2482 = vmatpush1.bf16.msra.mxu0 0
        %2483 = vmatprep.mubr.bf16.mxu0 0
        %2484 = vmatmul.mubr.bf16.gmra.mrb[0].mxu0 %v2321
        %v2485 = vpop.f32.mrb[0].mxu0
        %v2486 = vadd.f32 0.0, %v2485
        %v2487 = vpop.f32.mrb[0].mxu0
        %v2488 = vadd.f32 0.0, %v2487
        %v2489 = vpop.f32.mrb[0].mxu0
        %v2490 = vadd.f32 0.0, %v2489
        %v2491 = vpop.f32.mrb[0].mxu0
        %v2492 = vadd.f32 0.0, %v2491
        %2493 = vmatprep.mubr.bf16.mxu0 0
        %2494 = vmatmul.mubr.bf16.gmra.mrb[0].mxu0 %v2322
        %v2495 = vpop.f32.mrb[0].mxu0
        %v2496 = vadd.f32 0.0, %v2495
        %v2497 = vpop.f32.mrb[0].mxu0
        %v2498 = vadd.f32 0.0, %v2497
        %v2499 = vpop.f32.mrb[0].mxu0
        %v2500 = vadd.f32 0.0, %v2499
        %v2501 = vpop.f32.mrb[0].mxu0
        %v2502 = vadd.f32 0.0, %v2501
        %2503 = vdwg.mxu0
        %2504 = vmatprep.subr.bf16.mxu0 0
        %2505 = vmatpush1.bf16.msra.mxu0 %v2405
        %2506 = vmatprep.subr.bf16.mxu0 0
        %2507 = vmatpush1.bf16.msra.mxu0 %v2408
        %2508 = vmatprep.subr.bf16.mxu0 0
        %2509 = vmatpush1.bf16.msra.mxu0 %v2411
        %2510 = vmatprep.subr.bf16.mxu0 0
        %2511 = vmatpush1.bf16.msra.mxu0 %v2414
        %2512 = vmatprep.subr.bf16.mxu0 0
        %2513 = vmatpush1.bf16.msra.mxu0 %v2417
        %2514 = vmatprep.subr.bf16.mxu0 0
        %2515 = vmatpush1.bf16.msra.mxu0 %v2420
        %2516 = vmatprep.subr.bf16.mxu0 0
        %2517 = vmatpush1.bf16.msra.mxu0 %v2423
        %2518 = vmatprep.subr.bf16.mxu0 0
        %2519 = vmatpush1.bf16.msra.mxu0 %v2426
        %2520 = vmatprep.subr.bf16.mxu0 0
        %2521 = vmatpush1.bf16.msra.mxu0 0
        %2522 = vmatprep.subr.bf16.mxu0 0
        %2523 = vmatpush1.bf16.msra.mxu0 0
        %2524 = vmatprep.subr.bf16.mxu0 0
        %2525 = vmatpush1.bf16.msra.mxu0 0
        %2526 = vmatprep.subr.bf16.mxu0 0
        %2527 = vmatpush1.bf16.msra.mxu0 0
        %2528 = vmatprep.subr.bf16.mxu0 0
        %2529 = vmatpush1.bf16.msra.mxu0 0
        %2530 = vmatprep.subr.bf16.mxu0 0
        %2531 = vmatpush1.bf16.msra.mxu0 0
        %2532 = vmatprep.subr.bf16.mxu0 0
        %2533 = vmatpush1.bf16.msra.mxu0 0
        %2534 = vmatprep.subr.bf16.mxu0 0
        %2535 = vmatpush1.bf16.msra.mxu0 0
        %2536 = vmatprep.mubr.bf16.mxu0 0
        %2537 = vmatmul.mubr.bf16.gmra.mrb[0].mxu0 %v2321
        %v2538 = vpop.f32.mrb[0].mxu0
        %v2539 = vadd.f32 0.0, %v2538
        %v2540 = vpop.f32.mrb[0].mxu0
        %v2541 = vpop.f32.mrb[0].mxu0
        %v2542 = vadd.f32 0.0, %v2541
        %v2543 = vpop.f32.mrb[0].mxu0
        %2544 = vmatprep.mubr.bf16.mxu0 0
        %2545 = vmatmul.mubr.bf16.gmra.mrb[0].mxu0 %v2322
        %v2546 = vpop.f32.mrb[0].mxu0
        %v2547 = vadd.f32 0.0, %v2546
        %v2548 = vpop.f32.mrb[0].mxu0
        %v2549 = vpop.f32.mrb[0].mxu0
        %v2550 = vadd.f32 0.0, %v2549
        %v2551 = vpop.f32.mrb[0].mxu0
        %2552 = vdwg.mxu0
        %v2553 = vld [vmem:[#allocation14] sm:$0xff]
        %v2554 = vld [vmem:[#allocation14 + $0x8] sm:$0xff]
        %v2555 = vld [vmem:[#allocation14 + $0x10] sm:$0xff]
        %v2556 = vld [vmem:[#allocation14 + $0x18] sm:$0xff]
        %v2557 = vld [vmem:[#allocation14 + $0x20] sm:$0xff]
        %v2558 = vld [vmem:[#allocation14 + $0x28] sm:$0xff]
        %v2559 = vld [vmem:[#allocation14 + $0x30] sm:$0xff]
        %v2560 = vld [vmem:[#allocation14 + $0x38] sm:$0xff]
        %v2561 = vld [vmem:[#allocation14 + $0x40] sm:$0xff]
        %v2562 = vld [vmem:[#allocation14 + $0x48] sm:$0xff]
        %v2563 = vld [vmem:[#allocation14 + $0x50] sm:$0xff]
        %v2564 = vld [vmem:[#allocation14 + $0x58] sm:$0xff]
        %v2565 = vld [vmem:[#allocation14 + $0x60] sm:$0xff]
        %v2566 = vld [vmem:[#allocation14 + $0x68] sm:$0xff]
        %v2567 = vld [vmem:[#allocation14 + $0x70] sm:$0xff]
        %v2568 = vld [vmem:[#allocation14 + $0x78] sm:$0xff]
        %v2569 = vpack.c.bf16 %v758, %v757
        %v2570 = vpack.c.bf16 %v760, %v759
        %v2587 = vunpack.c.l.b16 %v2553
        %v2588 = vunpack.c.h.b16 %v2553
        %v2589 = vunpack.c.l.b16 %v2554
        %v2590 = vunpack.c.h.b16 %v2554
        %v2591 = vunpack.c.l.b16 %v2555
        %v2592 = vunpack.c.h.b16 %v2555
        %v2593 = vunpack.c.l.b16 %v2556
        %v2594 = vunpack.c.h.b16 %v2556
        %v2595 = vunpack.c.l.b16 %v2557
        %v2596 = vunpack.c.h.b16 %v2557
        %v2597 = vunpack.c.l.b16 %v2558
        %v2598 = vunpack.c.h.b16 %v2558
        %v2599 = vunpack.c.l.b16 %v2559
        %v2600 = vunpack.c.h.b16 %v2559
        %v2601 = vunpack.c.l.b16 %v2560
        %v2602 = vunpack.c.h.b16 %v2560
        %v2603 = vunpack.c.l.b16 %v2561
        %v2604 = vunpack.c.h.b16 %v2561
        %v2605 = vunpack.c.l.b16 %v2562
        %v2606 = vunpack.c.h.b16 %v2562
        %v2607 = vunpack.c.l.b16 %v2563
        %v2608 = vunpack.c.h.b16 %v2563
        %v2609 = vunpack.c.l.b16 %v2564
        %v2610 = vunpack.c.h.b16 %v2564
        %v2611 = vunpack.c.l.b16 %v2565
        %v2612 = vunpack.c.h.b16 %v2565
        %v2613 = vunpack.c.l.b16 %v2566
        %v2614 = vunpack.c.h.b16 %v2566
        %v2615 = vunpack.c.l.b16 %v2567
        %v2616 = vunpack.c.h.b16 %v2567
        %v2617 = vunpack.c.l.b16 %v2568
        %v2618 = vunpack.c.h.b16 %v2568
        %v2619 = vpack.c.b16 %v2589, %v2587
        %v2620 = vpack.c.b16 %v2590, %v2588
        %v2621 = vpack.c.b16 %v2593, %v2591
        %v2622 = vpack.c.b16 %v2594, %v2592
        %v2623 = vpack.c.b16 %v2597, %v2595
        %v2624 = vpack.c.b16 %v2598, %v2596
        %v2625 = vpack.c.b16 %v2601, %v2599
        %v2626 = vpack.c.b16 %v2602, %v2600
        %v2627 = vpack.c.b16 %v2605, %v2603
        %v2628 = vpack.c.b16 %v2606, %v2604
        %v2629 = vpack.c.b16 %v2609, %v2607
        %v2630 = vpack.c.b16 %v2610, %v2608
        %v2631 = vpack.c.b16 %v2613, %v2611
        %v2632 = vpack.c.b16 %v2614, %v2612
        %v2633 = vpack.c.b16 %v2617, %v2615
        %v2634 = vpack.c.b16 %v2618, %v2616
        %2651 = vmatprep.subr.bf16.mxu0 %v2620
        %2652 = vmatpush1.bf16.msra.mxu0 %v2619
        %2653 = vmatprep.subr.bf16.mxu0 %v2622
        %2654 = vmatpush1.bf16.msra.mxu0 %v2621
        %2655 = vmatprep.subr.bf16.mxu0 %v2624
        %2656 = vmatpush1.bf16.msra.mxu0 %v2623
        %2657 = vmatprep.subr.bf16.mxu0 %v2626
        %2658 = vmatpush1.bf16.msra.mxu0 %v2625
        %2659 = vmatprep.subr.bf16.mxu0 %v2628
        %2660 = vmatpush1.bf16.msra.mxu0 %v2627
        %2661 = vmatprep.subr.bf16.mxu0 %v2630
        %2662 = vmatpush1.bf16.msra.mxu0 %v2629
        %2663 = vmatprep.subr.bf16.mxu0 %v2632
        %2664 = vmatpush1.bf16.msra.mxu0 %v2631
        %2665 = vmatprep.subr.bf16.mxu0 %v2634
        %2666 = vmatpush1.bf16.msra.mxu0 %v2633
        %2667 = vmatprep.subr.bf16.mxu0 0
        %2668 = vmatpush1.bf16.msra.mxu0 0
        %2669 = vmatprep.subr.bf16.mxu0 0
        %2670 = vmatpush1.bf16.msra.mxu0 0
        %2671 = vmatprep.subr.bf16.mxu0 0
        %2672 = vmatpush1.bf16.msra.mxu0 0
        %2673 = vmatprep.subr.bf16.mxu0 0
        %2674 = vmatpush1.bf16.msra.mxu0 0
        %2675 = vmatprep.subr.bf16.mxu0 0
        %2676 = vmatpush1.bf16.msra.mxu0 0
        %2677 = vmatprep.subr.bf16.mxu0 0
        %2678 = vmatpush1.bf16.msra.mxu0 0
        %2679 = vmatprep.subr.bf16.mxu0 0
        %2680 = vmatpush1.bf16.msra.mxu0 0
        %2681 = vmatprep.subr.bf16.mxu0 0
        %2682 = vmatpush1.bf16.msra.mxu0 0
        %2683 = vmatprep.mubr.bf16.mxu0 0
        %2684 = vmatmul.mubr.bf16.gmra.mrb[0].mxu0 %v2569
        %v2685 = vpop.f32.mrb[0].mxu0
        %v2686 = vadd.f32 0.0, %v2685
        %v2687 = vpop.f32.mrb[0].mxu0
        %v2688 = vadd.f32 0.0, %v2687
        %v2689 = vpop.f32.mrb[0].mxu0
        %v2690 = vadd.f32 0.0, %v2689
        %v2691 = vpop.f32.mrb[0].mxu0
        %v2692 = vadd.f32 0.0, %v2691
        %2693 = vmatprep.mubr.bf16.mxu0 0
        %2694 = vmatmul.mubr.bf16.gmra.mrb[0].mxu0 %v2570
        %v2695 = vpop.f32.mrb[0].mxu0
        %v2696 = vadd.f32 0.0, %v2695
        %v2697 = vpop.f32.mrb[0].mxu0
        %v2698 = vadd.f32 0.0, %v2697
        %v2699 = vpop.f32.mrb[0].mxu0
        %v2700 = vadd.f32 0.0, %v2699
        %v2701 = vpop.f32.mrb[0].mxu0
        %v2702 = vadd.f32 0.0, %v2701
        %2703 = vdwg.mxu0
        %v2704 = vadd.f32 %v2486, %v2686
        %v2705 = vadd.f32 %v2490, %v2690
        %v2706 = vadd.f32 %v2496, %v2696
        %v2707 = vadd.f32 %v2500, %v2700
        %v2708 = vxor.u32 %v2704, 2147483648
        %v2709 = vxor.u32 %v2705, 2147483648
        %v2710 = vxor.u32 %v2706, 2147483648
        %v2711 = vxor.u32 %v2707, 2147483648
        %v2712 = vmul.f32 %v2708, 1.442695
        %v2713 = vpow.pop %v2712
        %v2714 = vmul.f32 %v2709, 1.442695
        %v2715 = vpow.pop %v2714
        %v2716 = vmul.f32 %v2710, 1.442695
        %v2717 = vpow.pop %v2716
        %v2718 = vmul.f32 %v2711, 1.442695
        %v2719 = vpow.pop %v2718
        %v2720 = vadd.f32 %v2713, 1.0
        %v2721 = vadd.f32 %v2715, 1.0
        %v2722 = vadd.f32 %v2717, 1.0
        %v2723 = vadd.f32 %v2719, 1.0
        %v2724 = vrcp.pop %v2720
        %v2725 = vmul.f32 1.0, %v2724
        %v2726 = vrcp.pop %v2721
        %v2727 = vmul.f32 1.0, %v2726
        %v2728 = vrcp.pop %v2722
        %v2729 = vmul.f32 1.0, %v2728
        %v2730 = vrcp.pop %v2723
        %v2731 = vmul.f32 1.0, %v2730
        %v2732 = vadd.f32 %v2488, %v2688
        %v2733 = vadd.f32 %v2492, %v2692
        %v2734 = vadd.f32 %v2498, %v2698
        %v2735 = vadd.f32 %v2502, %v2702
        %v2736 = vstv %s2284
        %v2737 = vsub.f32 %v2732, %v2736
        %v2738 = vsub.f32 %v2733, %v2736
        %v2739 = vsub.f32 %v2734, %v2736
        %v2740 = vsub.f32 %v2735, %v2736
        %v2741 = vxor.u32 %v2737, 2147483648
        %v2742 = vxor.u32 %v2738, 2147483648
        %v2743 = vxor.u32 %v2739, 2147483648
        %v2744 = vxor.u32 %v2740, 2147483648
        %v2745 = vmul.f32 %v2741, 1.442695
        %v2746 = vpow.pop %v2745
        %v2747 = vmul.f32 %v2742, 1.442695
        %v2748 = vpow.pop %v2747
        %v2749 = vmul.f32 %v2743, 1.442695
        %v2750 = vpow.pop %v2749
        %v2751 = vmul.f32 %v2744, 1.442695
        %v2752 = vpow.pop %v2751
        %v2753 = vadd.f32 %v2746, 1.0
        %v2754 = vadd.f32 %v2748, 1.0
        %v2755 = vadd.f32 %v2750, 1.0
        %v2756 = vadd.f32 %v2752, 1.0
        %v2757 = vrcp.pop %v2753
        %v2758 = vmul.f32 1.0, %v2757
        %v2759 = vrcp.pop %v2754
        %v2760 = vmul.f32 1.0, %v2759
        %v2761 = vrcp.pop %v2755
        %v2762 = vmul.f32 1.0, %v2761
        %v2763 = vrcp.pop %v2756
        %v2764 = vmul.f32 1.0, %v2763
        %v2765 = vmul.f32 %v2725, %v757
        %v2766 = vmul.f32 %v2727, %v758
        %v2767 = vmul.f32 %v2729, %v759
        %v2768 = vmul.f32 %v2731, %v760
        %v2769 = vld [vmem:[#allocation15] sm:$0xf]
        %v2770 = vld [vmem:[#allocation15 + $0x4] sm:$0xf]
        %v2771 = vld [vmem:[#allocation15 + $0x8] sm:$0xf]
        %v2772 = vld [vmem:[#allocation15 + $0xc] sm:$0xf]
        %v2773 = vld [vmem:[#allocation15 + $0x10] sm:$0xf]
        %v2774 = vld [vmem:[#allocation15 + $0x14] sm:$0xf]
        %v2775 = vld [vmem:[#allocation15 + $0x18] sm:$0xf]
        %v2776 = vld [vmem:[#allocation15 + $0x1c] sm:$0xf]
        %v2777 = vld [vmem:[#allocation15 + $0x20] sm:$0xf]
        %v2778 = vld [vmem:[#allocation15 + $0x24] sm:$0xf]
        %v2779 = vld [vmem:[#allocation15 + $0x28] sm:$0xf]
        %v2780 = vld [vmem:[#allocation15 + $0x2c] sm:$0xf]
        %v2781 = vld [vmem:[#allocation15 + $0x30] sm:$0xf]
        %v2782 = vld [vmem:[#allocation15 + $0x34] sm:$0xf]
        %v2783 = vld [vmem:[#allocation15 + $0x38] sm:$0xf]
        %v2784 = vld [vmem:[#allocation15 + $0x3c] sm:$0xf]
        %v2785 = vpack.c.bf16 %v2766, %v2765
        %v2786 = vpack.c.bf16 %v2768, %v2767
        %v2803 = vunpack.c.l.b16 %v2769
        %v2804 = vunpack.c.l.b16 %v2770
        %v2805 = vunpack.c.l.b16 %v2771
        %v2806 = vunpack.c.l.b16 %v2772
        %v2807 = vunpack.c.l.b16 %v2773
        %v2808 = vunpack.c.l.b16 %v2774
        %v2809 = vunpack.c.l.b16 %v2775
        %v2810 = vunpack.c.l.b16 %v2776
        %v2811 = vunpack.c.l.b16 %v2777
        %v2812 = vunpack.c.l.b16 %v2778
        %v2813 = vunpack.c.l.b16 %v2779
        %v2814 = vunpack.c.l.b16 %v2780
        %v2815 = vunpack.c.l.b16 %v2781
        %v2816 = vunpack.c.l.b16 %v2782
        %v2817 = vunpack.c.l.b16 %v2783
        %v2818 = vunpack.c.l.b16 %v2784
        %v2819 = vpack.c.b16 %v2804, %v2803
        %v2820 = vpack.c.b16 %v2806, %v2805
        %v2821 = vpack.c.b16 %v2808, %v2807
        %v2822 = vpack.c.b16 %v2810, %v2809
        %v2823 = vpack.c.b16 %v2812, %v2811
        %v2824 = vpack.c.b16 %v2814, %v2813
        %v2825 = vpack.c.b16 %v2816, %v2815
        %v2826 = vpack.c.b16 %v2818, %v2817
        %2835 = vmatprep.subr.bf16.mxu0 0
        %2836 = vmatpush1.bf16.msra.mxu0 %v2819
        %2837 = vmatprep.subr.bf16.mxu0 0
        %2838 = vmatpush1.bf16.msra.mxu0 %v2820
        %2839 = vmatprep.subr.bf16.mxu0 0
        %2840 = vmatpush1.bf16.msra.mxu0 %v2821
        %2841 = vmatprep.subr.bf16.mxu0 0
        %2842 = vmatpush1.bf16.msra.mxu0 %v2822
        %2843 = vmatprep.subr.bf16.mxu0 0
        %2844 = vmatpush1.bf16.msra.mxu0 %v2823
        %2845 = vmatprep.subr.bf16.mxu0 0
        %2846 = vmatpush1.bf16.msra.mxu0 %v2824
        %2847 = vmatprep.subr.bf16.mxu0 0
        %2848 = vmatpush1.bf16.msra.mxu0 %v2825
        %2849 = vmatprep.subr.bf16.mxu0 0
        %2850 = vmatpush1.bf16.msra.mxu0 %v2826
        %2851 = vmatprep.subr.bf16.mxu0 0
        %2852 = vmatpush1.bf16.msra.mxu0 0
        %2853 = vmatprep.subr.bf16.mxu0 0
        %2854 = vmatpush1.bf16.msra.mxu0 0
        %2855 = vmatprep.subr.bf16.mxu0 0
        %2856 = vmatpush1.bf16.msra.mxu0 0
        %2857 = vmatprep.subr.bf16.mxu0 0
        %2858 = vmatpush1.bf16.msra.mxu0 0
        %2859 = vmatprep.subr.bf16.mxu0 0
        %2860 = vmatpush1.bf16.msra.mxu0 0
        %2861 = vmatprep.subr.bf16.mxu0 0
        %2862 = vmatpush1.bf16.msra.mxu0 0
        %2863 = vmatprep.subr.bf16.mxu0 0
        %2864 = vmatpush1.bf16.msra.mxu0 0
        %2865 = vmatprep.subr.bf16.mxu0 0
        %2866 = vmatpush1.bf16.msra.mxu0 0
        %2867 = vmatprep.mubr.bf16.mxu0 0
        %2868 = vmatmul.mubr.bf16.gmra.mrb[0].mxu0 %v2785
        %v2869 = vpop.f32.mrb[0].mxu0
        %v2870 = vadd.f32 0.0, %v2869
        %v2871 = vpop.f32.mrb[0].mxu0
        %v2872 = vpop.f32.mrb[0].mxu0
        %v2873 = vadd.f32 0.0, %v2872
        %v2874 = vpop.f32.mrb[0].mxu0
        %2875 = vmatprep.mubr.bf16.mxu0 0
        %2876 = vmatmul.mubr.bf16.gmra.mrb[0].mxu0 %v2786
        %v2877 = vpop.f32.mrb[0].mxu0
        %v2878 = vadd.f32 0.0, %v2877
        %v2879 = vpop.f32.mrb[0].mxu0
        %v2880 = vpop.f32.mrb[0].mxu0
        %v2881 = vadd.f32 0.0, %v2880
        %v2882 = vpop.f32.mrb[0].mxu0
        %2883 = vdwg.mxu0
        %v2884 = vadd.f32 %v2539, %v2870
        %v2885 = vadd.f32 %v2542, %v2873
        %v2886 = vadd.f32 %v2547, %v2878
        %v2887 = vadd.f32 %v2550, %v2881
        %v2888 = vtanh.pop %v2884
        %v2889 = vtanh.pop %v2885
        %v2890 = vtanh.pop %v2886
        %v2891 = vtanh.pop %v2887
        %v2892 = vsub.f32 1.0, %v2758
        %v2893 = vsub.f32 1.0, %v2760
        %v2894 = vsub.f32 1.0, %v2762
        %v2895 = vsub.f32 1.0, %v2764
        %v2896 = vmul.f32 %v2892, %v757
        %v2897 = vmul.f32 %v2893, %v758
        %v2898 = vmul.f32 %v2894, %v759
        %v2899 = vmul.f32 %v2895, %v760
        %v2900 = vmul.f32 %v2758, %v2888
        %v2901 = vmul.f32 %v2760, %v2889
        %v2902 = vmul.f32 %v2762, %v2890
        %v2903 = vmul.f32 %v2764, %v2891
        %v2904 = vadd.f32 %v2896, %v2900
        %v2905 = vadd.f32 %v2897, %v2901
        %v2906 = vadd.f32 %v2898, %v2902
        %v2907 = vadd.f32 %v2899, %v2903
        %2908 = vadd.xlane.f32.xlu0 %v2904
        %v2909 = vpop.xlane.xlu0 %2908
        %2910 = vadd.xlane.f32.xlu0 %v2905
        %v2911 = vpop.xlane.xlu0 %2910
        %2912 = vadd.xlane.f32.xlu0 %v2906
        %v2913 = vpop.xlane.xlu0 %2912
        %2914 = vadd.xlane.f32.xlu0 %v2907
        %v2915 = vpop.xlane.xlu0 %2914
        %v2916 = vmul.f32 %v2909, %v771
        %v2917 = vmul.f32 %v2911, %v771
        %v2918 = vmul.f32 %v2913, %v771
        %v2919 = vmul.f32 %v2915, %v771
        %v2920 = vsub.f32 %v2904, %v2916
        %v2921 = vsub.f32 %v2905, %v2917
        %v2922 = vsub.f32 %v2906, %v2918
        %v2923 = vsub.f32 %v2907, %v2919
        %v2924 = vmul.f32 %v2920, %v2920
        %v2925 = vmul.f32 %v2921, %v2921
        %v2926 = vmul.f32 %v2922, %v2922
        %v2927 = vmul.f32 %v2923, %v2923
        %2928 = vadd.xlane.f32.xlu0 %v2924
        %v2929 = vpop.xlane.xlu0 %2928
        %2930 = vadd.xlane.f32.xlu0 %v2925
        %v2931 = vpop.xlane.xlu0 %2930
        %2932 = vadd.xlane.f32.xlu0 %v2926
        %v2933 = vpop.xlane.xlu0 %2932
        %2934 = vadd.xlane.f32.xlu0 %v2927
        %v2935 = vpop.xlane.xlu0 %2934
        %v2936 = vmul.f32 %v2929, %v771
        %v2937 = vmul.f32 %v2931, %v771
        %v2938 = vmul.f32 %v2933, %v771
        %v2939 = vmul.f32 %v2935, %v771
        %v2940 = vadd.f32 %v2936, 1e-05
        %v2941 = vadd.f32 %v2937, 1e-05
        %v2942 = vadd.f32 %v2938, 1e-05
        %v2943 = vadd.f32 %v2939, 1e-05
        %v2944 = vrsqrt.pop %v2940
        %v2945 = vrsqrt.pop %v2941
        %v2946 = vrsqrt.pop %v2942
        %v2947 = vrsqrt.pop %v2943
        %v2948 = vmul.f32 %v2920, %v2944
        %v2949 = vmul.f32 %v2921, %v2945
        %v2950 = vmul.f32 %v2922, %v2946
        %v2951 = vmul.f32 %v2923, %v2947
        %v2952 = vmul.f32 %v2948, %v812
        %v2953 = vmul.f32 %v2949, %v812
        %v2954 = vmul.f32 %v2950, %v812
        %v2955 = vmul.f32 %v2951, %v812
        %v2956 = vadd.f32 %v2952, %v822
        %v2957 = vadd.f32 %v2953, %v822
        %v2958 = vadd.f32 %v2954, %v822
        %v2959 = vadd.f32 %v2955, %v822
        %v2960 = vld [vmem:[#allocation9] sm:$0xff]
        %v2961 = vld [vmem:[#allocation9 + $0x8] sm:$0xff]
        %v2962 = vld [vmem:[#allocation9 + $0x10] sm:$0xff]
        %v2963 = vld [vmem:[#allocation9 + $0x18] sm:$0xff]
        %v2964 = vld [vmem:[#allocation9 + $0x20] sm:$0xff]
        %v2965 = vld [vmem:[#allocation9 + $0x28] sm:$0xff]
        %v2966 = vld [vmem:[#allocation9 + $0x30] sm:$0xff]
        %v2967 = vld [vmem:[#allocation9 + $0x38] sm:$0xff]
        %v2968 = vld [vmem:[#allocation9 + $0x40] sm:$0xff]
        %v2969 = vld [vmem:[#allocation9 + $0x48] sm:$0xff]
        %v2970 = vld [vmem:[#allocation9 + $0x50] sm:$0xff]
        %v2971 = vld [vmem:[#allocation9 + $0x58] sm:$0xff]
        %v2972 = vld [vmem:[#allocation9 + $0x60] sm:$0xff]
        %v2973 = vld [vmem:[#allocation9 + $0x68] sm:$0xff]
        %v2974 = vld [vmem:[#allocation9 + $0x70] sm:$0xff]
        %v2975 = vld [vmem:[#allocation9 + $0x78] sm:$0xff]
        %v2976 = vpack.c.bf16 %v2957, %v2956
        %v2977 = vpack.c.bf16 %v2959, %v2958
        %v2978 = vld [vmem:[%s8] sm:$0x3]
        %v2980 = vlaneseq
        %v2981 = vshrl.u32 %v2980, 7
        %v2982 = vsub.s32 0, %v2981
        %v2983 = vrot.slane %v2978, %v2982
        %v2984 = vlaneseq
        %v2985 = vshrl.u32 %v2984, 7
        %v2986 = vsub.s32 1, %v2985
        %v2987 = vrot.slane %v2978, %v2986
        %v3006 = vunpack.c.l.b16 %v2960
        %v3007 = vunpack.c.h.b16 %v2960
        %v3008 = vunpack.c.l.b16 %v2961
        %v3009 = vunpack.c.h.b16 %v2961
        %v3010 = vunpack.c.l.b16 %v2962
        %v3011 = vunpack.c.h.b16 %v2962
        %v3012 = vunpack.c.l.b16 %v2963
        %v3013 = vunpack.c.h.b16 %v2963
        %v3014 = vunpack.c.l.b16 %v2964
        %v3015 = vunpack.c.h.b16 %v2964
        %v3016 = vunpack.c.l.b16 %v2965
        %v3017 = vunpack.c.h.b16 %v2965
        %v3018 = vunpack.c.l.b16 %v2966
        %v3019 = vunpack.c.h.b16 %v2966
        %v3020 = vunpack.c.l.b16 %v2967
        %v3021 = vunpack.c.h.b16 %v2967
        %v3022 = vunpack.c.l.b16 %v2968
        %v3023 = vunpack.c.h.b16 %v2968
        %v3024 = vunpack.c.l.b16 %v2969
        %v3025 = vunpack.c.h.b16 %v2969
        %v3026 = vunpack.c.l.b16 %v2970
        %v3027 = vunpack.c.h.b16 %v2970
        %v3028 = vunpack.c.l.b16 %v2971
        %v3029 = vunpack.c.h.b16 %v2971
        %v3030 = vunpack.c.l.b16 %v2972
        %v3031 = vunpack.c.h.b16 %v2972
        %v3032 = vunpack.c.l.b16 %v2973
        %v3033 = vunpack.c.h.b16 %v2973
        %v3034 = vunpack.c.l.b16 %v2974
        %v3035 = vunpack.c.h.b16 %v2974
        %v3036 = vunpack.c.l.b16 %v2975
        %v3037 = vunpack.c.h.b16 %v2975
        %v3038 = vpack.c.b16 %v3008, %v3006
        %v3039 = vpack.c.b16 %v3009, %v3007
        %v3040 = vpack.c.b16 %v3012, %v3010
        %v3041 = vpack.c.b16 %v3013, %v3011
        %v3042 = vpack.c.b16 %v3016, %v3014
        %v3043 = vpack.c.b16 %v3017, %v3015
        %v3044 = vpack.c.b16 %v3020, %v3018
        %v3045 = vpack.c.b16 %v3021, %v3019
        %v3046 = vpack.c.b16 %v3024, %v3022
        %v3047 = vpack.c.b16 %v3025, %v3023
        %v3048 = vpack.c.b16 %v3028, %v3026
        %v3049 = vpack.c.b16 %v3029, %v3027
        %v3050 = vpack.c.b16 %v3032, %v3030
        %v3051 = vpack.c.b16 %v3033, %v3031
        %v3052 = vpack.c.b16 %v3036, %v3034
        %v3053 = vpack.c.b16 %v3037, %v3035
        %3070 = vmatprep.subr.bf16.mxu0 %v3039
        %3071 = vmatpush1.bf16.msra.mxu0 %v3038
        %3072 = vmatprep.subr.bf16.mxu0 %v3041
        %3073 = vmatpush1.bf16.msra.mxu0 %v3040
        %3074 = vmatprep.subr.bf16.mxu0 %v3043
        %3075 = vmatpush1.bf16.msra.mxu0 %v3042
        %3076 = vmatprep.subr.bf16.mxu0 %v3045
        %3077 = vmatpush1.bf16.msra.mxu0 %v3044
        %3078 = vmatprep.subr.bf16.mxu0 %v3047
        %3079 = vmatpush1.bf16.msra.mxu0 %v3046
        %3080 = vmatprep.subr.bf16.mxu0 %v3049
        %3081 = vmatpush1.bf16.msra.mxu0 %v3048
        %3082 = vmatprep.subr.bf16.mxu0 %v3051
        %3083 = vmatpush1.bf16.msra.mxu0 %v3050
        %3084 = vmatprep.subr.bf16.mxu0 %v3053
        %3085 = vmatpush1.bf16.msra.mxu0 %v3052
        %3086 = vmatprep.subr.bf16.mxu0 0
        %3087 = vmatpush1.bf16.msra.mxu0 0
        %3088 = vmatprep.subr.bf16.mxu0 0
        %3089 = vmatpush1.bf16.msra.mxu0 0
        %3090 = vmatprep.subr.bf16.mxu0 0
        %3091 = vmatpush1.bf16.msra.mxu0 0
        %3092 = vmatprep.subr.bf16.mxu0 0
        %3093 = vmatpush1.bf16.msra.mxu0 0
        %3094 = vmatprep.subr.bf16.mxu0 0
        %3095 = vmatpush1.bf16.msra.mxu0 0
        %3096 = vmatprep.subr.bf16.mxu0 0
        %3097 = vmatpush1.bf16.msra.mxu0 0
        %3098 = vmatprep.subr.bf16.mxu0 0
        %3099 = vmatpush1.bf16.msra.mxu0 0
        %3100 = vmatprep.subr.bf16.mxu0 0
        %3101 = vmatpush1.bf16.msra.mxu0 0
        %3102 = vmatprep.mubr.bf16.mxu0 0
        %3103 = vmatmul.mubr.bf16.gmra.mrb[0].mxu0 %v2976
        %v3104 = vpop.f32.mrb[0].mxu0
        %v3105 = vadd.f32 %v2983, %v3104
        %v3106 = vpop.f32.mrb[0].mxu0
        %v3107 = vadd.f32 %v2987, %v3106
        %v3108 = vpop.f32.mrb[0].mxu0
        %v3109 = vadd.f32 %v2983, %v3108
        %v3110 = vpop.f32.mrb[0].mxu0
        %v3111 = vadd.f32 %v2987, %v3110
        %3112 = vmatprep.mubr.bf16.mxu0 0
        %3113 = vmatmul.mubr.bf16.gmra.mrb[0].mxu0 %v2977
        %v3114 = vpop.f32.mrb[0].mxu0
        %v3115 = vadd.f32 %v2983, %v3114
        %v3116 = vpop.f32.mrb[0].mxu0
        %v3117 = vadd.f32 %v2987, %v3116
        %v3118 = vpop.f32.mrb[0].mxu0
        %v3119 = vadd.f32 %v2983, %v3118
        %v3120 = vpop.f32.mrb[0].mxu0
        %v3121 = vadd.f32 %v2987, %v3120
        %3122 = vdwg.mxu0
        %v3123 = vmax.f32 %v3105, 0.0
        %v3124 = vmax.f32 %v3107, 0.0
        %v3125 = vmax.f32 %v3109, 0.0
        %v3126 = vmax.f32 %v3111, 0.0
        %v3127 = vmax.f32 %v3115, 0.0
        %v3128 = vmax.f32 %v3117, 0.0
        %v3129 = vmax.f32 %v3119, 0.0
        %v3130 = vmax.f32 %v3121, 0.0
        %v3131 = vld [vmem:[#allocation11] sm:$0xf]
        %v3132 = vld [vmem:[#allocation11 + $0x4] sm:$0xf]
        %v3133 = vld [vmem:[#allocation11 + $0x8] sm:$0xf]
        %v3134 = vld [vmem:[#allocation11 + $0xc] sm:$0xf]
        %v3135 = vld [vmem:[#allocation11 + $0x10] sm:$0xf]
        %v3136 = vld [vmem:[#allocation11 + $0x14] sm:$0xf]
        %v3137 = vld [vmem:[#allocation11 + $0x18] sm:$0xf]
        %v3138 = vld [vmem:[#allocation11 + $0x1c] sm:$0xf]
        %v3139 = vld [vmem:[#allocation11 + $0x20] sm:$0xf]
        %v3140 = vld [vmem:[#allocation11 + $0x24] sm:$0xf]
        %v3141 = vld [vmem:[#allocation11 + $0x28] sm:$0xf]
        %v3142 = vld [vmem:[#allocation11 + $0x2c] sm:$0xf]
        %v3143 = vld [vmem:[#allocation11 + $0x30] sm:$0xf]
        %v3144 = vld [vmem:[#allocation11 + $0x34] sm:$0xf]
        %v3145 = vld [vmem:[#allocation11 + $0x38] sm:$0xf]
        %v3146 = vld [vmem:[#allocation11 + $0x3c] sm:$0xf]
        %v3147 = vld [vmem:[#allocation11 + $0x40] sm:$0xf]
        %v3148 = vld [vmem:[#allocation11 + $0x44] sm:$0xf]
        %v3149 = vld [vmem:[#allocation11 + $0x48] sm:$0xf]
        %v3150 = vld [vmem:[#allocation11 + $0x4c] sm:$0xf]
        %v3151 = vld [vmem:[#allocation11 + $0x50] sm:$0xf]
        %v3152 = vld [vmem:[#allocation11 + $0x54] sm:$0xf]
        %v3153 = vld [vmem:[#allocation11 + $0x58] sm:$0xf]
        %v3154 = vld [vmem:[#allocation11 + $0x5c] sm:$0xf]
        %v3155 = vld [vmem:[#allocation11 + $0x60] sm:$0xf]
        %v3156 = vld [vmem:[#allocation11 + $0x64] sm:$0xf]
        %v3157 = vld [vmem:[#allocation11 + $0x68] sm:$0xf]
        %v3158 = vld [vmem:[#allocation11 + $0x6c] sm:$0xf]
        %v3159 = vld [vmem:[#allocation11 + $0x70] sm:$0xf]
        %v3160 = vld [vmem:[#allocation11 + $0x74] sm:$0xf]
        %v3161 = vld [vmem:[#allocation11 + $0x78] sm:$0xf]
        %v3162 = vld [vmem:[#allocation11 + $0x7c] sm:$0xf]
        %v3163 = vpack.c.bf16 %v3125, %v3123
        %v3164 = vpack.c.bf16 %v3126, %v3124
        %v3165 = vpack.c.bf16 %v3129, %v3127
        %v3166 = vpack.c.bf16 %v3130, %v3128
        %v3167 = vld [vmem:[%s10] sm:$0x1]
        %v3169 = vlaneseq
        %v3170 = vshrl.u32 %v3169, 7
        %v3171 = vsub.s32 0, %v3170
        %v3172 = vrot.slane %v3167, %v3171
        %v3206 = vunpack.c.l.b16 %v3131
        %v3207 = vunpack.c.l.b16 %v3132
        %v3208 = vunpack.c.l.b16 %v3133
        %v3209 = vunpack.c.l.b16 %v3134
        %v3210 = vunpack.c.l.b16 %v3135
        %v3211 = vunpack.c.l.b16 %v3136
        %v3212 = vunpack.c.l.b16 %v3137
        %v3213 = vunpack.c.l.b16 %v3138
        %v3214 = vunpack.c.l.b16 %v3139
        %v3215 = vunpack.c.l.b16 %v3140
        %v3216 = vunpack.c.l.b16 %v3141
        %v3217 = vunpack.c.l.b16 %v3142
        %v3218 = vunpack.c.l.b16 %v3143
        %v3219 = vunpack.c.l.b16 %v3144
        %v3220 = vunpack.c.l.b16 %v3145
        %v3221 = vunpack.c.l.b16 %v3146
        %v3222 = vunpack.c.l.b16 %v3147
        %v3223 = vunpack.c.l.b16 %v3148
        %v3224 = vunpack.c.l.b16 %v3149
        %v3225 = vunpack.c.l.b16 %v3150
        %v3226 = vunpack.c.l.b16 %v3151
        %v3227 = vunpack.c.l.b16 %v3152
        %v3228 = vunpack.c.l.b16 %v3153
        %v3229 = vunpack.c.l.b16 %v3154
        %v3230 = vunpack.c.l.b16 %v3155
        %v3231 = vunpack.c.l.b16 %v3156
        %v3232 = vunpack.c.l.b16 %v3157
        %v3233 = vunpack.c.l.b16 %v3158
        %v3234 = vunpack.c.l.b16 %v3159
        %v3235 = vunpack.c.l.b16 %v3160
        %v3236 = vunpack.c.l.b16 %v3161
        %v3237 = vunpack.c.l.b16 %v3162
        %v3238 = vpack.c.b16 %v3207, %v3206
        %v3239 = vpack.c.b16 %v3209, %v3208
        %v3240 = vpack.c.b16 %v3211, %v3210
        %v3241 = vpack.c.b16 %v3213, %v3212
        %v3242 = vpack.c.b16 %v3215, %v3214
        %v3243 = vpack.c.b16 %v3217, %v3216
        %v3244 = vpack.c.b16 %v3219, %v3218
        %v3245 = vpack.c.b16 %v3221, %v3220
        %v3246 = vpack.c.b16 %v3223, %v3222
        %v3247 = vpack.c.b16 %v3225, %v3224
        %v3248 = vpack.c.b16 %v3227, %v3226
        %v3249 = vpack.c.b16 %v3229, %v3228
        %v3250 = vpack.c.b16 %v3231, %v3230
        %v3251 = vpack.c.b16 %v3233, %v3232
        %v3252 = vpack.c.b16 %v3235, %v3234
        %v3253 = vpack.c.b16 %v3237, %v3236
        %3270 = vmatprep.subr.bf16.mxu0 0
        %3271 = vmatpush1.bf16.msra.mxu0 %v3238
        %3272 = vmatprep.subr.bf16.mxu0 0
        %3273 = vmatpush1.bf16.msra.mxu0 %v3239
        %3274 = vmatprep.subr.bf16.mxu0 0
        %3275 = vmatpush1.bf16.msra.mxu0 %v3240
        %3276 = vmatprep.subr.bf16.mxu0 0
        %3277 = vmatpush1.bf16.msra.mxu0 %v3241
        %3278 = vmatprep.subr.bf16.mxu0 0
        %3279 = vmatpush1.bf16.msra.mxu0 %v3242
        %3280 = vmatprep.subr.bf16.mxu0 0
        %3281 = vmatpush1.bf16.msra.mxu0 %v3243
        %3282 = vmatprep.subr.bf16.mxu0 0
        %3283 = vmatpush1.bf16.msra.mxu0 %v3244
        %3284 = vmatprep.subr.bf16.mxu0 0
        %3285 = vmatpush1.bf16.msra.mxu0 %v3245
        %3286 = vmatprep.subr.bf16.mxu0 0
        %3287 = vmatpush1.bf16.msra.mxu0 %v3246
        %3288 = vmatprep.subr.bf16.mxu0 0
        %3289 = vmatpush1.bf16.msra.mxu0 %v3247
        %3290 = vmatprep.subr.bf16.mxu0 0
        %3291 = vmatpush1.bf16.msra.mxu0 %v3248
        %3292 = vmatprep.subr.bf16.mxu0 0
        %3293 = vmatpush1.bf16.msra.mxu0 %v3249
        %3294 = vmatprep.subr.bf16.mxu0 0
        %3295 = vmatpush1.bf16.msra.mxu0 %v3250
        %3296 = vmatprep.subr.bf16.mxu0 0
        %3297 = vmatpush1.bf16.msra.mxu0 %v3251
        %3298 = vmatprep.subr.bf16.mxu0 0
        %3299 = vmatpush1.bf16.msra.mxu0 %v3252
        %3300 = vmatprep.subr.bf16.mxu0 0
        %3301 = vmatpush1.bf16.msra.mxu0 %v3253
        %3302 = vmatprep.mubr.bf16.mxu0 %v3164
        %3303 = vmatmul.mubr.bf16.gmra.mrb[0].mxu0 %v3163
        %v3304 = vpop.f32.mrb[0].mxu0
        %v3305 = vadd.f32 %v3172, %v3304
        %v3306 = vpop.f32.mrb[0].mxu0
        %v3307 = vpop.f32.mrb[0].mxu0
        %v3308 = vadd.f32 %v3172, %v3307
        %v3309 = vpop.f32.mrb[0].mxu0
        %3310 = vmatprep.mubr.bf16.mxu0 %v3166
        %3311 = vmatmul.mubr.bf16.gmra.mrb[0].mxu0 %v3165
        %v3312 = vpop.f32.mrb[0].mxu0
        %v3313 = vadd.f32 %v3172, %v3312
        %v3314 = vpop.f32.mrb[0].mxu0
        %v3315 = vpop.f32.mrb[0].mxu0
        %v3316 = vadd.f32 %v3172, %v3315
        %v3317 = vpop.f32.mrb[0].mxu0
        %3318 = vdwg.mxu0
        %s3319 = sld [smem:[#allocation21 + $0x1]]
        %v3320 = vmax.f32 %v3305, 0.0
        %v3321 = vmax.f32 %v3308, 0.0
        %v3322 = vmax.f32 %v3313, 0.0
        %v3323 = vmax.f32 %v3316, 0.0
        %v3324 = vld [vmem:[#allocation17] sm:$0xff]
        %v3325 = vld [vmem:[#allocation17 + $0x8] sm:$0xf]
        %v3326 = vld [vmem:[#allocation17 + $0xc] sm:$0xff]
        %v3327 = vld [vmem:[#allocation17 + $0x14] sm:$0xf]
        %v3328 = vld [vmem:[#allocation17 + $0x18] sm:$0xff]
        %v3329 = vld [vmem:[#allocation17 + $0x20] sm:$0xf]
        %v3330 = vld [vmem:[#allocation17 + $0x24] sm:$0xff]
        %v3331 = vld [vmem:[#allocation17 + $0x2c] sm:$0xf]
        %v3332 = vld [vmem:[#allocation17 + $0x30] sm:$0xff]
        %v3333 = vld [vmem:[#allocation17 + $0x38] sm:$0xf]
        %v3334 = vld [vmem:[#allocation17 + $0x3c] sm:$0xff]
        %v3335 = vld [vmem:[#allocation17 + $0x44] sm:$0xf]
        %v3336 = vld [vmem:[#allocation17 + $0x48] sm:$0xff]
        %v3337 = vld [vmem:[#allocation17 + $0x50] sm:$0xf]
        %v3338 = vld [vmem:[#allocation17 + $0x54] sm:$0xff]
        %v3339 = vld [vmem:[#allocation17 + $0x5c] sm:$0xf]
        %v3340 = vld [vmem:[#allocation17 + $0x60] sm:$0xff]
        %v3341 = vld [vmem:[#allocation17 + $0x68] sm:$0xf]
        %v3342 = vld [vmem:[#allocation17 + $0x6c] sm:$0xff]
        %v3343 = vld [vmem:[#allocation17 + $0x74] sm:$0xf]
        %v3344 = vld [vmem:[#allocation17 + $0x78] sm:$0xff]
        %v3345 = vld [vmem:[#allocation17 + $0x80] sm:$0xf]
        %v3346 = vld [vmem:[#allocation17 + $0x84] sm:$0xff]
        %v3347 = vld [vmem:[#allocation17 + $0x8c] sm:$0xf]
        %v3348 = vld [vmem:[#allocation17 + $0x90] sm:$0xff]
        %v3349 = vld [vmem:[#allocation17 + $0x98] sm:$0xf]
        %v3350 = vld [vmem:[#allocation17 + $0x9c] sm:$0xff]
        %v3351 = vld [vmem:[#allocation17 + $0xa4] sm:$0xf]
        %v3352 = vld [vmem:[#allocation17 + $0xa8] sm:$0xff]
        %v3353 = vld [vmem:[#allocation17 + $0xb0] sm:$0xf]
        %v3354 = vld [vmem:[#allocation17 + $0xb4] sm:$0xff]
        %v3355 = vld [vmem:[#allocation17 + $0xbc] sm:$0xf]
        %v3356 = vpack.c.bf16 %v3321, %v3320
        %v3357 = vpack.c.bf16 %v3323, %v3322
        %v3390 = vunpack.c.l.b16 %v3324
        %v3391 = vunpack.c.h.b16 %v3324
        %v3392 = vunpack.c.l.b16 %v3325
        %v3393 = vunpack.c.l.b16 %v3326
        %v3394 = vunpack.c.h.b16 %v3326
        %v3395 = vunpack.c.l.b16 %v3327
        %v3396 = vunpack.c.l.b16 %v3328
        %v3397 = vunpack.c.h.b16 %v3328
        %v3398 = vunpack.c.l.b16 %v3329
        %v3399 = vunpack.c.l.b16 %v3330
        %v3400 = vunpack.c.h.b16 %v3330
        %v3401 = vunpack.c.l.b16 %v3331
        %v3402 = vunpack.c.l.b16 %v3332
        %v3403 = vunpack.c.h.b16 %v3332
        %v3404 = vunpack.c.l.b16 %v3333
        %v3405 = vunpack.c.l.b16 %v3334
        %v3406 = vunpack.c.h.b16 %v3334
        %v3407 = vunpack.c.l.b16 %v3335
        %v3408 = vunpack.c.l.b16 %v3336
        %v3409 = vunpack.c.h.b16 %v3336
        %v3410 = vunpack.c.l.b16 %v3337
        %v3411 = vunpack.c.l.b16 %v3338
        %v3412 = vunpack.c.h.b16 %v3338
        %v3413 = vunpack.c.l.b16 %v3339
        %v3414 = vunpack.c.l.b16 %v3340
        %v3415 = vunpack.c.h.b16 %v3340
        %v3416 = vunpack.c.l.b16 %v3341
        %v3417 = vunpack.c.l.b16 %v3342
        %v3418 = vunpack.c.h.b16 %v3342
        %v3419 = vunpack.c.l.b16 %v3343
        %v3420 = vunpack.c.l.b16 %v3344
        %v3421 = vunpack.c.h.b16 %v3344
        %v3422 = vunpack.c.l.b16 %v3345
        %v3423 = vunpack.c.l.b16 %v3346
        %v3424 = vunpack.c.h.b16 %v3346
        %v3425 = vunpack.c.l.b16 %v3347
        %v3426 = vunpack.c.l.b16 %v3348
        %v3427 = vunpack.c.h.b16 %v3348
        %v3428 = vunpack.c.l.b16 %v3349
        %v3429 = vunpack.c.l.b16 %v3350
        %v3430 = vunpack.c.h.b16 %v3350
        %v3431 = vunpack.c.l.b16 %v3351
        %v3432 = vunpack.c.l.b16 %v3352
        %v3433 = vunpack.c.h.b16 %v3352
        %v3434 = vunpack.c.l.b16 %v3353
        %v3435 = vunpack.c.l.b16 %v3354
        %v3436 = vunpack.c.h.b16 %v3354
        %v3437 = vunpack.c.l.b16 %v3355
        %v3438 = vpack.c.b16 %v3393, %v3390
        %v3439 = vpack.c.b16 %v3394, %v3391
        %v3440 = vpack.c.b16 %v3395, %v3392
        %v3441 = vpack.c.b16 %v3399, %v3396
        %v3442 = vpack.c.b16 %v3400, %v3397
        %v3443 = vpack.c.b16 %v3401, %v3398
        %v3444 = vpack.c.b16 %v3405, %v3402
        %v3445 = vpack.c.b16 %v3406, %v3403
        %v3446 = vpack.c.b16 %v3407, %v3404
        %v3447 = vpack.c.b16 %v3411, %v3408
        %v3448 = vpack.c.b16 %v3412, %v3409
        %v3449 = vpack.c.b16 %v3413, %v3410
        %v3450 = vpack.c.b16 %v3417, %v3414
        %v3451 = vpack.c.b16 %v3418, %v3415
        %v3452 = vpack.c.b16 %v3419, %v3416
        %v3453 = vpack.c.b16 %v3423, %v3420
        %v3454 = vpack.c.b16 %v3424, %v3421
        %v3455 = vpack.c.b16 %v3425, %v3422
        %v3456 = vpack.c.b16 %v3429, %v3426
        %v3457 = vpack.c.b16 %v3430, %v3427
        %v3458 = vpack.c.b16 %v3431, %v3428
        %v3459 = vpack.c.b16 %v3435, %v3432
        %v3460 = vpack.c.b16 %v3436, %v3433
        %v3461 = vpack.c.b16 %v3437, %v3434
        %3486 = vmatprep.subr.bf16.mxu0 %v3439
        %3487 = vmatpush1.bf16.msra.mxu0 %v3438
        %3488 = vmatprep.subr.bf16.mxu0 %v3442
        %3489 = vmatpush1.bf16.msra.mxu0 %v3441
        %3490 = vmatprep.subr.bf16.mxu0 %v3445
        %3491 = vmatpush1.bf16.msra.mxu0 %v3444
        %3492 = vmatprep.subr.bf16.mxu0 %v3448
        %3493 = vmatpush1.bf16.msra.mxu0 %v3447
        %3494 = vmatprep.subr.bf16.mxu0 %v3451
        %3495 = vmatpush1.bf16.msra.mxu0 %v3450
        %3496 = vmatprep.subr.bf16.mxu0 %v3454
        %3497 = vmatpush1.bf16.msra.mxu0 %v3453
        %3498 = vmatprep.subr.bf16.mxu0 %v3457
        %3499 = vmatpush1.bf16.msra.mxu0 %v3456
        %3500 = vmatprep.subr.bf16.mxu0 %v3460
        %3501 = vmatpush1.bf16.msra.mxu0 %v3459
        %3502 = vmatprep.subr.bf16.mxu0 0
        %3503 = vmatpush1.bf16.msra.mxu0 0
        %3504 = vmatprep.subr.bf16.mxu0 0
        %3505 = vmatpush1.bf16.msra.mxu0 0
        %3506 = vmatprep.subr.bf16.mxu0 0
        %3507 = vmatpush1.bf16.msra.mxu0 0
        %3508 = vmatprep.subr.bf16.mxu0 0
        %3509 = vmatpush1.bf16.msra.mxu0 0
        %3510 = vmatprep.subr.bf16.mxu0 0
        %3511 = vmatpush1.bf16.msra.mxu0 0
        %3512 = vmatprep.subr.bf16.mxu0 0
        %3513 = vmatpush1.bf16.msra.mxu0 0
        %3514 = vmatprep.subr.bf16.mxu0 0
        %3515 = vmatpush1.bf16.msra.mxu0 0
        %3516 = vmatprep.subr.bf16.mxu0 0
        %3517 = vmatpush1.bf16.msra.mxu0 0
        %3518 = vmatprep.mubr.bf16.mxu0 0
        %3519 = vmatmul.mubr.bf16.gmra.mrb[0].mxu0 %v3356
        %v3520 = vpop.f32.mrb[0].mxu0
        %v3521 = vadd.f32 0.0, %v3520
        %v3522 = vpop.f32.mrb[0].mxu0
        %v3523 = vadd.f32 0.0, %v3522
        %v3524 = vpop.f32.mrb[0].mxu0
        %v3525 = vadd.f32 0.0, %v3524
        %v3526 = vpop.f32.mrb[0].mxu0
        %v3527 = vadd.f32 0.0, %v3526
        %3528 = vmatprep.mubr.bf16.mxu0 0
        %3529 = vmatmul.mubr.bf16.gmra.mrb[0].mxu0 %v3357
        %v3530 = vpop.f32.mrb[0].mxu0
        %v3531 = vadd.f32 0.0, %v3530
        %v3532 = vpop.f32.mrb[0].mxu0
        %v3533 = vadd.f32 0.0, %v3532
        %v3534 = vpop.f32.mrb[0].mxu0
        %v3535 = vadd.f32 0.0, %v3534
        %v3536 = vpop.f32.mrb[0].mxu0
        %v3537 = vadd.f32 0.0, %v3536
        %3538 = vdwg.mxu0
        %3539 = vmatprep.subr.bf16.mxu0 0
        %3540 = vmatpush1.bf16.msra.mxu0 %v3440
        %3541 = vmatprep.subr.bf16.mxu0 0
        %3542 = vmatpush1.bf16.msra.mxu0 %v3443
        %3543 = vmatprep.subr.bf16.mxu0 0
        %3544 = vmatpush1.bf16.msra.mxu0 %v3446
        %3545 = vmatprep.subr.bf16.mxu0 0
        %3546 = vmatpush1.bf16.msra.mxu0 %v3449
        %3547 = vmatprep.subr.bf16.mxu0 0
        %3548 = vmatpush1.bf16.msra.mxu0 %v3452
        %3549 = vmatprep.subr.bf16.mxu0 0
        %3550 = vmatpush1.bf16.msra.mxu0 %v3455
        %3551 = vmatprep.subr.bf16.mxu0 0
        %3552 = vmatpush1.bf16.msra.mxu0 %v3458
        %3553 = vmatprep.subr.bf16.mxu0 0
        %3554 = vmatpush1.bf16.msra.mxu0 %v3461
        %3555 = vmatprep.subr.bf16.mxu0 0
        %3556 = vmatpush1.bf16.msra.mxu0 0
        %3557 = vmatprep.subr.bf16.mxu0 0
        %3558 = vmatpush1.bf16.msra.mxu0 0
        %3559 = vmatprep.subr.bf16.mxu0 0
        %3560 = vmatpush1.bf16.msra.mxu0 0
        %3561 = vmatprep.subr.bf16.mxu0 0
        %3562 = vmatpush1.bf16.msra.mxu0 0
        %3563 = vmatprep.subr.bf16.mxu0 0
        %3564 = vmatpush1.bf16.msra.mxu0 0
        %3565 = vmatprep.subr.bf16.mxu0 0
        %3566 = vmatpush1.bf16.msra.mxu0 0
        %3567 = vmatprep.subr.bf16.mxu0 0
        %3568 = vmatpush1.bf16.msra.mxu0 0
        %3569 = vmatprep.subr.bf16.mxu0 0
        %3570 = vmatpush1.bf16.msra.mxu0 0
        %3571 = vmatprep.mubr.bf16.mxu0 0
        %3572 = vmatmul.mubr.bf16.gmra.mrb[0].mxu0 %v3356
        %v3573 = vpop.f32.mrb[0].mxu0
        %v3574 = vadd.f32 0.0, %v3573
        %v3575 = vpop.f32.mrb[0].mxu0
        %v3576 = vpop.f32.mrb[0].mxu0
        %v3577 = vadd.f32 0.0, %v3576
        %v3578 = vpop.f32.mrb[0].mxu0
        %3579 = vmatprep.mubr.bf16.mxu0 0
        %3580 = vmatmul.mubr.bf16.gmra.mrb[0].mxu0 %v3357
        %v3581 = vpop.f32.mrb[0].mxu0
        %v3582 = vadd.f32 0.0, %v3581
        %v3583 = vpop.f32.mrb[0].mxu0
        %v3584 = vpop.f32.mrb[0].mxu0
        %v3585 = vadd.f32 0.0, %v3584
        %v3586 = vpop.f32.mrb[0].mxu0
        %3587 = vdwg.mxu0
        %v3588 = vld [vmem:[#allocation18] sm:$0xff]
        %v3589 = vld [vmem:[#allocation18 + $0x8] sm:$0xff]
        %v3590 = vld [vmem:[#allocation18 + $0x10] sm:$0xff]
        %v3591 = vld [vmem:[#allocation18 + $0x18] sm:$0xff]
        %v3592 = vld [vmem:[#allocation18 + $0x20] sm:$0xff]
        %v3593 = vld [vmem:[#allocation18 + $0x28] sm:$0xff]
        %v3594 = vld [vmem:[#allocation18 + $0x30] sm:$0xff]
        %v3595 = vld [vmem:[#allocation18 + $0x38] sm:$0xff]
        %v3596 = vld [vmem:[#allocation18 + $0x40] sm:$0xff]
        %v3597 = vld [vmem:[#allocation18 + $0x48] sm:$0xff]
        %v3598 = vld [vmem:[#allocation18 + $0x50] sm:$0xff]
        %v3599 = vld [vmem:[#allocation18 + $0x58] sm:$0xff]
        %v3600 = vld [vmem:[#allocation18 + $0x60] sm:$0xff]
        %v3601 = vld [vmem:[#allocation18 + $0x68] sm:$0xff]
        %v3602 = vld [vmem:[#allocation18 + $0x70] sm:$0xff]
        %v3603 = vld [vmem:[#allocation18 + $0x78] sm:$0xff]
        %v3604 = vpack.c.bf16 %v2905, %v2904
        %v3605 = vpack.c.bf16 %v2907, %v2906
        %v3622 = vunpack.c.l.b16 %v3588
        %v3623 = vunpack.c.h.b16 %v3588
        %v3624 = vunpack.c.l.b16 %v3589
        %v3625 = vunpack.c.h.b16 %v3589
        %v3626 = vunpack.c.l.b16 %v3590
        %v3627 = vunpack.c.h.b16 %v3590
        %v3628 = vunpack.c.l.b16 %v3591
        %v3629 = vunpack.c.h.b16 %v3591
        %v3630 = vunpack.c.l.b16 %v3592
        %v3631 = vunpack.c.h.b16 %v3592
        %v3632 = vunpack.c.l.b16 %v3593
        %v3633 = vunpack.c.h.b16 %v3593
        %v3634 = vunpack.c.l.b16 %v3594
        %v3635 = vunpack.c.h.b16 %v3594
        %v3636 = vunpack.c.l.b16 %v3595
        %v3637 = vunpack.c.h.b16 %v3595
        %v3638 = vunpack.c.l.b16 %v3596
        %v3639 = vunpack.c.h.b16 %v3596
        %v3640 = vunpack.c.l.b16 %v3597
        %v3641 = vunpack.c.h.b16 %v3597
        %v3642 = vunpack.c.l.b16 %v3598
        %v3643 = vunpack.c.h.b16 %v3598
        %v3644 = vunpack.c.l.b16 %v3599
        %v3645 = vunpack.c.h.b16 %v3599
        %v3646 = vunpack.c.l.b16 %v3600
        %v3647 = vunpack.c.h.b16 %v3600
        %v3648 = vunpack.c.l.b16 %v3601
        %v3649 = vunpack.c.h.b16 %v3601
        %v3650 = vunpack.c.l.b16 %v3602
        %v3651 = vunpack.c.h.b16 %v3602
        %v3652 = vunpack.c.l.b16 %v3603
        %v3653 = vunpack.c.h.b16 %v3603
        %v3654 = vpack.c.b16 %v3624, %v3622
        %v3655 = vpack.c.b16 %v3625, %v3623
        %v3656 = vpack.c.b16 %v3628, %v3626
        %v3657 = vpack.c.b16 %v3629, %v3627
        %v3658 = vpack.c.b16 %v3632, %v3630
        %v3659 = vpack.c.b16 %v3633, %v3631
        %v3660 = vpack.c.b16 %v3636, %v3634
        %v3661 = vpack.c.b16 %v3637, %v3635
        %v3662 = vpack.c.b16 %v3640, %v3638
        %v3663 = vpack.c.b16 %v3641, %v3639
        %v3664 = vpack.c.b16 %v3644, %v3642
        %v3665 = vpack.c.b16 %v3645, %v3643
        %v3666 = vpack.c.b16 %v3648, %v3646
        %v3667 = vpack.c.b16 %v3649, %v3647
        %v3668 = vpack.c.b16 %v3652, %v3650
        %v3669 = vpack.c.b16 %v3653, %v3651
        %3686 = vmatprep.subr.bf16.mxu0 %v3655
        %3687 = vmatpush1.bf16.msra.mxu0 %v3654
        %3688 = vmatprep.subr.bf16.mxu0 %v3657
        %3689 = vmatpush1.bf16.msra.mxu0 %v3656
        %3690 = vmatprep.subr.bf16.mxu0 %v3659
        %3691 = vmatpush1.bf16.msra.mxu0 %v3658
        %3692 = vmatprep.subr.bf16.mxu0 %v3661
        %3693 = vmatpush1.bf16.msra.mxu0 %v3660
        %3694 = vmatprep.subr.bf16.mxu0 %v3663
        %3695 = vmatpush1.bf16.msra.mxu0 %v3662
        %3696 = vmatprep.subr.bf16.mxu0 %v3665
        %3697 = vmatpush1.bf16.msra.mxu0 %v3664
        %3698 = vmatprep.subr.bf16.mxu0 %v3667
        %3699 = vmatpush1.bf16.msra.mxu0 %v3666
        %3700 = vmatprep.subr.bf16.mxu0 %v3669
        %3701 = vmatpush1.bf16.msra.mxu0 %v3668
        %3702 = vmatprep.subr.bf16.mxu0 0
        %3703 = vmatpush1.bf16.msra.mxu0 0
        %3704 = vmatprep.subr.bf16.mxu0 0
        %3705 = vmatpush1.bf16.msra.mxu0 0
        %3706 = vmatprep.subr.bf16.mxu0 0
        %3707 = vmatpush1.bf16.msra.mxu0 0
        %3708 = vmatprep.subr.bf16.mxu0 0
        %3709 = vmatpush1.bf16.msra.mxu0 0
        %3710 = vmatprep.subr.bf16.mxu0 0
        %3711 = vmatpush1.bf16.msra.mxu0 0
        %3712 = vmatprep.subr.bf16.mxu0 0
        %3713 = vmatpush1.bf16.msra.mxu0 0
        %3714 = vmatprep.subr.bf16.mxu0 0
        %3715 = vmatpush1.bf16.msra.mxu0 0
        %3716 = vmatprep.subr.bf16.mxu0 0
        %3717 = vmatpush1.bf16.msra.mxu0 0
        %3718 = vmatprep.mubr.bf16.mxu0 0
        %3719 = vmatmul.mubr.bf16.gmra.mrb[0].mxu0 %v3604
        %v3720 = vpop.f32.mrb[0].mxu0
        %v3721 = vadd.f32 0.0, %v3720
        %v3722 = vpop.f32.mrb[0].mxu0
        %v3723 = vadd.f32 0.0, %v3722
        %v3724 = vpop.f32.mrb[0].mxu0
        %v3725 = vadd.f32 0.0, %v3724
        %v3726 = vpop.f32.mrb[0].mxu0
        %v3727 = vadd.f32 0.0, %v3726
        %3728 = vmatprep.mubr.bf16.mxu0 0
        %3729 = vmatmul.mubr.bf16.gmra.mrb[0].mxu0 %v3605
        %v3730 = vpop.f32.mrb[0].mxu0
        %v3731 = vadd.f32 0.0, %v3730
        %v3732 = vpop.f32.mrb[0].mxu0
        %v3733 = vadd.f32 0.0, %v3732
        %v3734 = vpop.f32.mrb[0].mxu0
        %v3735 = vadd.f32 0.0, %v3734
        %v3736 = vpop.f32.mrb[0].mxu0
        %v3737 = vadd.f32 0.0, %v3736
        %3738 = vdwg.mxu0
        %v3739 = vadd.f32 %v3521, %v3721
        %v3740 = vadd.f32 %v3525, %v3725
        %v3741 = vadd.f32 %v3531, %v3731
        %v3742 = vadd.f32 %v3535, %v3735
        %v3743 = vxor.u32 %v3739, 2147483648
        %v3744 = vxor.u32 %v3740, 2147483648
        %v3745 = vxor.u32 %v3741, 2147483648
        %v3746 = vxor.u32 %v3742, 2147483648
        %v3747 = vmul.f32 %v3743, 1.442695
        %v3748 = vpow.pop %v3747
        %v3749 = vmul.f32 %v3744, 1.442695
        %v3750 = vpow.pop %v3749
        %v3751 = vmul.f32 %v3745, 1.442695
        %v3752 = vpow.pop %v3751
        %v3753 = vmul.f32 %v3746, 1.442695
        %v3754 = vpow.pop %v3753
        %v3755 = vadd.f32 %v3748, 1.0
        %v3756 = vadd.f32 %v3750, 1.0
        %v3757 = vadd.f32 %v3752, 1.0
        %v3758 = vadd.f32 %v3754, 1.0
        %v3759 = vrcp.pop %v3755
        %v3760 = vmul.f32 1.0, %v3759
        %v3761 = vrcp.pop %v3756
        %v3762 = vmul.f32 1.0, %v3761
        %v3763 = vrcp.pop %v3757
        %v3764 = vmul.f32 1.0, %v3763
        %v3765 = vrcp.pop %v3758
        %v3766 = vmul.f32 1.0, %v3765
        %v3767 = vadd.f32 %v3523, %v3723
        %v3768 = vadd.f32 %v3527, %v3727
        %v3769 = vadd.f32 %v3533, %v3733
        %v3770 = vadd.f32 %v3537, %v3737
        %v3771 = vstv %s3319
        %v3772 = vsub.f32 %v3767, %v3771
        %v3773 = vsub.f32 %v3768, %v3771
        %v3774 = vsub.f32 %v3769, %v3771
        %v3775 = vsub.f32 %v3770, %v3771
        %v3776 = vxor.u32 %v3772, 2147483648
        %v3777 = vxor.u32 %v3773, 2147483648
        %v3778 = vxor.u32 %v3774, 2147483648
        %v3779 = vxor.u32 %v3775, 2147483648
        %v3780 = vmul.f32 %v3776, 1.442695
        %v3781 = vpow.pop %v3780
        %v3782 = vmul.f32 %v3777, 1.442695
        %v3783 = vpow.pop %v3782
        %v3784 = vmul.f32 %v3778, 1.442695
        %v3785 = vpow.pop %v3784
        %v3786 = vmul.f32 %v3779, 1.442695
        %v3787 = vpow.pop %v3786
        %v3788 = vadd.f32 %v3781, 1.0
        %v3789 = vadd.f32 %v3783, 1.0
        %v3790 = vadd.f32 %v3785, 1.0
        %v3791 = vadd.f32 %v3787, 1.0
        %v3792 = vrcp.pop %v3788
        %v3793 = vmul.f32 1.0, %v3792
        %v3794 = vrcp.pop %v3789
        %v3795 = vmul.f32 1.0, %v3794
        %v3796 = vrcp.pop %v3790
        %v3797 = vmul.f32 1.0, %v3796
        %v3798 = vrcp.pop %v3791
        %v3799 = vmul.f32 1.0, %v3798
        %v3800 = vmul.f32 %v3760, %v2904
        %v3801 = vmul.f32 %v3762, %v2905
        %v3802 = vmul.f32 %v3764, %v2906
        %v3803 = vmul.f32 %v3766, %v2907
        %v3804 = vld [vmem:[#allocation20] sm:$0xf]
        %v3805 = vld [vmem:[#allocation20 + $0x4] sm:$0xf]
        %v3806 = vld [vmem:[#allocation20 + $0x8] sm:$0xf]
        %v3807 = vld [vmem:[#allocation20 + $0xc] sm:$0xf]
        %v3808 = vld [vmem:[#allocation20 + $0x10] sm:$0xf]
        %v3809 = vld [vmem:[#allocation20 + $0x14] sm:$0xf]
        %v3810 = vld [vmem:[#allocation20 + $0x18] sm:$0xf]
        %v3811 = vld [vmem:[#allocation20 + $0x1c] sm:$0xf]
        %v3812 = vld [vmem:[#allocation20 + $0x20] sm:$0xf]
        %v3813 = vld [vmem:[#allocation20 + $0x24] sm:$0xf]
        %v3814 = vld [vmem:[#allocation20 + $0x28] sm:$0xf]
        %v3815 = vld [vmem:[#allocation20 + $0x2c] sm:$0xf]
        %v3816 = vld [vmem:[#allocation20 + $0x30] sm:$0xf]
        %v3817 = vld [vmem:[#allocation20 + $0x34] sm:$0xf]
        %v3818 = vld [vmem:[#allocation20 + $0x38] sm:$0xf]
        %v3819 = vld [vmem:[#allocation20 + $0x3c] sm:$0xf]
        %v3820 = vpack.c.bf16 %v3801, %v3800
        %v3821 = vpack.c.bf16 %v3803, %v3802
        %v3838 = vunpack.c.l.b16 %v3804
        %v3839 = vunpack.c.l.b16 %v3805
        %v3840 = vunpack.c.l.b16 %v3806
        %v3841 = vunpack.c.l.b16 %v3807
        %v3842 = vunpack.c.l.b16 %v3808
        %v3843 = vunpack.c.l.b16 %v3809
        %v3844 = vunpack.c.l.b16 %v3810
        %v3845 = vunpack.c.l.b16 %v3811
        %v3846 = vunpack.c.l.b16 %v3812
        %v3847 = vunpack.c.l.b16 %v3813
        %v3848 = vunpack.c.l.b16 %v3814
        %v3849 = vunpack.c.l.b16 %v3815
        %v3850 = vunpack.c.l.b16 %v3816
        %v3851 = vunpack.c.l.b16 %v3817
        %v3852 = vunpack.c.l.b16 %v3818
        %v3853 = vunpack.c.l.b16 %v3819
        %v3854 = vpack.c.b16 %v3839, %v3838
        %v3855 = vpack.c.b16 %v3841, %v3840
        %v3856 = vpack.c.b16 %v3843, %v3842
        %v3857 = vpack.c.b16 %v3845, %v3844
        %v3858 = vpack.c.b16 %v3847, %v3846
        %v3859 = vpack.c.b16 %v3849, %v3848
        %v3860 = vpack.c.b16 %v3851, %v3850
        %v3861 = vpack.c.b16 %v3853, %v3852
        %3870 = vmatprep.subr.bf16.mxu0 0
        %3871 = vmatpush1.bf16.msra.mxu0 %v3854
        %3872 = vmatprep.subr.bf16.mxu0 0
        %3873 = vmatpush1.bf16.msra.mxu0 %v3855
        %3874 = vmatprep.subr.bf16.mxu0 0
        %3875 = vmatpush1.bf16.msra.mxu0 %v3856
        %3876 = vmatprep.subr.bf16.mxu0 0
        %3877 = vmatpush1.bf16.msra.mxu0 %v3857
        %3878 = vmatprep.subr.bf16.mxu0 0
        %3879 = vmatpush1.bf16.msra.mxu0 %v3858
        %3880 = vmatprep.subr.bf16.mxu0 0
        %3881 = vmatpush1.bf16.msra.mxu0 %v3859
        %3882 = vmatprep.subr.bf16.mxu0 0
        %3883 = vmatpush1.bf16.msra.mxu0 %v3860
        %3884 = vmatprep.subr.bf16.mxu0 0
        %3885 = vmatpush1.bf16.msra.mxu0 %v3861
        %3886 = vmatprep.subr.bf16.mxu0 0
        %3887 = vmatpush1.bf16.msra.mxu0 0
        %3888 = vmatprep.subr.bf16.mxu0 0
        %3889 = vmatpush1.bf16.msra.mxu0 0
        %3890 = vmatprep.subr.bf16.mxu0 0
        %3891 = vmatpush1.bf16.msra.mxu0 0
        %3892 = vmatprep.subr.bf16.mxu0 0
        %3893 = vmatpush1.bf16.msra.mxu0 0
        %3894 = vmatprep.subr.bf16.mxu0 0
        %3895 = vmatpush1.bf16.msra.mxu0 0
        %3896 = vmatprep.subr.bf16.mxu0 0
        %3897 = vmatpush1.bf16.msra.mxu0 0
        %3898 = vmatprep.subr.bf16.mxu0 0
        %3899 = vmatpush1.bf16.msra.mxu0 0
        %3900 = vmatprep.subr.bf16.mxu0 0
        %3901 = vmatpush1.bf16.msra.mxu0 0
        %3902 = vmatprep.mubr.bf16.mxu0 0
        %3903 = vmatmul.mubr.bf16.gmra.mrb[0].mxu0 %v3820
        %v3904 = vpop.f32.mrb[0].mxu0
        %v3905 = vadd.f32 0.0, %v3904
        %v3906 = vpop.f32.mrb[0].mxu0
        %v3907 = vpop.f32.mrb[0].mxu0
        %v3908 = vadd.f32 0.0, %v3907
        %v3909 = vpop.f32.mrb[0].mxu0
        %3910 = vmatprep.mubr.bf16.mxu0 0
        %3911 = vmatmul.mubr.bf16.gmra.mrb[0].mxu0 %v3821
        %v3912 = vpop.f32.mrb[0].mxu0
        %v3913 = vadd.f32 0.0, %v3912
        %v3914 = vpop.f32.mrb[0].mxu0
        %v3915 = vpop.f32.mrb[0].mxu0
        %v3916 = vadd.f32 0.0, %v3915
        %v3917 = vpop.f32.mrb[0].mxu0
        %3918 = vdwg.mxu0
        %v3919 = vadd.f32 %v3574, %v3905
        %v3920 = vadd.f32 %v3577, %v3908
        %v3921 = vadd.f32 %v3582, %v3913
        %v3922 = vadd.f32 %v3585, %v3916
        %v3923 = vtanh.pop %v3919
        %v3924 = vtanh.pop %v3920
        %v3925 = vtanh.pop %v3921
        %v3926 = vtanh.pop %v3922
        %v3927 = vsub.f32 1.0, %v3793
        %v3928 = vsub.f32 1.0, %v3795
        %v3929 = vsub.f32 1.0, %v3797
        %v3930 = vsub.f32 1.0, %v3799
        %v3931 = vmul.f32 %v3927, %v2904
        %v3932 = vmul.f32 %v3928, %v2905
        %v3933 = vmul.f32 %v3929, %v2906
        %v3934 = vmul.f32 %v3930, %v2907
        %v3935 = vmul.f32 %v3793, %v3923
        %v3936 = vmul.f32 %v3795, %v3924
        %v3937 = vmul.f32 %v3797, %v3925
        %v3938 = vmul.f32 %v3799, %v3926
        %v3939 = vadd.f32 %v3931, %v3935
        %v3940 = vadd.f32 %v3932, %v3936
        %v3941 = vadd.f32 %v3933, %v3937
        %v3942 = vadd.f32 %v3934, %v3938
        %3943 = vst [vmem:[%s753] sm:$0xff] %v3939
        %3944 = vst [vmem:[%s753 + $0x8] sm:$0xff] %v3940
        %3945 = vst [vmem:[%s753 + $0x10] sm:$0xff] %v3941
        %3946 = vst [vmem:[%s753 + $0x18] sm:$0xff] %v3942
        %s3947 = sand.u32 %s432, 1
        %s3948 = scalar_lea.sflag [#allocation4], %s3947
        %s3949 = sand.u32 %s432, 1
        %s3950 = smul.addr %s3949, 32
        %s3951 = scalar_lea.vmem [#allocation22], %s3950
        // Predicated region
        $region141: #{tpu_custom_call.1} parent=91 // pred_check
          %p3952 = pneg %p442
        $region142: #{tpu_custom_call.1} parent=91 // pred_check_branch
          %3954 = sbr.rel (%p3952) target = $region144
        $region143: #{tpu_custom_call.1} parent=91 // pred_region
          %s3955 = smul.u32 2, %s41
          %s3957 = ssub.s32 512, 512
          %3958 = vsyncadd %s3948, %s3957
          %s3959 = smul.addr %s3955, 2
          %s3960 = smul.addr %s3959, 128
          %s3961 = scalar_lea.hbm %s18, %s3960
          %s3962 = sshll.u32 %s3951, 4
          %s3963 = int_to_ptr.vmem [resolvable:$true] %s3962
          %3968 = dma.vmem_to_hbm [thread:$0]  %s3963, 512, %s3961, %s3948, 128, 128, 8
        $region144: #{tpu_custom_call.1} parent=91 // pred_fallthru
          _
      $region92: #{tpu_custom_call.1} parent=5 // pred_fallthru
        _
      %p3969 = scmp.le.s32.totalorder 2, %s36
      // Predicated region
      $region145: #{tpu_custom_call.1} parent=5 // pred_check
        %p3970 = pneg %p3969
      $region146: #{tpu_custom_call.1} parent=5 // pred_check_branch
        %3972 = sbr.rel (%p3970) target = $region148
      $region147: #{tpu_custom_call.1} parent=5 // pred_region
        %s3973 = ssub.s32 %s36, 2
        // Predicated region
        $region149: #{tpu_custom_call.1} parent=147 // pred_check
          %p3974 = pneg %p448
        $region150: #{tpu_custom_call.1} parent=147 // pred_check_branch
          %3976 = sbr.rel (%p3974) target = $region152
        $region151: #{tpu_custom_call.1} parent=147 // pred_region
          %s3977 = sand.u32 %s433, 1
          %s3978 = scalar_lea.sflag [#allocation4], %s3977
          %s3979 = sand.u32 %s433, 1
          %s3980 = smul.addr %s3979, 32
          %s3981 = scalar_lea.vmem [#allocation22], %s3980
          %3982 = dma.done %s3978, 512
        $region152: #{tpu_custom_call.1} parent=147 // pred_fallthru
          _
      $region148: #{tpu_custom_call.1} parent=5 // pred_fallthru
        _
    $region6: #{tpu_custom_call.1} parent=1 // loop_footer
      %s40 = sadd.s32 1, %s36
    $region7: #{tpu_custom_call.1} parent=1 // loop_footer_branch
      %35 = sbr.rel target = $region3
    $region8: #{tpu_custom_call.1} parent=1 // loop_exit
      _
    %3983 = vsyncpa [#allocation3], 1
    %s3984 = scalar_lea.sflag [#allocation3], 1
    %3985 = vsyncpa %s3984, 1
    %3986 = vsyncpa [#allocation7], 1
    %3987 = vsyncpa [#allocation10], 1
    %3988 = vsyncpa [#allocation13], 1
    %3989 = vsyncpa [#allocation16], 1
    %3990 = vsyncpa [#allocation19], 1
    %3991 = vsyncpa [#allocation4], 1
    %s3992 = scalar_lea.sflag [#allocation4], 1
    %3993 = vsyncpa %s3992, 1
    %3994 = vsyncpa [#allocation5], 1
    %s3995 = scalar_lea.sflag [#allocation5], 1
    %3996 = vsyncpa %s3995, 1

</llo_original>
